<compile_context>
chip_gen: v7x
topology: tpu7x:2x2x1
jax: 0.10.0
libtpu: 0.0.40
codegen_flags: <defaults>
</compile_context>

<pallas_src>
import functools

import jax
import jax.numpy as jnp
from jax.experimental import pallas as pl
from jax.experimental.pallas import tpu as pltpu

IN_FEATURES = 2000
HIDDEN = 1024
OUT_FEATURES = 2


def _round_up(x, m):
    return ((x + m - 1) // m) * m


def mlp_softmax_kernel(x_ref, w1_ref, b1_ref, w2_ref, b2_ref, o_ref):
    """One independent batch tile of Linear -> SiLU -> Linear.

    x_ref  : (tb, 2000)  f32   (streamed per tile, cast to bf16 in-kernel)
    w1_ref : (2000, 1024) bf16 (grid-invariant, resident in VMEM)
    b1_ref : (1, 1024)    f32
    w2_ref : (2, 1024)    f32  (PyTorch (out, in) layout)
    b2_ref : (1, 2)       f32
    o_ref  : (tb, 2)      f32  (per-tile logits; softmax happens in wrapper)
    """
    # Linear 1 on the MXU: bf16 inputs, f32 accumulation.  The bf16 cast is a
    # handful of VPU vreg casts per tile, fully hidden under the MXU.
    x_bf16 = x_ref[...].astype(jnp.bfloat16)
    h = jnp.dot(x_bf16, w1_ref[...], preferred_element_type=jnp.float32)
    h = h + b1_ref[...]

    # SiLU in f32 (EUP exp + reciprocal; well within slack under the MXU).
    h = h * jax.nn.sigmoid(h)

    # Linear 2 (N=2): per-row reductions on VPU/XLU instead of a lane-padded
    # MXU matmul.
    l0 = jnp.sum(h * w2_ref[0:1, :], axis=-1, keepdims=True)   # (tb, 1)
    l1 = jnp.sum(h * w2_ref[1:2, :], axis=-1, keepdims=True)   # (tb, 1)
    o_ref[...] = jnp.concatenate([l0, l1], axis=-1) + b2_ref[...]


def prepare_params(w1, b1, w2, b2):
    """One-time parameter prep (outside the per-call hot path):
    transpose W1 to (in, out) and cast to bf16; keep K=2000 (no padding)."""
    w1_t = w1.T.astype(jnp.bfloat16)                  # (2000, 1024)
    b1_2d = b1.reshape(1, HIDDEN).astype(jnp.float32)
    w2_f = w2.astype(jnp.float32)                     # (2, 1024)
    b2_2d = b2.reshape(1, OUT_FEATURES).astype(jnp.float32)
    return w1_t, b1_2d, w2_f, b2_2d


def model_softmax_forward(x, w1_t, b1_2d, w2_f, b2_2d, *, batch_tile=512):
    """x: (B, 2000). Params from prepare_params(). Returns (B, 2) f32."""
    B = x.shape[0]
    x = x.astype(jnp.float32)            # matches x.float() in the PyTorch module

    # Batch tile: multiple of 8 sublanes.  512 is a good default on v6e/v7x;
    # MXU-bound either way on v5e (128 MiB VMEM, larger tiles also fine).
    tb = min(_round_up(batch_tile, 8), _round_up(B, 8))
    b_pad = _round_up(B, tb)
    if b_pad != B:
        # Only pads the batch axis (no K padding / no dtype rewrite of x).
        x = jnp.pad(x, ((0, b_pad - B), (0, 0)))

    logits = pl.pallas_call(
        mlp_softmax_kernel,
        out_shape=jax.ShapeDtypeStruct((b_pad, OUT_FEATURES), jnp.float32),
        grid_spec=pltpu.PrefetchScalarGridSpec(
            num_scalar_prefetch=0,
            grid=(b_pad // tb,),
            in_specs=[
                # x: streamed / double-buffered per batch tile (full K=2000
                # last dim -> no padding needed).
                pl.BlockSpec((tb, IN_FEATURES), lambda i: (i, 0)),
                # W1: grid-invariant block -> DMA'd once, stays resident.
                pl.BlockSpec((IN_FEATURES, HIDDEN), lambda i: (0, 0)),
                pl.BlockSpec((1, HIDDEN), lambda i: (0, 0)),
                pl.BlockSpec((OUT_FEATURES, HIDDEN), lambda i: (0, 0)),
                pl.BlockSpec((1, OUT_FEATURES), lambda i: (0, 0)),
            ],
            # Per-tile output block: no revisiting, so the grid can be fully
            # parallel (shards across both TensorCores on v7x).
            out_specs=pl.BlockSpec((tb, OUT_FEATURES), lambda i: (i, 0)),
        ),
        compiler_params=pltpu.CompilerParams(
            dimension_semantics=("parallel",),
            vmem_limit_bytes=48 << 20,
        ),
    )(x, w1_t, b1_2d, w2_f, b2_2d)

    # Softmax over dim=0 (batch axis) on the unpadded rows; a (B, 2) op,
    # essentially free in XLA.
    return jax.nn.softmax(logits[:B], axis=0)


def init_params(key):
    """Deterministic parameter init (PyTorch nn.Linear shapes: weight=(out,in))."""
    k1, k2, k3, k4 = jax.random.split(key, 4)
    s1 = 1.0 / jnp.sqrt(IN_FEATURES)
    s2 = 1.0 / jnp.sqrt(HIDDEN)
    w1 = jax.random.uniform(k1, (HIDDEN, IN_FEATURES), jnp.float32, -s1, s1)
    b1 = jax.random.uniform(k2, (HIDDEN,), jnp.float32, -s1, s1)
    w2 = jax.random.uniform(k3, (OUT_FEATURES, HIDDEN), jnp.float32, -s2, s2)
    b2 = jax.random.uniform(k4, (OUT_FEATURES,), jnp.float32, -s2, s2)
    return w1, b1, w2, b2


if __name__ == "__main__":
    key = jax.random.PRNGKey(0)
    kx, kp = jax.random.split(key)
    B = 8
    x = jax.random.normal(kx, (B, IN_FEATURES), jnp.float32)
    w1, b1, w2, b2 = init_params(kp)

    # One-time weight prep (hoisted out of the per-call path).
    w1_t, b1_2d, w2_f, b2_2d = prepare_params(w1, b1, w2, b2)

    out = model_softmax_forward(x, w1_t, b1_2d, w2_f, b2_2d)
    out = jax.block_until_ready(out)

    # Reference check in plain f32 JAX (bf16 matmul => relaxed tolerance).
    h_ref = x @ w1.T + b1
    h_ref = h_ref * jax.nn.sigmoid(h_ref)
    logits_ref = h_ref @ w2.T + b2
    ref = jax.nn.softmax(logits_ref, axis=0)

    assert out.shape == (B, OUT_FEATURES)
    assert jnp.allclose(out, ref, atol=2e-2, rtol=2e-2)
    print("KERNEL_OK")
</pallas_src>

<mosaic_0001>
module attributes {stable_mosaic.version = 11 : i64} {
  func.func @mlp_softmax_kernel(%arg0: i32, %arg1: memref<8x2000xf32, #tpu.memory_space<vmem>>, %arg2: memref<2000x1024xbf16, #tpu.memory_space<vmem>>, %arg3: memref<1x1024xf32, #tpu.memory_space<vmem>>, %arg4: memref<2x1024xf32, #tpu.memory_space<vmem>>, %arg5: memref<1x2xf32, #tpu.memory_space<vmem>>, %arg6: memref<8x2xf32, #tpu.memory_space<vmem>>) attributes {dimension_semantics = [#tpu.dimension_semantics<parallel>], iteration_bounds = array<i64: 1>, scalar_prefetch = 0 : i64, scratch_operands = 0 : i64, tpu.core_type = #tpu.core_type<tc>, window_params = [{transform_indices = @transform_0, window_bounds = array<i64: 8, 2000>}, {pipeline_mode = #tpu.pipeline_mode<synchronous>, transform_indices = @transform_1, window_bounds = array<i64: 2000, 1024>}, {pipeline_mode = #tpu.pipeline_mode<synchronous>, transform_indices = @transform_2, window_bounds = array<i64: 1, 1024>}, {pipeline_mode = #tpu.pipeline_mode<synchronous>, transform_indices = @transform_3, window_bounds = array<i64: 2, 1024>}, {pipeline_mode = #tpu.pipeline_mode<synchronous>, transform_indices = @transform_4, window_bounds = array<i64: 1, 2>}, {transform_indices = @transform_5, window_bounds = array<i64: 8, 2>}]} {
    %c0 = arith.constant 0 : index
    %c0_0 = arith.constant 0 : index
    %0 = vector.load %arg1[%c0, %c0_0] : memref<8x2000xf32, #tpu.memory_space<vmem>>, vector<8x2000xf32>
    %1 = arith.truncf %0 : vector<8x2000xf32> to vector<8x2000xbf16>
    %c0_1 = arith.constant 0 : index
    %c0_2 = arith.constant 0 : index
    %2 = vector.load %arg2[%c0_1, %c0_2] : memref<2000x1024xbf16, #tpu.memory_space<vmem>>, vector<2000x1024xbf16>
    %cst = arith.constant dense<0.000000e+00> : vector<8x1024xf32>
    %3 = tpu.matmul %1, %2, %cst {dimension_numbers = #tpu.dot_dimension_numbers<[1], [0], [0], [1], [0, 0, 1, 1], [], []>} : vector<8x2000xbf16>, vector<2000x1024xbf16>, vector<8x1024xf32> -> vector<8x1024xf32>
    %c0_3 = arith.constant 0 : index
    %c0_4 = arith.constant 0 : index
    %4 = vector.load %arg3[%c0_3, %c0_4] : memref<1x1024xf32, #tpu.memory_space<vmem>>, vector<1x1024xf32>
    %5 = vector.broadcast %4 : vector<1x1024xf32> to vector<8x1024xf32>
    %6 = arith.addf %3, %5 : vector<8x1024xf32>
    %7 = arith.negf %6 : vector<8x1024xf32>
    %8 = math.exp %7 : vector<8x1024xf32>
    %cst_5 = arith.constant 1.000000e+00 : f32
    %9 = vector.broadcast %cst_5 : f32 to vector<8x1024xf32>
    %10 = arith.addf %9, %8 : vector<8x1024xf32>
    %11 = arith.divf %9, %10 : vector<8x1024xf32>
    %12 = arith.mulf %6, %11 : vector<8x1024xf32>
    %c0_6 = arith.constant 0 : index
    %c0_7 = arith.constant 0 : index
    %13 = vector.load %arg4[%c0_6, %c0_7] : memref<2x1024xf32, #tpu.memory_space<vmem>>, vector<1x1024xf32>
    %14 = vector.broadcast %13 : vector<1x1024xf32> to vector<8x1024xf32>
    %15 = arith.mulf %12, %14 : vector<8x1024xf32>
    %cst_8 = arith.constant dense<0.000000e+00> : vector<8xf32>
    %16 = vector.multi_reduction <add>, %15, %cst_8 [1] : vector<8x1024xf32> to vector<8xf32>
    %17 = vector.shape_cast %16 : vector<8xf32> to vector<8x1xf32>
    %c1 = arith.constant 1 : index
    %c0_9 = arith.constant 0 : index
    %18 = vector.load %arg4[%c1, %c0_9] : memref<2x1024xf32, #tpu.memory_space<vmem>>, vector<1x1024xf32>
    %19 = vector.broadcast %18 : vector<1x1024xf32> to vector<8x1024xf32>
    %20 = arith.mulf %12, %19 : vector<8x1024xf32>
    %cst_10 = arith.constant dense<0.000000e+00> : vector<8xf32>
    %21 = vector.multi_reduction <add>, %20, %cst_10 [1] : vector<8x1024xf32> to vector<8xf32>
    %22 = vector.shape_cast %21 : vector<8xf32> to vector<8x1xf32>
    %23 = tpu.concatenate %17, %22 in 1 : vector<8x1xf32>, vector<8x1xf32> -> vector<8x2xf32>
    %c0_11 = arith.constant 0 : index
    %c0_12 = arith.constant 0 : index
    %24 = vector.load %arg5[%c0_11, %c0_12] : memref<1x2xf32, #tpu.memory_space<vmem>>, vector<1x2xf32>
    %25 = vector.broadcast %24 : vector<1x2xf32> to vector<8x2xf32>
    %26 = arith.addf %23, %25 : vector<8x2xf32>
    %c0_13 = arith.constant 0 : index
    %c0_14 = arith.constant 0 : index
    %27 = vector.load %arg6[%c0_13, %c0_14] : memref<8x2xf32, #tpu.memory_space<vmem>>, vector<8x2xf32>
    tpu.vector_store %arg6[%c0_13, %c0_14], %26 {strides = array<i32>} : memref<8x2xf32, #tpu.memory_space<vmem>>, vector<8x2xf32>,
    return
  }
  func.func @transform_0(%arg0: i32) -> (i32, i32) {
    %c0_i32 = arith.constant 0 : i32
    %c0_i32_0 = arith.constant 0 : i32
    return %arg0, %c0_i32 : i32, i32
  }
  func.func @transform_1(%arg0: i32) -> (i32, i32) {
    %c0_i32 = arith.constant 0 : i32
    %c0_i32_0 = arith.constant 0 : i32
    %c0_i32_1 = arith.constant 0 : i32
    return %c0_i32, %c0_i32_0 : i32, i32
  }
  func.func @transform_2(%arg0: i32) -> (i32, i32) {
    %c0_i32 = arith.constant 0 : i32
    %c0_i32_0 = arith.constant 0 : i32
    %c0_i32_1 = arith.constant 0 : i32
    return %c0_i32, %c0_i32_0 : i32, i32
  }
  func.func @transform_3(%arg0: i32) -> (i32, i32) {
    %c0_i32 = arith.constant 0 : i32
    %c0_i32_0 = arith.constant 0 : i32
    %c0_i32_1 = arith.constant 0 : i32
    return %c0_i32, %c0_i32_0 : i32, i32
  }
  func.func @transform_4(%arg0: i32) -> (i32, i32) {
    %c0_i32 = arith.constant 0 : i32
    %c0_i32_0 = arith.constant 0 : i32
    %c0_i32_1 = arith.constant 0 : i32
    return %c0_i32, %c0_i32_0 : i32, i32
  }
  func.func @transform_5(%arg0: i32) -> (i32, i32) {
    %c0_i32 = arith.constant 0 : i32
    %c0_i32_0 = arith.constant 0 : i32
    return %arg0, %c0_i32 : i32, i32
  }
}

</mosaic_0001>

<llo_original>
// kernel: tpu_custom_call.1
$region0: #{tpu_custom_call.1}
  #allocation0 [shape = 'u32[]', space=smem, size = 0x4, offset = 0x4, fixed_abs, tag = 'smem constant byte address 0x4 - core index']
  #allocation1 [shape = 'u32[144,128]{1,0:T(1,128)}', space=vmem, size = 0x12000, scoped, tag = 'internal scratch']
  %s0 = inlined_call_operand.hbm [shape: f32[8,2000], index: 0, kind: input, shape index: {}]
  %s1 = inlined_call_operand.hbm [shape: bf16[2000,1024], index: 1, kind: input, shape index: {}]
  %s2 = inlined_call_operand.hbm [shape: f32[1,1024], index: 2, kind: input, shape index: {}]
  %s3 = inlined_call_operand.hbm [shape: f32[2,1024], index: 3, kind: input, shape index: {}]
  %s4 = inlined_call_operand.hbm [shape: f32[1,2], index: 4, kind: input, shape index: {}]
  %s5 = inlined_call_operand.vmem [shape: f32[8,2], index: 5, kind: output, shape index: {}]
  %s6 = sld [smem:[#allocation0]]
  $region50: #{tpu_custom_call.1} parent=0
    _
  %s8 = ssub.s32 1, %s6
  %s9 = scalar_select 0, %s8, %s6
  $region1: #{tpu_custom_call.1} parent=0
    #allocation2 [shape = 'u8[65536]{0}', space=vmem, size = 0x10000, scoped, tag = 'input window, operand 0, single buffered']
    #allocation3 [shape = 's32[1]{0}', space=sflag, size = 0x4, scoped, tag = 'scoped memory for tpu_custom_call.1']
    #allocation4 [shape = 'u8[4096000]{0}', space=vmem, size = 0x3e8000, scoped, tag = 'input window, operand 1, single buffered']
    #allocation5 [shape = 's32[1]{0}', space=sflag, size = 0x4, scoped, tag = 'scoped memory for tpu_custom_call.1']
    #allocation6 [shape = 'u8[4096]{0}', space=vmem, size = 0x1000, scoped, tag = 'input window, operand 2, single buffered']
    #allocation7 [shape = 'u8[8192]{0}', space=vmem, size = 0x2000, scoped, tag = 'input window, operand 3, single buffered']
    #allocation8 [shape = 's32[1]{0}', space=sflag, size = 0x4, scoped, tag = 'scoped memory for tpu_custom_call.1']
    #allocation9 [shape = 'u8[512]{0}', space=vmem, size = 0x400, scoped, tag = 'input window, operand 4, single buffered']
    %10 = vsyncpa [#allocation3], 0
    %11 = vsyncpa [#allocation5], 0
    %12 = vsyncpa [#allocation8], 0
    // Predicated region
    $region2: #{tpu_custom_call.1} parent=1 // pred_check
      _
    $region3: #{tpu_custom_call.1} parent=1 // pred_check_branch
      %14 = sbr.rel (0) target = $region5
    $region4: #{tpu_custom_call.1} parent=1 // pred_region
      %s16 = ssub.s32 2048, 2048
      %17 = vsyncadd [#allocation3], %s16
      %s19 = sshll.u32 [#allocation2], 4
      %s20 = int_to_ptr.vmem [resolvable:$true] %s19
      %22 = dma.hbm_to_vmem [thread:$0]  %s0, 2048, %s20, [#allocation3]
    $region5: #{tpu_custom_call.1} parent=1 // pred_fallthru
      _
    // Predicated region
    $region6: #{tpu_custom_call.1} parent=1 // pred_check
      _
    $region7: #{tpu_custom_call.1} parent=1 // pred_check_branch
      %24 = sbr.rel (0) target = $region9
    $region8: #{tpu_custom_call.1} parent=1 // pred_region
      %s26 = ssub.s32 128000, 128000
      %27 = vsyncadd [#allocation5], %s26
      %s28 = sshll.u32 [#allocation4], 4
      %s29 = int_to_ptr.vmem [resolvable:$true] %s28
      %34 = dma.hbm_to_vmem [thread:$0]  %s1, 128000, %s29, [#allocation5], 512, 512, 32
    $region9: #{tpu_custom_call.1} parent=1 // pred_fallthru
      _
    // Predicated region
    $region10: #{tpu_custom_call.1} parent=1 // pred_check
      _
    $region11: #{tpu_custom_call.1} parent=1 // pred_check_branch
      %36 = sbr.rel (0) target = $region13
    $region12: #{tpu_custom_call.1} parent=1 // pred_region
      %s38 = ssub.s32 128, 128
      %39 = vsyncadd [#allocation5], %s38
      %s41 = sshll.u32 [#allocation6], 4
      %s42 = int_to_ptr.vmem [resolvable:$true] %s41
      %44 = dma.hbm_to_vmem [thread:$0]  %s2, 128, %s42, [#allocation5]
    $region13: #{tpu_custom_call.1} parent=1 // pred_fallthru
      _
    // Predicated region
    $region14: #{tpu_custom_call.1} parent=1 // pred_check
      _
    $region15: #{tpu_custom_call.1} parent=1 // pred_check_branch
      %46 = sbr.rel (0) target = $region17
    $region16: #{tpu_custom_call.1} parent=1 // pred_region
      %s48 = ssub.s32 256, 256
      %49 = vsyncadd [#allocation8], %s48
      %s51 = sshll.u32 [#allocation7], 4
      %s52 = int_to_ptr.vmem [resolvable:$true] %s51
      %54 = dma.hbm_to_vmem [thread:$0]  %s3, 256, %s52, [#allocation8]
    $region17: #{tpu_custom_call.1} parent=1 // pred_fallthru
      _
    // Predicated region
    $region18: #{tpu_custom_call.1} parent=1 // pred_check
      _
    $region19: #{tpu_custom_call.1} parent=1 // pred_check_branch
      %56 = sbr.rel (0) target = $region21
    $region20: #{tpu_custom_call.1} parent=1 // pred_region
      %s58 = ssub.s32 16, 16
      %59 = vsyncadd [#allocation8], %s58
      %s61 = sshll.u32 [#allocation9], 4
      %s62 = int_to_ptr.vmem [resolvable:$true] %s61
      %64 = dma.hbm_to_vmem [thread:$0]  %s4, 16, %s62, [#allocation8]
    $region21: #{tpu_custom_call.1} parent=1 // pred_fallthru
      _
    // Predicated region
    $region22: #{tpu_custom_call.1} parent=1 // pred_check
      _
    $region23: #{tpu_custom_call.1} parent=1 // pred_check_branch
      %66 = sbr.rel (0) target = $region25
    $region24: #{tpu_custom_call.1} parent=1 // pred_region
      %67 = dma.done [#allocation3], 2048
    $region25: #{tpu_custom_call.1} parent=1 // pred_fallthru
      _
    // Predicated region
    $region26: #{tpu_custom_call.1} parent=1 // pred_check
      _
    $region27: #{tpu_custom_call.1} parent=1 // pred_check_branch
      %69 = sbr.rel (0) target = $region29
    $region28: #{tpu_custom_call.1} parent=1 // pred_region
      %70 = dma.done [#allocation5], 128000
    $region29: #{tpu_custom_call.1} parent=1 // pred_fallthru
      _
    // Predicated region
    $region30: #{tpu_custom_call.1} parent=1 // pred_check
      _
    $region31: #{tpu_custom_call.1} parent=1 // pred_check_branch
      %72 = sbr.rel (0) target = $region33
    $region32: #{tpu_custom_call.1} parent=1 // pred_region
      %73 = dma.done [#allocation5], 128
    $region33: #{tpu_custom_call.1} parent=1 // pred_fallthru
      _
    // Predicated region
    $region34: #{tpu_custom_call.1} parent=1 // pred_check
      _
    $region35: #{tpu_custom_call.1} parent=1 // pred_check_branch
      %75 = sbr.rel (0) target = $region37
    $region36: #{tpu_custom_call.1} parent=1 // pred_region
      %76 = dma.done [#allocation8], 256
    $region37: #{tpu_custom_call.1} parent=1 // pred_fallthru
      _
    // Predicated region
    $region38: #{tpu_custom_call.1} parent=1 // pred_check
      _
    $region39: #{tpu_custom_call.1} parent=1 // pred_check_branch
      %78 = sbr.rel (0) target = $region41
    $region40: #{tpu_custom_call.1} parent=1 // pred_region
      %79 = dma.done [#allocation8], 16
    $region41: #{tpu_custom_call.1} parent=1 // pred_fallthru
      _
    %v81 = vld [vmem:[#allocation2] sm:$0xff]
    %v82 = vld [vmem:[#allocation2 + $0x8] sm:$0xff]
    %v83 = vld [vmem:[#allocation2 + $0x10] sm:$0xff]
    %v84 = vld [vmem:[#allocation2 + $0x18] sm:$0xff]
    %v85 = vld [vmem:[#allocation2 + $0x20] sm:$0xff]
    %v86 = vld [vmem:[#allocation2 + $0x28] sm:$0xff]
    %v87 = vld [vmem:[#allocation2 + $0x30] sm:$0xff]
    %v88 = vld [vmem:[#allocation2 + $0x38] sm:$0xff]
    %v89 = vld [vmem:[#allocation2 + $0x40] sm:$0xff]
    %v90 = vld [vmem:[#allocation2 + $0x48] sm:$0xff]
    %v91 = vld [vmem:[#allocation2 + $0x50] sm:$0xff]
    %v92 = vld [vmem:[#allocation2 + $0x58] sm:$0xff]
    %v93 = vld [vmem:[#allocation2 + $0x60] sm:$0xff]
    %v94 = vld [vmem:[#allocation2 + $0x68] sm:$0xff]
    %v95 = vld [vmem:[#allocation2 + $0x70] sm:$0xff]
    %v96 = vld [vmem:[#allocation2 + $0x78] sm:$0xff]
    %v97 = vpack.c.bf16 %v81, %v81
    %v98 = vpack.c.bf16 %v82, %v82
    %v99 = vpack.c.bf16 %v83, %v83
    %v100 = vpack.c.bf16 %v84, %v84
    %v101 = vpack.c.bf16 %v85, %v85
    %v102 = vpack.c.bf16 %v86, %v86
    %v103 = vpack.c.bf16 %v87, %v87
    %v104 = vpack.c.bf16 %v88, %v88
    %v105 = vpack.c.bf16 %v89, %v89
    %v106 = vpack.c.bf16 %v90, %v90
    %v107 = vpack.c.bf16 %v91, %v91
    %v108 = vpack.c.bf16 %v92, %v92
    %v109 = vpack.c.bf16 %v93, %v93
    %v110 = vpack.c.bf16 %v94, %v94
    %v111 = vpack.c.bf16 %v95, %v95
    %v112 = vpack.c.bf16 %v96, %v96
    %v113 = vld [vmem:[#allocation4] sm:$0xff]
    %v114 = vld [vmem:[#allocation4 + $0x8] sm:$0xff]
    %v115 = vld [vmem:[#allocation4 + $0x10] sm:$0xff]
    %v116 = vld [vmem:[#allocation4 + $0x18] sm:$0xff]
    %v117 = vld [vmem:[#allocation4 + $0x20] sm:$0xff]
    %v118 = vld [vmem:[#allocation4 + $0x28] sm:$0xff]
    %v119 = vld [vmem:[#allocation4 + $0x30] sm:$0xff]
    %v120 = vld [vmem:[#allocation4 + $0x38] sm:$0xff]
    %v121 = vld [vmem:[#allocation4 + $0x40] sm:$0xff]
    %v122 = vld [vmem:[#allocation4 + $0x48] sm:$0xff]
    %v123 = vld [vmem:[#allocation4 + $0x50] sm:$0xff]
    %v124 = vld [vmem:[#allocation4 + $0x58] sm:$0xff]
    %v125 = vld [vmem:[#allocation4 + $0x60] sm:$0xff]
    %v126 = vld [vmem:[#allocation4 + $0x68] sm:$0xff]
    %v127 = vld [vmem:[#allocation4 + $0x70] sm:$0xff]
    %v128 = vld [vmem:[#allocation4 + $0x78] sm:$0xff]
    %v129 = vld [vmem:[#allocation4 + $0x80] sm:$0xff]
    %v130 = vld [vmem:[#allocation4 + $0x88] sm:$0xff]
    %v131 = vld [vmem:[#allocation4 + $0x90] sm:$0xff]
    %v132 = vld [vmem:[#allocation4 + $0x98] sm:$0xff]
    %v133 = vld [vmem:[#allocation4 + $0xa0] sm:$0xff]
    %v134 = vld [vmem:[#allocation4 + $0xa8] sm:$0xff]
    %v135 = vld [vmem:[#allocation4 + $0xb0] sm:$0xff]
    %v136 = vld [vmem:[#allocation4 + $0xb8] sm:$0xff]
    %v137 = vld [vmem:[#allocation4 + $0xc0] sm:$0xff]
    %v138 = vld [vmem:[#allocation4 + $0xc8] sm:$0xff]
    %v139 = vld [vmem:[#allocation4 + $0xd0] sm:$0xff]
    %v140 = vld [vmem:[#allocation4 + $0xd8] sm:$0xff]
    %v141 = vld [vmem:[#allocation4 + $0xe0] sm:$0xff]
    %v142 = vld [vmem:[#allocation4 + $0xe8] sm:$0xff]
    %v143 = vld [vmem:[#allocation4 + $0xf0] sm:$0xff]
    %v144 = vld [vmem:[#allocation4 + $0xf8] sm:$0xff]
    %v145 = vld [vmem:[#allocation4 + $0x100] sm:$0xff]
    %v146 = vld [vmem:[#allocation4 + $0x108] sm:$0xff]
    %v147 = vld [vmem:[#allocation4 + $0x110] sm:$0xff]
    %v148 = vld [vmem:[#allocation4 + $0x118] sm:$0xff]
    %v149 = vld [vmem:[#allocation4 + $0x120] sm:$0xff]
    %v150 = vld [vmem:[#allocation4 + $0x128] sm:$0xff]
    %v151 = vld [vmem:[#allocation4 + $0x130] sm:$0xff]
    %v152 = vld [vmem:[#allocation4 + $0x138] sm:$0xff]
    %v153 = vld [vmem:[#allocation4 + $0x140] sm:$0xff]
    %v154 = vld [vmem:[#allocation4 + $0x148] sm:$0xff]
    %v155 = vld [vmem:[#allocation4 + $0x150] sm:$0xff]
    %v156 = vld [vmem:[#allocation4 + $0x158] sm:$0xff]
    %v157 = vld [vmem:[#allocation4 + $0x160] sm:$0xff]
    %v158 = vld [vmem:[#allocation4 + $0x168] sm:$0xff]
    %v159 = vld [vmem:[#allocation4 + $0x170] sm:$0xff]
    %v160 = vld [vmem:[#allocation4 + $0x178] sm:$0xff]
    %v161 = vld [vmem:[#allocation4 + $0x180] sm:$0xff]
    %v162 = vld [vmem:[#allocation4 + $0x188] sm:$0xff]
    %v163 = vld [vmem:[#allocation4 + $0x190] sm:$0xff]
    %v164 = vld [vmem:[#allocation4 + $0x198] sm:$0xff]
    %v165 = vld [vmem:[#allocation4 + $0x1a0] sm:$0xff]
    %v166 = vld [vmem:[#allocation4 + $0x1a8] sm:$0xff]
    %v167 = vld [vmem:[#allocation4 + $0x1b0] sm:$0xff]
    %v168 = vld [vmem:[#allocation4 + $0x1b8] sm:$0xff]
    %v169 = vld [vmem:[#allocation4 + $0x1c0] sm:$0xff]
    %v170 = vld [vmem:[#allocation4 + $0x1c8] sm:$0xff]
    %v171 = vld [vmem:[#allocation4 + $0x1d0] sm:$0xff]
    %v172 = vld [vmem:[#allocation4 + $0x1d8] sm:$0xff]
    %v173 = vld [vmem:[#allocation4 + $0x1e0] sm:$0xff]
    %v174 = vld [vmem:[#allocation4 + $0x1e8] sm:$0xff]
    %v175 = vld [vmem:[#allocation4 + $0x1f0] sm:$0xff]
    %v176 = vld [vmem:[#allocation4 + $0x1f8] sm:$0xff]
    %v177 = vld [vmem:[#allocation4 + $0x200] sm:$0xff]
    %v178 = vld [vmem:[#allocation4 + $0x208] sm:$0xff]
    %v179 = vld [vmem:[#allocation4 + $0x210] sm:$0xff]
    %v180 = vld [vmem:[#allocation4 + $0x218] sm:$0xff]
    %v181 = vld [vmem:[#allocation4 + $0x220] sm:$0xff]
    %v182 = vld [vmem:[#allocation4 + $0x228] sm:$0xff]
    %v183 = vld [vmem:[#allocation4 + $0x230] sm:$0xff]
    %v184 = vld [vmem:[#allocation4 + $0x238] sm:$0xff]
    %v185 = vld [vmem:[#allocation4 + $0x240] sm:$0xff]
    %v186 = vld [vmem:[#allocation4 + $0x248] sm:$0xff]
    %v187 = vld [vmem:[#allocation4 + $0x250] sm:$0xff]
    %v188 = vld [vmem:[#allocation4 + $0x258] sm:$0xff]
    %v189 = vld [vmem:[#allocation4 + $0x260] sm:$0xff]
    %v190 = vld [vmem:[#allocation4 + $0x268] sm:$0xff]
    %v191 = vld [vmem:[#allocation4 + $0x270] sm:$0xff]
    %v192 = vld [vmem:[#allocation4 + $0x278] sm:$0xff]
    %v193 = vld [vmem:[#allocation4 + $0x280] sm:$0xff]
    %v194 = vld [vmem:[#allocation4 + $0x288] sm:$0xff]
    %v195 = vld [vmem:[#allocation4 + $0x290] sm:$0xff]
    %v196 = vld [vmem:[#allocation4 + $0x298] sm:$0xff]
    %v197 = vld [vmem:[#allocation4 + $0x2a0] sm:$0xff]
    %v198 = vld [vmem:[#allocation4 + $0x2a8] sm:$0xff]
    %v199 = vld [vmem:[#allocation4 + $0x2b0] sm:$0xff]
    %v200 = vld [vmem:[#allocation4 + $0x2b8] sm:$0xff]
    %v201 = vld [vmem:[#allocation4 + $0x2c0] sm:$0xff]
    %v202 = vld [vmem:[#allocation4 + $0x2c8] sm:$0xff]
    %v203 = vld [vmem:[#allocation4 + $0x2d0] sm:$0xff]
    %v204 = vld [vmem:[#allocation4 + $0x2d8] sm:$0xff]
    %v205 = vld [vmem:[#allocation4 + $0x2e0] sm:$0xff]
    %v206 = vld [vmem:[#allocation4 + $0x2e8] sm:$0xff]
    %v207 = vld [vmem:[#allocation4 + $0x2f0] sm:$0xff]
    %v208 = vld [vmem:[#allocation4 + $0x2f8] sm:$0xff]
    %v209 = vld [vmem:[#allocation4 + $0x300] sm:$0xff]
    %v210 = vld [vmem:[#allocation4 + $0x308] sm:$0xff]
    %v211 = vld [vmem:[#allocation4 + $0x310] sm:$0xff]
    %v212 = vld [vmem:[#allocation4 + $0x318] sm:$0xff]
    %v213 = vld [vmem:[#allocation4 + $0x320] sm:$0xff]
    %v214 = vld [vmem:[#allocation4 + $0x328] sm:$0xff]
    %v215 = vld [vmem:[#allocation4 + $0x330] sm:$0xff]
    %v216 = vld [vmem:[#allocation4 + $0x338] sm:$0xff]
    %v217 = vld [vmem:[#allocation4 + $0x340] sm:$0xff]
    %v218 = vld [vmem:[#allocation4 + $0x348] sm:$0xff]
    %v219 = vld [vmem:[#allocation4 + $0x350] sm:$0xff]
    %v220 = vld [vmem:[#allocation4 + $0x358] sm:$0xff]
    %v221 = vld [vmem:[#allocation4 + $0x360] sm:$0xff]
    %v222 = vld [vmem:[#allocation4 + $0x368] sm:$0xff]
    %v223 = vld [vmem:[#allocation4 + $0x370] sm:$0xff]
    %v224 = vld [vmem:[#allocation4 + $0x378] sm:$0xff]
    %v225 = vld [vmem:[#allocation4 + $0x380] sm:$0xff]
    %v226 = vld [vmem:[#allocation4 + $0x388] sm:$0xff]
    %v227 = vld [vmem:[#allocation4 + $0x390] sm:$0xff]
    %v228 = vld [vmem:[#allocation4 + $0x398] sm:$0xff]
    %v229 = vld [vmem:[#allocation4 + $0x3a0] sm:$0xff]
    %v230 = vld [vmem:[#allocation4 + $0x3a8] sm:$0xff]
    %v231 = vld [vmem:[#allocation4 + $0x3b0] sm:$0xff]
    %v232 = vld [vmem:[#allocation4 + $0x3b8] sm:$0xff]
    %v233 = vld [vmem:[#allocation4 + $0x3c0] sm:$0xff]
    %v234 = vld [vmem:[#allocation4 + $0x3c8] sm:$0xff]
    %v235 = vld [vmem:[#allocation4 + $0x3d0] sm:$0xff]
    %v236 = vld [vmem:[#allocation4 + $0x3d8] sm:$0xff]
    %v237 = vld [vmem:[#allocation4 + $0x3e0] sm:$0xff]
    %v238 = vld [vmem:[#allocation4 + $0x3e8] sm:$0xff]
    %v239 = vld [vmem:[#allocation4 + $0x3f0] sm:$0xff]
    %v240 = vld [vmem:[#allocation4 + $0x3f8] sm:$0xff]
    %v241 = vld [vmem:[#allocation4 + $0x400] sm:$0xff]
    %v242 = vld [vmem:[#allocation4 + $0x408] sm:$0xff]
    %v243 = vld [vmem:[#allocation4 + $0x410] sm:$0xff]
    %v244 = vld [vmem:[#allocation4 + $0x418] sm:$0xff]
    %v245 = vld [vmem:[#allocation4 + $0x420] sm:$0xff]
    %v246 = vld [vmem:[#allocation4 + $0x428] sm:$0xff]
    %v247 = vld [vmem:[#allocation4 + $0x430] sm:$0xff]
    %v248 = vld [vmem:[#allocation4 + $0x438] sm:$0xff]
    %v249 = vld [vmem:[#allocation4 + $0x440] sm:$0xff]
    %v250 = vld [vmem:[#allocation4 + $0x448] sm:$0xff]
    %v251 = vld [vmem:[#allocation4 + $0x450] sm:$0xff]
    %v252 = vld [vmem:[#allocation4 + $0x458] sm:$0xff]
    %v253 = vld [vmem:[#allocation4 + $0x460] sm:$0xff]
    %v254 = vld [vmem:[#allocation4 + $0x468] sm:$0xff]
    %v255 = vld [vmem:[#allocation4 + $0x470] sm:$0xff]
    %v256 = vld [vmem:[#allocation4 + $0x478] sm:$0xff]
    %v257 = vld [vmem:[#allocation4 + $0x480] sm:$0xff]
    %v258 = vld [vmem:[#allocation4 + $0x488] sm:$0xff]
    %v259 = vld [vmem:[#allocation4 + $0x490] sm:$0xff]
    %v260 = vld [vmem:[#allocation4 + $0x498] sm:$0xff]
    %v261 = vld [vmem:[#allocation4 + $0x4a0] sm:$0xff]
    %v262 = vld [vmem:[#allocation4 + $0x4a8] sm:$0xff]
    %v263 = vld [vmem:[#allocation4 + $0x4b0] sm:$0xff]
    %v264 = vld [vmem:[#allocation4 + $0x4b8] sm:$0xff]
    %v265 = vld [vmem:[#allocation4 + $0x4c0] sm:$0xff]
    %v266 = vld [vmem:[#allocation4 + $0x4c8] sm:$0xff]
    %v267 = vld [vmem:[#allocation4 + $0x4d0] sm:$0xff]
    %v268 = vld [vmem:[#allocation4 + $0x4d8] sm:$0xff]
    %v269 = vld [vmem:[#allocation4 + $0x4e0] sm:$0xff]
    %v270 = vld [vmem:[#allocation4 + $0x4e8] sm:$0xff]
    %v271 = vld [vmem:[#allocation4 + $0x4f0] sm:$0xff]
    %v272 = vld [vmem:[#allocation4 + $0x4f8] sm:$0xff]
    %v273 = vld [vmem:[#allocation4 + $0x500] sm:$0xff]
    %v274 = vld [vmem:[#allocation4 + $0x508] sm:$0xff]
    %v275 = vld [vmem:[#allocation4 + $0x510] sm:$0xff]
    %v276 = vld [vmem:[#allocation4 + $0x518] sm:$0xff]
    %v277 = vld [vmem:[#allocation4 + $0x520] sm:$0xff]
    %v278 = vld [vmem:[#allocation4 + $0x528] sm:$0xff]
    %v279 = vld [vmem:[#allocation4 + $0x530] sm:$0xff]
    %v280 = vld [vmem:[#allocation4 + $0x538] sm:$0xff]
    %v281 = vld [vmem:[#allocation4 + $0x540] sm:$0xff]
    %v282 = vld [vmem:[#allocation4 + $0x548] sm:$0xff]
    %v283 = vld [vmem:[#allocation4 + $0x550] sm:$0xff]
    %v284 = vld [vmem:[#allocation4 + $0x558] sm:$0xff]
    %v285 = vld [vmem:[#allocation4 + $0x560] sm:$0xff]
    %v286 = vld [vmem:[#allocation4 + $0x568] sm:$0xff]
    %v287 = vld [vmem:[#allocation4 + $0x570] sm:$0xff]
    %v288 = vld [vmem:[#allocation4 + $0x578] sm:$0xff]
    %v289 = vld [vmem:[#allocation4 + $0x580] sm:$0xff]
    %v290 = vld [vmem:[#allocation4 + $0x588] sm:$0xff]
    %v291 = vld [vmem:[#allocation4 + $0x590] sm:$0xff]
    %v292 = vld [vmem:[#allocation4 + $0x598] sm:$0xff]
    %v293 = vld [vmem:[#allocation4 + $0x5a0] sm:$0xff]
    %v294 = vld [vmem:[#allocation4 + $0x5a8] sm:$0xff]
    %v295 = vld [vmem:[#allocation4 + $0x5b0] sm:$0xff]
    %v296 = vld [vmem:[#allocation4 + $0x5b8] sm:$0xff]
    %v297 = vld [vmem:[#allocation4 + $0x5c0] sm:$0xff]
    %v298 = vld [vmem:[#allocation4 + $0x5c8] sm:$0xff]
    %v299 = vld [vmem:[#allocation4 + $0x5d0] sm:$0xff]
    %v300 = vld [vmem:[#allocation4 + $0x5d8] sm:$0xff]
    %v301 = vld [vmem:[#allocation4 + $0x5e0] sm:$0xff]
    %v302 = vld [vmem:[#allocation4 + $0x5e8] sm:$0xff]
    %v303 = vld [vmem:[#allocation4 + $0x5f0] sm:$0xff]
    %v304 = vld [vmem:[#allocation4 + $0x5f8] sm:$0xff]
    %v305 = vld [vmem:[#allocation4 + $0x600] sm:$0xff]
    %v306 = vld [vmem:[#allocation4 + $0x608] sm:$0xff]
    %v307 = vld [vmem:[#allocation4 + $0x610] sm:$0xff]
    %v308 = vld [vmem:[#allocation4 + $0x618] sm:$0xff]
    %v309 = vld [vmem:[#allocation4 + $0x620] sm:$0xff]
    %v310 = vld [vmem:[#allocation4 + $0x628] sm:$0xff]
    %v311 = vld [vmem:[#allocation4 + $0x630] sm:$0xff]
    %v312 = vld [vmem:[#allocation4 + $0x638] sm:$0xff]
    %v313 = vld [vmem:[#allocation4 + $0x640] sm:$0xff]
    %v314 = vld [vmem:[#allocation4 + $0x648] sm:$0xff]
    %v315 = vld [vmem:[#allocation4 + $0x650] sm:$0xff]
    %v316 = vld [vmem:[#allocation4 + $0x658] sm:$0xff]
    %v317 = vld [vmem:[#allocation4 + $0x660] sm:$0xff]
    %v318 = vld [vmem:[#allocation4 + $0x668] sm:$0xff]
    %v319 = vld [vmem:[#allocation4 + $0x670] sm:$0xff]
    %v320 = vld [vmem:[#allocation4 + $0x678] sm:$0xff]
    %v321 = vld [vmem:[#allocation4 + $0x680] sm:$0xff]
    %v322 = vld [vmem:[#allocation4 + $0x688] sm:$0xff]
    %v323 = vld [vmem:[#allocation4 + $0x690] sm:$0xff]
    %v324 = vld [vmem:[#allocation4 + $0x698] sm:$0xff]
    %v325 = vld [vmem:[#allocation4 + $0x6a0] sm:$0xff]
    %v326 = vld [vmem:[#allocation4 + $0x6a8] sm:$0xff]
    %v327 = vld [vmem:[#allocation4 + $0x6b0] sm:$0xff]
    %v328 = vld [vmem:[#allocation4 + $0x6b8] sm:$0xff]
    %v329 = vld [vmem:[#allocation4 + $0x6c0] sm:$0xff]
    %v330 = vld [vmem:[#allocation4 + $0x6c8] sm:$0xff]
    %v331 = vld [vmem:[#allocation4 + $0x6d0] sm:$0xff]
    %v332 = vld [vmem:[#allocation4 + $0x6d8] sm:$0xff]
    %v333 = vld [vmem:[#allocation4 + $0x6e0] sm:$0xff]
    %v334 = vld [vmem:[#allocation4 + $0x6e8] sm:$0xff]
    %v335 = vld [vmem:[#allocation4 + $0x6f0] sm:$0xff]
    %v336 = vld [vmem:[#allocation4 + $0x6f8] sm:$0xff]
    %v337 = vld [vmem:[#allocation4 + $0x700] sm:$0xff]
    %v338 = vld [vmem:[#allocation4 + $0x708] sm:$0xff]
    %v339 = vld [vmem:[#allocation4 + $0x710] sm:$0xff]
    %v340 = vld [vmem:[#allocation4 + $0x718] sm:$0xff]
    %v341 = vld [vmem:[#allocation4 + $0x720] sm:$0xff]
    %v342 = vld [vmem:[#allocation4 + $0x728] sm:$0xff]
    %v343 = vld [vmem:[#allocation4 + $0x730] sm:$0xff]
    %v344 = vld [vmem:[#allocation4 + $0x738] sm:$0xff]
    %v345 = vld [vmem:[#allocation4 + $0x740] sm:$0xff]
    %v346 = vld [vmem:[#allocation4 + $0x748] sm:$0xff]
    %v347 = vld [vmem:[#allocation4 + $0x750] sm:$0xff]
    %v348 = vld [vmem:[#allocation4 + $0x758] sm:$0xff]
    %v349 = vld [vmem:[#allocation4 + $0x760] sm:$0xff]
    %v350 = vld [vmem:[#allocation4 + $0x768] sm:$0xff]
    %v351 = vld [vmem:[#allocation4 + $0x770] sm:$0xff]
    %v352 = vld [vmem:[#allocation4 + $0x778] sm:$0xff]
    %v353 = vld [vmem:[#allocation4 + $0x780] sm:$0xff]
    %v354 = vld [vmem:[#allocation4 + $0x788] sm:$0xff]
    %v355 = vld [vmem:[#allocation4 + $0x790] sm:$0xff]
    %v356 = vld [vmem:[#allocation4 + $0x798] sm:$0xff]
    %v357 = vld [vmem:[#allocation4 + $0x7a0] sm:$0xff]
    %v358 = vld [vmem:[#allocation4 + $0x7a8] sm:$0xff]
    %v359 = vld [vmem:[#allocation4 + $0x7b0] sm:$0xff]
    %v360 = vld [vmem:[#allocation4 + $0x7b8] sm:$0xff]
    %v361 = vld [vmem:[#allocation4 + $0x7c0] sm:$0xff]
    %v362 = vld [vmem:[#allocation4 + $0x7c8] sm:$0xff]
    %v363 = vld [vmem:[#allocation4 + $0x7d0] sm:$0xff]
    %v364 = vld [vmem:[#allocation4 + $0x7d8] sm:$0xff]
    %v365 = vld [vmem:[#allocation4 + $0x7e0] sm:$0xff]
    %v366 = vld [vmem:[#allocation4 + $0x7e8] sm:$0xff]
    %v367 = vld [vmem:[#allocation4 + $0x7f0] sm:$0xff]
    %v368 = vld [vmem:[#allocation4 + $0x7f8] sm:$0xff]
    %v369 = vld [vmem:[#allocation4 + $0x800] sm:$0xff]
    %v370 = vld [vmem:[#allocation4 + $0x808] sm:$0xff]
    %v371 = vld [vmem:[#allocation4 + $0x810] sm:$0xff]
    %v372 = vld [vmem:[#allocation4 + $0x818] sm:$0xff]
    %v373 = vld [vmem:[#allocation4 + $0x820] sm:$0xff]
    %v374 = vld [vmem:[#allocation4 + $0x828] sm:$0xff]
    %v375 = vld [vmem:[#allocation4 + $0x830] sm:$0xff]
    %v376 = vld [vmem:[#allocation4 + $0x838] sm:$0xff]
    %v377 = vld [vmem:[#allocation4 + $0x840] sm:$0xff]
    %v378 = vld [vmem:[#allocation4 + $0x848] sm:$0xff]
    %v379 = vld [vmem:[#allocation4 + $0x850] sm:$0xff]
    %v380 = vld [vmem:[#allocation4 + $0x858] sm:$0xff]
    %v381 = vld [vmem:[#allocation4 + $0x860] sm:$0xff]
    %v382 = vld [vmem:[#allocation4 + $0x868] sm:$0xff]
    %v383 = vld [vmem:[#allocation4 + $0x870] sm:$0xff]
    %v384 = vld [vmem:[#allocation4 + $0x878] sm:$0xff]
    %v385 = vld [vmem:[#allocation4 + $0x880] sm:$0xff]
    %v386 = vld [vmem:[#allocation4 + $0x888] sm:$0xff]
    %v387 = vld [vmem:[#allocation4 + $0x890] sm:$0xff]
    %v388 = vld [vmem:[#allocation4 + $0x898] sm:$0xff]
    %v389 = vld [vmem:[#allocation4 + $0x8a0] sm:$0xff]
    %v390 = vld [vmem:[#allocation4 + $0x8a8] sm:$0xff]
    %v391 = vld [vmem:[#allocation4 + $0x8b0] sm:$0xff]
    %v392 = vld [vmem:[#allocation4 + $0x8b8] sm:$0xff]
    %v393 = vld [vmem:[#allocation4 + $0x8c0] sm:$0xff]
    %v394 = vld [vmem:[#allocation4 + $0x8c8] sm:$0xff]
    %v395 = vld [vmem:[#allocation4 + $0x8d0] sm:$0xff]
    %v396 = vld [vmem:[#allocation4 + $0x8d8] sm:$0xff]
    %v397 = vld [vmem:[#allocation4 + $0x8e0] sm:$0xff]
    %v398 = vld [vmem:[#allocation4 + $0x8e8] sm:$0xff]
    %v399 = vld [vmem:[#allocation4 + $0x8f0] sm:$0xff]
    %v400 = vld [vmem:[#allocation4 + $0x8f8] sm:$0xff]
    %v401 = vld [vmem:[#allocation4 + $0x900] sm:$0xff]
    %v402 = vld [vmem:[#allocation4 + $0x908] sm:$0xff]
    %v403 = vld [vmem:[#allocation4 + $0x910] sm:$0xff]
    %v404 = vld [vmem:[#allocation4 + $0x918] sm:$0xff]
    %v405 = vld [vmem:[#allocation4 + $0x920] sm:$0xff]
    %v406 = vld [vmem:[#allocation4 + $0x928] sm:$0xff]
    %v407 = vld [vmem:[#allocation4 + $0x930] sm:$0xff]
    %v408 = vld [vmem:[#allocation4 + $0x938] sm:$0xff]
    %v409 = vld [vmem:[#allocation4 + $0x940] sm:$0xff]
    %v410 = vld [vmem:[#allocation4 + $0x948] sm:$0xff]
    %v411 = vld [vmem:[#allocation4 + $0x950] sm:$0xff]
    %v412 = vld [vmem:[#allocation4 + $0x958] sm:$0xff]
    %v413 = vld [vmem:[#allocation4 + $0x960] sm:$0xff]
    %v414 = vld [vmem:[#allocation4 + $0x968] sm:$0xff]
    %v415 = vld [vmem:[#allocation4 + $0x970] sm:$0xff]
    %v416 = vld [vmem:[#allocation4 + $0x978] sm:$0xff]
    %v417 = vld [vmem:[#allocation4 + $0x980] sm:$0xff]
    %v418 = vld [vmem:[#allocation4 + $0x988] sm:$0xff]
    %v419 = vld [vmem:[#allocation4 + $0x990] sm:$0xff]
    %v420 = vld [vmem:[#allocation4 + $0x998] sm:$0xff]
    %v421 = vld [vmem:[#allocation4 + $0x9a0] sm:$0xff]
    %v422 = vld [vmem:[#allocation4 + $0x9a8] sm:$0xff]
    %v423 = vld [vmem:[#allocation4 + $0x9b0] sm:$0xff]
    %v424 = vld [vmem:[#allocation4 + $0x9b8] sm:$0xff]
    %v425 = vld [vmem:[#allocation4 + $0x9c0] sm:$0xff]
    %v426 = vld [vmem:[#allocation4 + $0x9c8] sm:$0xff]
    %v427 = vld [vmem:[#allocation4 + $0x9d0] sm:$0xff]
    %v428 = vld [vmem:[#allocation4 + $0x9d8] sm:$0xff]
    %v429 = vld [vmem:[#allocation4 + $0x9e0] sm:$0xff]
    %v430 = vld [vmem:[#allocation4 + $0x9e8] sm:$0xff]
    %v431 = vld [vmem:[#allocation4 + $0x9f0] sm:$0xff]
    %v432 = vld [vmem:[#allocation4 + $0x9f8] sm:$0xff]
    %v433 = vld [vmem:[#allocation4 + $0xa00] sm:$0xff]
    %v434 = vld [vmem:[#allocation4 + $0xa08] sm:$0xff]
    %v435 = vld [vmem:[#allocation4 + $0xa10] sm:$0xff]
    %v436 = vld [vmem:[#allocation4 + $0xa18] sm:$0xff]
    %v437 = vld [vmem:[#allocation4 + $0xa20] sm:$0xff]
    %v438 = vld [vmem:[#allocation4 + $0xa28] sm:$0xff]
    %v439 = vld [vmem:[#allocation4 + $0xa30] sm:$0xff]
    %v440 = vld [vmem:[#allocation4 + $0xa38] sm:$0xff]
    %v441 = vld [vmem:[#allocation4 + $0xa40] sm:$0xff]
    %v442 = vld [vmem:[#allocation4 + $0xa48] sm:$0xff]
    %v443 = vld [vmem:[#allocation4 + $0xa50] sm:$0xff]
    %v444 = vld [vmem:[#allocation4 + $0xa58] sm:$0xff]
    %v445 = vld [vmem:[#allocation4 + $0xa60] sm:$0xff]
    %v446 = vld [vmem:[#allocation4 + $0xa68] sm:$0xff]
    %v447 = vld [vmem:[#allocation4 + $0xa70] sm:$0xff]
    %v448 = vld [vmem:[#allocation4 + $0xa78] sm:$0xff]
    %v449 = vld [vmem:[#allocation4 + $0xa80] sm:$0xff]
    %v450 = vld [vmem:[#allocation4 + $0xa88] sm:$0xff]
    %v451 = vld [vmem:[#allocation4 + $0xa90] sm:$0xff]
    %v452 = vld [vmem:[#allocation4 + $0xa98] sm:$0xff]
    %v453 = vld [vmem:[#allocation4 + $0xaa0] sm:$0xff]
    %v454 = vld [vmem:[#allocation4 + $0xaa8] sm:$0xff]
    %v455 = vld [vmem:[#allocation4 + $0xab0] sm:$0xff]
    %v456 = vld [vmem:[#allocation4 + $0xab8] sm:$0xff]
    %v457 = vld [vmem:[#allocation4 + $0xac0] sm:$0xff]
    %v458 = vld [vmem:[#allocation4 + $0xac8] sm:$0xff]
    %v459 = vld [vmem:[#allocation4 + $0xad0] sm:$0xff]
    %v460 = vld [vmem:[#allocation4 + $0xad8] sm:$0xff]
    %v461 = vld [vmem:[#allocation4 + $0xae0] sm:$0xff]
    %v462 = vld [vmem:[#allocation4 + $0xae8] sm:$0xff]
    %v463 = vld [vmem:[#allocation4 + $0xaf0] sm:$0xff]
    %v464 = vld [vmem:[#allocation4 + $0xaf8] sm:$0xff]
    %v465 = vld [vmem:[#allocation4 + $0xb00] sm:$0xff]
    %v466 = vld [vmem:[#allocation4 + $0xb08] sm:$0xff]
    %v467 = vld [vmem:[#allocation4 + $0xb10] sm:$0xff]
    %v468 = vld [vmem:[#allocation4 + $0xb18] sm:$0xff]
    %v469 = vld [vmem:[#allocation4 + $0xb20] sm:$0xff]
    %v470 = vld [vmem:[#allocation4 + $0xb28] sm:$0xff]
    %v471 = vld [vmem:[#allocation4 + $0xb30] sm:$0xff]
    %v472 = vld [vmem:[#allocation4 + $0xb38] sm:$0xff]
    %v473 = vld [vmem:[#allocation4 + $0xb40] sm:$0xff]
    %v474 = vld [vmem:[#allocation4 + $0xb48] sm:$0xff]
    %v475 = vld [vmem:[#allocation4 + $0xb50] sm:$0xff]
    %v476 = vld [vmem:[#allocation4 + $0xb58] sm:$0xff]
    %v477 = vld [vmem:[#allocation4 + $0xb60] sm:$0xff]
    %v478 = vld [vmem:[#allocation4 + $0xb68] sm:$0xff]
    %v479 = vld [vmem:[#allocation4 + $0xb70] sm:$0xff]
    %v480 = vld [vmem:[#allocation4 + $0xb78] sm:$0xff]
    %v481 = vld [vmem:[#allocation4 + $0xb80] sm:$0xff]
    %v482 = vld [vmem:[#allocation4 + $0xb88] sm:$0xff]
    %v483 = vld [vmem:[#allocation4 + $0xb90] sm:$0xff]
    %v484 = vld [vmem:[#allocation4 + $0xb98] sm:$0xff]
    %v485 = vld [vmem:[#allocation4 + $0xba0] sm:$0xff]
    %v486 = vld [vmem:[#allocation4 + $0xba8] sm:$0xff]
    %v487 = vld [vmem:[#allocation4 + $0xbb0] sm:$0xff]
    %v488 = vld [vmem:[#allocation4 + $0xbb8] sm:$0xff]
    %v489 = vld [vmem:[#allocation4 + $0xbc0] sm:$0xff]
    %v490 = vld [vmem:[#allocation4 + $0xbc8] sm:$0xff]
    %v491 = vld [vmem:[#allocation4 + $0xbd0] sm:$0xff]
    %v492 = vld [vmem:[#allocation4 + $0xbd8] sm:$0xff]
    %v493 = vld [vmem:[#allocation4 + $0xbe0] sm:$0xff]
    %v494 = vld [vmem:[#allocation4 + $0xbe8] sm:$0xff]
    %v495 = vld [vmem:[#allocation4 + $0xbf0] sm:$0xff]
    %v496 = vld [vmem:[#allocation4 + $0xbf8] sm:$0xff]
    %v497 = vld [vmem:[#allocation4 + $0xc00] sm:$0xff]
    %v498 = vld [vmem:[#allocation4 + $0xc08] sm:$0xff]
    %v499 = vld [vmem:[#allocation4 + $0xc10] sm:$0xff]
    %v500 = vld [vmem:[#allocation4 + $0xc18] sm:$0xff]
    %v501 = vld [vmem:[#allocation4 + $0xc20] sm:$0xff]
    %v502 = vld [vmem:[#allocation4 + $0xc28] sm:$0xff]
    %v503 = vld [vmem:[#allocation4 + $0xc30] sm:$0xff]
    %v504 = vld [vmem:[#allocation4 + $0xc38] sm:$0xff]
    %v505 = vld [vmem:[#allocation4 + $0xc40] sm:$0xff]
    %v506 = vld [vmem:[#allocation4 + $0xc48] sm:$0xff]
    %v507 = vld [vmem:[#allocation4 + $0xc50] sm:$0xff]
    %v508 = vld [vmem:[#allocation4 + $0xc58] sm:$0xff]
    %v509 = vld [vmem:[#allocation4 + $0xc60] sm:$0xff]
    %v510 = vld [vmem:[#allocation4 + $0xc68] sm:$0xff]
    %v511 = vld [vmem:[#allocation4 + $0xc70] sm:$0xff]
    %v512 = vld [vmem:[#allocation4 + $0xc78] sm:$0xff]
    %v513 = vld [vmem:[#allocation4 + $0xc80] sm:$0xff]
    %v514 = vld [vmem:[#allocation4 + $0xc88] sm:$0xff]
    %v515 = vld [vmem:[#allocation4 + $0xc90] sm:$0xff]
    %v516 = vld [vmem:[#allocation4 + $0xc98] sm:$0xff]
    %v517 = vld [vmem:[#allocation4 + $0xca0] sm:$0xff]
    %v518 = vld [vmem:[#allocation4 + $0xca8] sm:$0xff]
    %v519 = vld [vmem:[#allocation4 + $0xcb0] sm:$0xff]
    %v520 = vld [vmem:[#allocation4 + $0xcb8] sm:$0xff]
    %v521 = vld [vmem:[#allocation4 + $0xcc0] sm:$0xff]
    %v522 = vld [vmem:[#allocation4 + $0xcc8] sm:$0xff]
    %v523 = vld [vmem:[#allocation4 + $0xcd0] sm:$0xff]
    %v524 = vld [vmem:[#allocation4 + $0xcd8] sm:$0xff]
    %v525 = vld [vmem:[#allocation4 + $0xce0] sm:$0xff]
    %v526 = vld [vmem:[#allocation4 + $0xce8] sm:$0xff]
    %v527 = vld [vmem:[#allocation4 + $0xcf0] sm:$0xff]
    %v528 = vld [vmem:[#allocation4 + $0xcf8] sm:$0xff]
    %v529 = vld [vmem:[#allocation4 + $0xd00] sm:$0xff]
    %v530 = vld [vmem:[#allocation4 + $0xd08] sm:$0xff]
    %v531 = vld [vmem:[#allocation4 + $0xd10] sm:$0xff]
    %v532 = vld [vmem:[#allocation4 + $0xd18] sm:$0xff]
    %v533 = vld [vmem:[#allocation4 + $0xd20] sm:$0xff]
    %v534 = vld [vmem:[#allocation4 + $0xd28] sm:$0xff]
    %v535 = vld [vmem:[#allocation4 + $0xd30] sm:$0xff]
    %v536 = vld [vmem:[#allocation4 + $0xd38] sm:$0xff]
    %v537 = vld [vmem:[#allocation4 + $0xd40] sm:$0xff]
    %v538 = vld [vmem:[#allocation4 + $0xd48] sm:$0xff]
    %v539 = vld [vmem:[#allocation4 + $0xd50] sm:$0xff]
    %v540 = vld [vmem:[#allocation4 + $0xd58] sm:$0xff]
    %v541 = vld [vmem:[#allocation4 + $0xd60] sm:$0xff]
    %v542 = vld [vmem:[#allocation4 + $0xd68] sm:$0xff]
    %v543 = vld [vmem:[#allocation4 + $0xd70] sm:$0xff]
    %v544 = vld [vmem:[#allocation4 + $0xd78] sm:$0xff]
    %v545 = vld [vmem:[#allocation4 + $0xd80] sm:$0xff]
    %v546 = vld [vmem:[#allocation4 + $0xd88] sm:$0xff]
    %v547 = vld [vmem:[#allocation4 + $0xd90] sm:$0xff]
    %v548 = vld [vmem:[#allocation4 + $0xd98] sm:$0xff]
    %v549 = vld [vmem:[#allocation4 + $0xda0] sm:$0xff]
    %v550 = vld [vmem:[#allocation4 + $0xda8] sm:$0xff]
    %v551 = vld [vmem:[#allocation4 + $0xdb0] sm:$0xff]
    %v552 = vld [vmem:[#allocation4 + $0xdb8] sm:$0xff]
    %v553 = vld [vmem:[#allocation4 + $0xdc0] sm:$0xff]
    %v554 = vld [vmem:[#allocation4 + $0xdc8] sm:$0xff]
    %v555 = vld [vmem:[#allocation4 + $0xdd0] sm:$0xff]
    %v556 = vld [vmem:[#allocation4 + $0xdd8] sm:$0xff]
    %v557 = vld [vmem:[#allocation4 + $0xde0] sm:$0xff]
    %v558 = vld [vmem:[#allocation4 + $0xde8] sm:$0xff]
    %v559 = vld [vmem:[#allocation4 + $0xdf0] sm:$0xff]
    %v560 = vld [vmem:[#allocation4 + $0xdf8] sm:$0xff]
    %v561 = vld [vmem:[#allocation4 + $0xe00] sm:$0xff]
    %v562 = vld [vmem:[#allocation4 + $0xe08] sm:$0xff]
    %v563 = vld [vmem:[#allocation4 + $0xe10] sm:$0xff]
    %v564 = vld [vmem:[#allocation4 + $0xe18] sm:$0xff]
    %v565 = vld [vmem:[#allocation4 + $0xe20] sm:$0xff]
    %v566 = vld [vmem:[#allocation4 + $0xe28] sm:$0xff]
    %v567 = vld [vmem:[#allocation4 + $0xe30] sm:$0xff]
    %v568 = vld [vmem:[#allocation4 + $0xe38] sm:$0xff]
    %v569 = vld [vmem:[#allocation4 + $0xe40] sm:$0xff]
    %v570 = vld [vmem:[#allocation4 + $0xe48] sm:$0xff]
    %v571 = vld [vmem:[#allocation4 + $0xe50] sm:$0xff]
    %v572 = vld [vmem:[#allocation4 + $0xe58] sm:$0xff]
    %v573 = vld [vmem:[#allocation4 + $0xe60] sm:$0xff]
    %v574 = vld [vmem:[#allocation4 + $0xe68] sm:$0xff]
    %v575 = vld [vmem:[#allocation4 + $0xe70] sm:$0xff]
    %v576 = vld [vmem:[#allocation4 + $0xe78] sm:$0xff]
    %v577 = vld [vmem:[#allocation4 + $0xe80] sm:$0xff]
    %v578 = vld [vmem:[#allocation4 + $0xe88] sm:$0xff]
    %v579 = vld [vmem:[#allocation4 + $0xe90] sm:$0xff]
    %v580 = vld [vmem:[#allocation4 + $0xe98] sm:$0xff]
    %v581 = vld [vmem:[#allocation4 + $0xea0] sm:$0xff]
    %v582 = vld [vmem:[#allocation4 + $0xea8] sm:$0xff]
    %v583 = vld [vmem:[#allocation4 + $0xeb0] sm:$0xff]
    %v584 = vld [vmem:[#allocation4 + $0xeb8] sm:$0xff]
    %v585 = vld [vmem:[#allocation4 + $0xec0] sm:$0xff]
    %v586 = vld [vmem:[#allocation4 + $0xec8] sm:$0xff]
    %v587 = vld [vmem:[#allocation4 + $0xed0] sm:$0xff]
    %v588 = vld [vmem:[#allocation4 + $0xed8] sm:$0xff]
    %v589 = vld [vmem:[#allocation4 + $0xee0] sm:$0xff]
    %v590 = vld [vmem:[#allocation4 + $0xee8] sm:$0xff]
    %v591 = vld [vmem:[#allocation4 + $0xef0] sm:$0xff]
    %v592 = vld [vmem:[#allocation4 + $0xef8] sm:$0xff]
    %v593 = vld [vmem:[#allocation4 + $0xf00] sm:$0xff]
    %v594 = vld [vmem:[#allocation4 + $0xf08] sm:$0xff]
    %v595 = vld [vmem:[#allocation4 + $0xf10] sm:$0xff]
    %v596 = vld [vmem:[#allocation4 + $0xf18] sm:$0xff]
    %v597 = vld [vmem:[#allocation4 + $0xf20] sm:$0xff]
    %v598 = vld [vmem:[#allocation4 + $0xf28] sm:$0xff]
    %v599 = vld [vmem:[#allocation4 + $0xf30] sm:$0xff]
    %v600 = vld [vmem:[#allocation4 + $0xf38] sm:$0xff]
    %v601 = vld [vmem:[#allocation4 + $0xf40] sm:$0xff]
    %v602 = vld [vmem:[#allocation4 + $0xf48] sm:$0xff]
    %v603 = vld [vmem:[#allocation4 + $0xf50] sm:$0xff]
    %v604 = vld [vmem:[#allocation4 + $0xf58] sm:$0xff]
    %v605 = vld [vmem:[#allocation4 + $0xf60] sm:$0xff]
    %v606 = vld [vmem:[#allocation4 + $0xf68] sm:$0xff]
    %v607 = vld [vmem:[#allocation4 + $0xf70] sm:$0xff]
    %v608 = vld [vmem:[#allocation4 + $0xf78] sm:$0xff]
    %v609 = vld [vmem:[#allocation4 + $0xf80] sm:$0xff]
    %v610 = vld [vmem:[#allocation4 + $0xf88] sm:$0xff]
    %v611 = vld [vmem:[#allocation4 + $0xf90] sm:$0xff]
    %v612 = vld [vmem:[#allocation4 + $0xf98] sm:$0xff]
    %v613 = vld [vmem:[#allocation4 + $0xfa0] sm:$0xff]
    %v614 = vld [vmem:[#allocation4 + $0xfa8] sm:$0xff]
    %v615 = vld [vmem:[#allocation4 + $0xfb0] sm:$0xff]
    %v616 = vld [vmem:[#allocation4 + $0xfb8] sm:$0xff]
    %v617 = vld [vmem:[#allocation4 + $0xfc0] sm:$0xff]
    %v618 = vld [vmem:[#allocation4 + $0xfc8] sm:$0xff]
    %v619 = vld [vmem:[#allocation4 + $0xfd0] sm:$0xff]
    %v620 = vld [vmem:[#allocation4 + $0xfd8] sm:$0xff]
    %v621 = vld [vmem:[#allocation4 + $0xfe0] sm:$0xff]
    %v622 = vld [vmem:[#allocation4 + $0xfe8] sm:$0xff]
    %v623 = vld [vmem:[#allocation4 + $0xff0] sm:$0xff]
    %v624 = vld [vmem:[#allocation4 + $0xff8] sm:$0xff]
    %v625 = vld [vmem:[#allocation4 + $0x1000] sm:$0xff]
    %v626 = vld [vmem:[#allocation4 + $0x1008] sm:$0xff]
    %v627 = vld [vmem:[#allocation4 + $0x1010] sm:$0xff]
    %v628 = vld [vmem:[#allocation4 + $0x1018] sm:$0xff]
    %v629 = vld [vmem:[#allocation4 + $0x1020] sm:$0xff]
    %v630 = vld [vmem:[#allocation4 + $0x1028] sm:$0xff]
    %v631 = vld [vmem:[#allocation4 + $0x1030] sm:$0xff]
    %v632 = vld [vmem:[#allocation4 + $0x1038] sm:$0xff]
    %v633 = vld [vmem:[#allocation4 + $0x1040] sm:$0xff]
    %v634 = vld [vmem:[#allocation4 + $0x1048] sm:$0xff]
    %v635 = vld [vmem:[#allocation4 + $0x1050] sm:$0xff]
    %v636 = vld [vmem:[#allocation4 + $0x1058] sm:$0xff]
    %v637 = vld [vmem:[#allocation4 + $0x1060] sm:$0xff]
    %v638 = vld [vmem:[#allocation4 + $0x1068] sm:$0xff]
    %v639 = vld [vmem:[#allocation4 + $0x1070] sm:$0xff]
    %v640 = vld [vmem:[#allocation4 + $0x1078] sm:$0xff]
    %v641 = vld [vmem:[#allocation4 + $0x1080] sm:$0xff]
    %v642 = vld [vmem:[#allocation4 + $0x1088] sm:$0xff]
    %v643 = vld [vmem:[#allocation4 + $0x1090] sm:$0xff]
    %v644 = vld [vmem:[#allocation4 + $0x1098] sm:$0xff]
    %v645 = vld [vmem:[#allocation4 + $0x10a0] sm:$0xff]
    %v646 = vld [vmem:[#allocation4 + $0x10a8] sm:$0xff]
    %v647 = vld [vmem:[#allocation4 + $0x10b0] sm:$0xff]
    %v648 = vld [vmem:[#allocation4 + $0x10b8] sm:$0xff]
    %v649 = vld [vmem:[#allocation4 + $0x10c0] sm:$0xff]
    %v650 = vld [vmem:[#allocation4 + $0x10c8] sm:$0xff]
    %v651 = vld [vmem:[#allocation4 + $0x10d0] sm:$0xff]
    %v652 = vld [vmem:[#allocation4 + $0x10d8] sm:$0xff]
    %v653 = vld [vmem:[#allocation4 + $0x10e0] sm:$0xff]
    %v654 = vld [vmem:[#allocation4 + $0x10e8] sm:$0xff]
    %v655 = vld [vmem:[#allocation4 + $0x10f0] sm:$0xff]
    %v656 = vld [vmem:[#allocation4 + $0x10f8] sm:$0xff]
    %v657 = vld [vmem:[#allocation4 + $0x1100] sm:$0xff]
    %v658 = vld [vmem:[#allocation4 + $0x1108] sm:$0xff]
    %v659 = vld [vmem:[#allocation4 + $0x1110] sm:$0xff]
    %v660 = vld [vmem:[#allocation4 + $0x1118] sm:$0xff]
    %v661 = vld [vmem:[#allocation4 + $0x1120] sm:$0xff]
    %v662 = vld [vmem:[#allocation4 + $0x1128] sm:$0xff]
    %v663 = vld [vmem:[#allocation4 + $0x1130] sm:$0xff]
    %v664 = vld [vmem:[#allocation4 + $0x1138] sm:$0xff]
    %v665 = vld [vmem:[#allocation4 + $0x1140] sm:$0xff]
    %v666 = vld [vmem:[#allocation4 + $0x1148] sm:$0xff]
    %v667 = vld [vmem:[#allocation4 + $0x1150] sm:$0xff]
    %v668 = vld [vmem:[#allocation4 + $0x1158] sm:$0xff]
    %v669 = vld [vmem:[#allocation4 + $0x1160] sm:$0xff]
    %v670 = vld [vmem:[#allocation4 + $0x1168] sm:$0xff]
    %v671 = vld [vmem:[#allocation4 + $0x1170] sm:$0xff]
    %v672 = vld [vmem:[#allocation4 + $0x1178] sm:$0xff]
    %v673 = vld [vmem:[#allocation4 + $0x1180] sm:$0xff]
    %v674 = vld [vmem:[#allocation4 + $0x1188] sm:$0xff]
    %v675 = vld [vmem:[#allocation4 + $0x1190] sm:$0xff]
    %v676 = vld [vmem:[#allocation4 + $0x1198] sm:$0xff]
    %v677 = vld [vmem:[#allocation4 + $0x11a0] sm:$0xff]
    %v678 = vld [vmem:[#allocation4 + $0x11a8] sm:$0xff]
    %v679 = vld [vmem:[#allocation4 + $0x11b0] sm:$0xff]
    %v680 = vld [vmem:[#allocation4 + $0x11b8] sm:$0xff]
    %v681 = vld [vmem:[#allocation4 + $0x11c0] sm:$0xff]
    %v682 = vld [vmem:[#allocation4 + $0x11c8] sm:$0xff]
    %v683 = vld [vmem:[#allocation4 + $0x11d0] sm:$0xff]
    %v684 = vld [vmem:[#allocation4 + $0x11d8] sm:$0xff]
    %v685 = vld [vmem:[#allocation4 + $0x11e0] sm:$0xff]
    %v686 = vld [vmem:[#allocation4 + $0x11e8] sm:$0xff]
    %v687 = vld [vmem:[#allocation4 + $0x11f0] sm:$0xff]
    %v688 = vld [vmem:[#allocation4 + $0x11f8] sm:$0xff]
    %v689 = vld [vmem:[#allocation4 + $0x1200] sm:$0xff]
    %v690 = vld [vmem:[#allocation4 + $0x1208] sm:$0xff]
    %v691 = vld [vmem:[#allocation4 + $0x1210] sm:$0xff]
    %v692 = vld [vmem:[#allocation4 + $0x1218] sm:$0xff]
    %v693 = vld [vmem:[#allocation4 + $0x1220] sm:$0xff]
    %v694 = vld [vmem:[#allocation4 + $0x1228] sm:$0xff]
    %v695 = vld [vmem:[#allocation4 + $0x1230] sm:$0xff]
    %v696 = vld [vmem:[#allocation4 + $0x1238] sm:$0xff]
    %v697 = vld [vmem:[#allocation4 + $0x1240] sm:$0xff]
    %v698 = vld [vmem:[#allocation4 + $0x1248] sm:$0xff]
    %v699 = vld [vmem:[#allocation4 + $0x1250] sm:$0xff]
    %v700 = vld [vmem:[#allocation4 + $0x1258] sm:$0xff]
    %v701 = vld [vmem:[#allocation4 + $0x1260] sm:$0xff]
    %v702 = vld [vmem:[#allocation4 + $0x1268] sm:$0xff]
    %v703 = vld [vmem:[#allocation4 + $0x1270] sm:$0xff]
    %v704 = vld [vmem:[#allocation4 + $0x1278] sm:$0xff]
    %v705 = vld [vmem:[#allocation4 + $0x1280] sm:$0xff]
    %v706 = vld [vmem:[#allocation4 + $0x1288] sm:$0xff]
    %v707 = vld [vmem:[#allocation4 + $0x1290] sm:$0xff]
    %v708 = vld [vmem:[#allocation4 + $0x1298] sm:$0xff]
    %v709 = vld [vmem:[#allocation4 + $0x12a0] sm:$0xff]
    %v710 = vld [vmem:[#allocation4 + $0x12a8] sm:$0xff]
    %v711 = vld [vmem:[#allocation4 + $0x12b0] sm:$0xff]
    %v712 = vld [vmem:[#allocation4 + $0x12b8] sm:$0xff]
    %v713 = vld [vmem:[#allocation4 + $0x12c0] sm:$0xff]
    %v714 = vld [vmem:[#allocation4 + $0x12c8] sm:$0xff]
    %v715 = vld [vmem:[#allocation4 + $0x12d0] sm:$0xff]
    %v716 = vld [vmem:[#allocation4 + $0x12d8] sm:$0xff]
    %v717 = vld [vmem:[#allocation4 + $0x12e0] sm:$0xff]
    %v718 = vld [vmem:[#allocation4 + $0x12e8] sm:$0xff]
    %v719 = vld [vmem:[#allocation4 + $0x12f0] sm:$0xff]
    %v720 = vld [vmem:[#allocation4 + $0x12f8] sm:$0xff]
    %v721 = vld [vmem:[#allocation4 + $0x1300] sm:$0xff]
    %v722 = vld [vmem:[#allocation4 + $0x1308] sm:$0xff]
    %v723 = vld [vmem:[#allocation4 + $0x1310] sm:$0xff]
    %v724 = vld [vmem:[#allocation4 + $0x1318] sm:$0xff]
    %v725 = vld [vmem:[#allocation4 + $0x1320] sm:$0xff]
    %v726 = vld [vmem:[#allocation4 + $0x1328] sm:$0xff]
    %v727 = vld [vmem:[#allocation4 + $0x1330] sm:$0xff]
    %v728 = vld [vmem:[#allocation4 + $0x1338] sm:$0xff]
    %v729 = vld [vmem:[#allocation4 + $0x1340] sm:$0xff]
    %v730 = vld [vmem:[#allocation4 + $0x1348] sm:$0xff]
    %v731 = vld [vmem:[#allocation4 + $0x1350] sm:$0xff]
    %v732 = vld [vmem:[#allocation4 + $0x1358] sm:$0xff]
    %v733 = vld [vmem:[#allocation4 + $0x1360] sm:$0xff]
    %v734 = vld [vmem:[#allocation4 + $0x1368] sm:$0xff]
    %v735 = vld [vmem:[#allocation4 + $0x1370] sm:$0xff]
    %v736 = vld [vmem:[#allocation4 + $0x1378] sm:$0xff]
    %v737 = vld [vmem:[#allocation4 + $0x1380] sm:$0xff]
    %v738 = vld [vmem:[#allocation4 + $0x1388] sm:$0xff]
    %v739 = vld [vmem:[#allocation4 + $0x1390] sm:$0xff]
    %v740 = vld [vmem:[#allocation4 + $0x1398] sm:$0xff]
    %v741 = vld [vmem:[#allocation4 + $0x13a0] sm:$0xff]
    %v742 = vld [vmem:[#allocation4 + $0x13a8] sm:$0xff]
    %v743 = vld [vmem:[#allocation4 + $0x13b0] sm:$0xff]
    %v744 = vld [vmem:[#allocation4 + $0x13b8] sm:$0xff]
    %v745 = vld [vmem:[#allocation4 + $0x13c0] sm:$0xff]
    %v746 = vld [vmem:[#allocation4 + $0x13c8] sm:$0xff]
    %v747 = vld [vmem:[#allocation4 + $0x13d0] sm:$0xff]
    %v748 = vld [vmem:[#allocation4 + $0x13d8] sm:$0xff]
    %v749 = vld [vmem:[#allocation4 + $0x13e0] sm:$0xff]
    %v750 = vld [vmem:[#allocation4 + $0x13e8] sm:$0xff]
    %v751 = vld [vmem:[#allocation4 + $0x13f0] sm:$0xff]
    %v752 = vld [vmem:[#allocation4 + $0x13f8] sm:$0xff]
    %v753 = vld [vmem:[#allocation4 + $0x1400] sm:$0xff]
    %v754 = vld [vmem:[#allocation4 + $0x1408] sm:$0xff]
    %v755 = vld [vmem:[#allocation4 + $0x1410] sm:$0xff]
    %v756 = vld [vmem:[#allocation4 + $0x1418] sm:$0xff]
    %v757 = vld [vmem:[#allocation4 + $0x1420] sm:$0xff]
    %v758 = vld [vmem:[#allocation4 + $0x1428] sm:$0xff]
    %v759 = vld [vmem:[#allocation4 + $0x1430] sm:$0xff]
    %v760 = vld [vmem:[#allocation4 + $0x1438] sm:$0xff]
    %v761 = vld [vmem:[#allocation4 + $0x1440] sm:$0xff]
    %v762 = vld [vmem:[#allocation4 + $0x1448] sm:$0xff]
    %v763 = vld [vmem:[#allocation4 + $0x1450] sm:$0xff]
    %v764 = vld [vmem:[#allocation4 + $0x1458] sm:$0xff]
    %v765 = vld [vmem:[#allocation4 + $0x1460] sm:$0xff]
    %v766 = vld [vmem:[#allocation4 + $0x1468] sm:$0xff]
    %v767 = vld [vmem:[#allocation4 + $0x1470] sm:$0xff]
    %v768 = vld [vmem:[#allocation4 + $0x1478] sm:$0xff]
    %v769 = vld [vmem:[#allocation4 + $0x1480] sm:$0xff]
    %v770 = vld [vmem:[#allocation4 + $0x1488] sm:$0xff]
    %v771 = vld [vmem:[#allocation4 + $0x1490] sm:$0xff]
    %v772 = vld [vmem:[#allocation4 + $0x1498] sm:$0xff]
    %v773 = vld [vmem:[#allocation4 + $0x14a0] sm:$0xff]
    %v774 = vld [vmem:[#allocation4 + $0x14a8] sm:$0xff]
    %v775 = vld [vmem:[#allocation4 + $0x14b0] sm:$0xff]
    %v776 = vld [vmem:[#allocation4 + $0x14b8] sm:$0xff]
    %v777 = vld [vmem:[#allocation4 + $0x14c0] sm:$0xff]
    %v778 = vld [vmem:[#allocation4 + $0x14c8] sm:$0xff]
    %v779 = vld [vmem:[#allocation4 + $0x14d0] sm:$0xff]
    %v780 = vld [vmem:[#allocation4 + $0x14d8] sm:$0xff]
    %v781 = vld [vmem:[#allocation4 + $0x14e0] sm:$0xff]
    %v782 = vld [vmem:[#allocation4 + $0x14e8] sm:$0xff]
    %v783 = vld [vmem:[#allocation4 + $0x14f0] sm:$0xff]
    %v784 = vld [vmem:[#allocation4 + $0x14f8] sm:$0xff]
    %v785 = vld [vmem:[#allocation4 + $0x1500] sm:$0xff]
    %v786 = vld [vmem:[#allocation4 + $0x1508] sm:$0xff]
    %v787 = vld [vmem:[#allocation4 + $0x1510] sm:$0xff]
    %v788 = vld [vmem:[#allocation4 + $0x1518] sm:$0xff]
    %v789 = vld [vmem:[#allocation4 + $0x1520] sm:$0xff]
    %v790 = vld [vmem:[#allocation4 + $0x1528] sm:$0xff]
    %v791 = vld [vmem:[#allocation4 + $0x1530] sm:$0xff]
    %v792 = vld [vmem:[#allocation4 + $0x1538] sm:$0xff]
    %v793 = vld [vmem:[#allocation4 + $0x1540] sm:$0xff]
    %v794 = vld [vmem:[#allocation4 + $0x1548] sm:$0xff]
    %v795 = vld [vmem:[#allocation4 + $0x1550] sm:$0xff]
    %v796 = vld [vmem:[#allocation4 + $0x1558] sm:$0xff]
    %v797 = vld [vmem:[#allocation4 + $0x1560] sm:$0xff]
    %v798 = vld [vmem:[#allocation4 + $0x1568] sm:$0xff]
    %v799 = vld [vmem:[#allocation4 + $0x1570] sm:$0xff]
    %v800 = vld [vmem:[#allocation4 + $0x1578] sm:$0xff]
    %v801 = vld [vmem:[#allocation4 + $0x1580] sm:$0xff]
    %v802 = vld [vmem:[#allocation4 + $0x1588] sm:$0xff]
    %v803 = vld [vmem:[#allocation4 + $0x1590] sm:$0xff]
    %v804 = vld [vmem:[#allocation4 + $0x1598] sm:$0xff]
    %v805 = vld [vmem:[#allocation4 + $0x15a0] sm:$0xff]
    %v806 = vld [vmem:[#allocation4 + $0x15a8] sm:$0xff]
    %v807 = vld [vmem:[#allocation4 + $0x15b0] sm:$0xff]
    %v808 = vld [vmem:[#allocation4 + $0x15b8] sm:$0xff]
    %v809 = vld [vmem:[#allocation4 + $0x15c0] sm:$0xff]
    %v810 = vld [vmem:[#allocation4 + $0x15c8] sm:$0xff]
    %v811 = vld [vmem:[#allocation4 + $0x15d0] sm:$0xff]
    %v812 = vld [vmem:[#allocation4 + $0x15d8] sm:$0xff]
    %v813 = vld [vmem:[#allocation4 + $0x15e0] sm:$0xff]
    %v814 = vld [vmem:[#allocation4 + $0x15e8] sm:$0xff]
    %v815 = vld [vmem:[#allocation4 + $0x15f0] sm:$0xff]
    %v816 = vld [vmem:[#allocation4 + $0x15f8] sm:$0xff]
    %v817 = vld [vmem:[#allocation4 + $0x1600] sm:$0xff]
    %v818 = vld [vmem:[#allocation4 + $0x1608] sm:$0xff]
    %v819 = vld [vmem:[#allocation4 + $0x1610] sm:$0xff]
    %v820 = vld [vmem:[#allocation4 + $0x1618] sm:$0xff]
    %v821 = vld [vmem:[#allocation4 + $0x1620] sm:$0xff]
    %v822 = vld [vmem:[#allocation4 + $0x1628] sm:$0xff]
    %v823 = vld [vmem:[#allocation4 + $0x1630] sm:$0xff]
    %v824 = vld [vmem:[#allocation4 + $0x1638] sm:$0xff]
    %v825 = vld [vmem:[#allocation4 + $0x1640] sm:$0xff]
    %v826 = vld [vmem:[#allocation4 + $0x1648] sm:$0xff]
    %v827 = vld [vmem:[#allocation4 + $0x1650] sm:$0xff]
    %v828 = vld [vmem:[#allocation4 + $0x1658] sm:$0xff]
    %v829 = vld [vmem:[#allocation4 + $0x1660] sm:$0xff]
    %v830 = vld [vmem:[#allocation4 + $0x1668] sm:$0xff]
    %v831 = vld [vmem:[#allocation4 + $0x1670] sm:$0xff]
    %v832 = vld [vmem:[#allocation4 + $0x1678] sm:$0xff]
    %v833 = vld [vmem:[#allocation4 + $0x1680] sm:$0xff]
    %v834 = vld [vmem:[#allocation4 + $0x1688] sm:$0xff]
    %v835 = vld [vmem:[#allocation4 + $0x1690] sm:$0xff]
    %v836 = vld [vmem:[#allocation4 + $0x1698] sm:$0xff]
    %v837 = vld [vmem:[#allocation4 + $0x16a0] sm:$0xff]
    %v838 = vld [vmem:[#allocation4 + $0x16a8] sm:$0xff]
    %v839 = vld [vmem:[#allocation4 + $0x16b0] sm:$0xff]
    %v840 = vld [vmem:[#allocation4 + $0x16b8] sm:$0xff]
    %v841 = vld [vmem:[#allocation4 + $0x16c0] sm:$0xff]
    %v842 = vld [vmem:[#allocation4 + $0x16c8] sm:$0xff]
    %v843 = vld [vmem:[#allocation4 + $0x16d0] sm:$0xff]
    %v844 = vld [vmem:[#allocation4 + $0x16d8] sm:$0xff]
    %v845 = vld [vmem:[#allocation4 + $0x16e0] sm:$0xff]
    %v846 = vld [vmem:[#allocation4 + $0x16e8] sm:$0xff]
    %v847 = vld [vmem:[#allocation4 + $0x16f0] sm:$0xff]
    %v848 = vld [vmem:[#allocation4 + $0x16f8] sm:$0xff]
    %v849 = vld [vmem:[#allocation4 + $0x1700] sm:$0xff]
    %v850 = vld [vmem:[#allocation4 + $0x1708] sm:$0xff]
    %v851 = vld [vmem:[#allocation4 + $0x1710] sm:$0xff]
    %v852 = vld [vmem:[#allocation4 + $0x1718] sm:$0xff]
    %v853 = vld [vmem:[#allocation4 + $0x1720] sm:$0xff]
    %v854 = vld [vmem:[#allocation4 + $0x1728] sm:$0xff]
    %v855 = vld [vmem:[#allocation4 + $0x1730] sm:$0xff]
    %v856 = vld [vmem:[#allocation4 + $0x1738] sm:$0xff]
    %v857 = vld [vmem:[#allocation4 + $0x1740] sm:$0xff]
    %v858 = vld [vmem:[#allocation4 + $0x1748] sm:$0xff]
    %v859 = vld [vmem:[#allocation4 + $0x1750] sm:$0xff]
    %v860 = vld [vmem:[#allocation4 + $0x1758] sm:$0xff]
    %v861 = vld [vmem:[#allocation4 + $0x1760] sm:$0xff]
    %v862 = vld [vmem:[#allocation4 + $0x1768] sm:$0xff]
    %v863 = vld [vmem:[#allocation4 + $0x1770] sm:$0xff]
    %v864 = vld [vmem:[#allocation4 + $0x1778] sm:$0xff]
    %v865 = vld [vmem:[#allocation4 + $0x1780] sm:$0xff]
    %v866 = vld [vmem:[#allocation4 + $0x1788] sm:$0xff]
    %v867 = vld [vmem:[#allocation4 + $0x1790] sm:$0xff]
    %v868 = vld [vmem:[#allocation4 + $0x1798] sm:$0xff]
    %v869 = vld [vmem:[#allocation4 + $0x17a0] sm:$0xff]
    %v870 = vld [vmem:[#allocation4 + $0x17a8] sm:$0xff]
    %v871 = vld [vmem:[#allocation4 + $0x17b0] sm:$0xff]
    %v872 = vld [vmem:[#allocation4 + $0x17b8] sm:$0xff]
    %v873 = vld [vmem:[#allocation4 + $0x17c0] sm:$0xff]
    %v874 = vld [vmem:[#allocation4 + $0x17c8] sm:$0xff]
    %v875 = vld [vmem:[#allocation4 + $0x17d0] sm:$0xff]
    %v876 = vld [vmem:[#allocation4 + $0x17d8] sm:$0xff]
    %v877 = vld [vmem:[#allocation4 + $0x17e0] sm:$0xff]
    %v878 = vld [vmem:[#allocation4 + $0x17e8] sm:$0xff]
    %v879 = vld [vmem:[#allocation4 + $0x17f0] sm:$0xff]
    %v880 = vld [vmem:[#allocation4 + $0x17f8] sm:$0xff]
    %v881 = vld [vmem:[#allocation4 + $0x1800] sm:$0xff]
    %v882 = vld [vmem:[#allocation4 + $0x1808] sm:$0xff]
    %v883 = vld [vmem:[#allocation4 + $0x1810] sm:$0xff]
    %v884 = vld [vmem:[#allocation4 + $0x1818] sm:$0xff]
    %v885 = vld [vmem:[#allocation4 + $0x1820] sm:$0xff]
    %v886 = vld [vmem:[#allocation4 + $0x1828] sm:$0xff]
    %v887 = vld [vmem:[#allocation4 + $0x1830] sm:$0xff]
    %v888 = vld [vmem:[#allocation4 + $0x1838] sm:$0xff]
    %v889 = vld [vmem:[#allocation4 + $0x1840] sm:$0xff]
    %v890 = vld [vmem:[#allocation4 + $0x1848] sm:$0xff]
    %v891 = vld [vmem:[#allocation4 + $0x1850] sm:$0xff]
    %v892 = vld [vmem:[#allocation4 + $0x1858] sm:$0xff]
    %v893 = vld [vmem:[#allocation4 + $0x1860] sm:$0xff]
    %v894 = vld [vmem:[#allocation4 + $0x1868] sm:$0xff]
    %v895 = vld [vmem:[#allocation4 + $0x1870] sm:$0xff]
    %v896 = vld [vmem:[#allocation4 + $0x1878] sm:$0xff]
    %v897 = vld [vmem:[#allocation4 + $0x1880] sm:$0xff]
    %v898 = vld [vmem:[#allocation4 + $0x1888] sm:$0xff]
    %v899 = vld [vmem:[#allocation4 + $0x1890] sm:$0xff]
    %v900 = vld [vmem:[#allocation4 + $0x1898] sm:$0xff]
    %v901 = vld [vmem:[#allocation4 + $0x18a0] sm:$0xff]
    %v902 = vld [vmem:[#allocation4 + $0x18a8] sm:$0xff]
    %v903 = vld [vmem:[#allocation4 + $0x18b0] sm:$0xff]
    %v904 = vld [vmem:[#allocation4 + $0x18b8] sm:$0xff]
    %v905 = vld [vmem:[#allocation4 + $0x18c0] sm:$0xff]
    %v906 = vld [vmem:[#allocation4 + $0x18c8] sm:$0xff]
    %v907 = vld [vmem:[#allocation4 + $0x18d0] sm:$0xff]
    %v908 = vld [vmem:[#allocation4 + $0x18d8] sm:$0xff]
    %v909 = vld [vmem:[#allocation4 + $0x18e0] sm:$0xff]
    %v910 = vld [vmem:[#allocation4 + $0x18e8] sm:$0xff]
    %v911 = vld [vmem:[#allocation4 + $0x18f0] sm:$0xff]
    %v912 = vld [vmem:[#allocation4 + $0x18f8] sm:$0xff]
    %v913 = vld [vmem:[#allocation4 + $0x1900] sm:$0xff]
    %v914 = vld [vmem:[#allocation4 + $0x1908] sm:$0xff]
    %v915 = vld [vmem:[#allocation4 + $0x1910] sm:$0xff]
    %v916 = vld [vmem:[#allocation4 + $0x1918] sm:$0xff]
    %v917 = vld [vmem:[#allocation4 + $0x1920] sm:$0xff]
    %v918 = vld [vmem:[#allocation4 + $0x1928] sm:$0xff]
    %v919 = vld [vmem:[#allocation4 + $0x1930] sm:$0xff]
    %v920 = vld [vmem:[#allocation4 + $0x1938] sm:$0xff]
    %v921 = vld [vmem:[#allocation4 + $0x1940] sm:$0xff]
    %v922 = vld [vmem:[#allocation4 + $0x1948] sm:$0xff]
    %v923 = vld [vmem:[#allocation4 + $0x1950] sm:$0xff]
    %v924 = vld [vmem:[#allocation4 + $0x1958] sm:$0xff]
    %v925 = vld [vmem:[#allocation4 + $0x1960] sm:$0xff]
    %v926 = vld [vmem:[#allocation4 + $0x1968] sm:$0xff]
    %v927 = vld [vmem:[#allocation4 + $0x1970] sm:$0xff]
    %v928 = vld [vmem:[#allocation4 + $0x1978] sm:$0xff]
    %v929 = vld [vmem:[#allocation4 + $0x1980] sm:$0xff]
    %v930 = vld [vmem:[#allocation4 + $0x1988] sm:$0xff]
    %v931 = vld [vmem:[#allocation4 + $0x1990] sm:$0xff]
    %v932 = vld [vmem:[#allocation4 + $0x1998] sm:$0xff]
    %v933 = vld [vmem:[#allocation4 + $0x19a0] sm:$0xff]
    %v934 = vld [vmem:[#allocation4 + $0x19a8] sm:$0xff]
    %v935 = vld [vmem:[#allocation4 + $0x19b0] sm:$0xff]
    %v936 = vld [vmem:[#allocation4 + $0x19b8] sm:$0xff]
    %v937 = vld [vmem:[#allocation4 + $0x19c0] sm:$0xff]
    %v938 = vld [vmem:[#allocation4 + $0x19c8] sm:$0xff]
    %v939 = vld [vmem:[#allocation4 + $0x19d0] sm:$0xff]
    %v940 = vld [vmem:[#allocation4 + $0x19d8] sm:$0xff]
    %v941 = vld [vmem:[#allocation4 + $0x19e0] sm:$0xff]
    %v942 = vld [vmem:[#allocation4 + $0x19e8] sm:$0xff]
    %v943 = vld [vmem:[#allocation4 + $0x19f0] sm:$0xff]
    %v944 = vld [vmem:[#allocation4 + $0x19f8] sm:$0xff]
    %v945 = vld [vmem:[#allocation4 + $0x1a00] sm:$0xff]
    %v946 = vld [vmem:[#allocation4 + $0x1a08] sm:$0xff]
    %v947 = vld [vmem:[#allocation4 + $0x1a10] sm:$0xff]
    %v948 = vld [vmem:[#allocation4 + $0x1a18] sm:$0xff]
    %v949 = vld [vmem:[#allocation4 + $0x1a20] sm:$0xff]
    %v950 = vld [vmem:[#allocation4 + $0x1a28] sm:$0xff]
    %v951 = vld [vmem:[#allocation4 + $0x1a30] sm:$0xff]
    %v952 = vld [vmem:[#allocation4 + $0x1a38] sm:$0xff]
    %v953 = vld [vmem:[#allocation4 + $0x1a40] sm:$0xff]
    %v954 = vld [vmem:[#allocation4 + $0x1a48] sm:$0xff]
    %v955 = vld [vmem:[#allocation4 + $0x1a50] sm:$0xff]
    %v956 = vld [vmem:[#allocation4 + $0x1a58] sm:$0xff]
    %v957 = vld [vmem:[#allocation4 + $0x1a60] sm:$0xff]
    %v958 = vld [vmem:[#allocation4 + $0x1a68] sm:$0xff]
    %v959 = vld [vmem:[#allocation4 + $0x1a70] sm:$0xff]
    %v960 = vld [vmem:[#allocation4 + $0x1a78] sm:$0xff]
    %v961 = vld [vmem:[#allocation4 + $0x1a80] sm:$0xff]
    %v962 = vld [vmem:[#allocation4 + $0x1a88] sm:$0xff]
    %v963 = vld [vmem:[#allocation4 + $0x1a90] sm:$0xff]
    %v964 = vld [vmem:[#allocation4 + $0x1a98] sm:$0xff]
    %v965 = vld [vmem:[#allocation4 + $0x1aa0] sm:$0xff]
    %v966 = vld [vmem:[#allocation4 + $0x1aa8] sm:$0xff]
    %v967 = vld [vmem:[#allocation4 + $0x1ab0] sm:$0xff]
    %v968 = vld [vmem:[#allocation4 + $0x1ab8] sm:$0xff]
    %v969 = vld [vmem:[#allocation4 + $0x1ac0] sm:$0xff]
    %v970 = vld [vmem:[#allocation4 + $0x1ac8] sm:$0xff]
    %v971 = vld [vmem:[#allocation4 + $0x1ad0] sm:$0xff]
    %v972 = vld [vmem:[#allocation4 + $0x1ad8] sm:$0xff]
    %v973 = vld [vmem:[#allocation4 + $0x1ae0] sm:$0xff]
    %v974 = vld [vmem:[#allocation4 + $0x1ae8] sm:$0xff]
    %v975 = vld [vmem:[#allocation4 + $0x1af0] sm:$0xff]
    %v976 = vld [vmem:[#allocation4 + $0x1af8] sm:$0xff]
    %v977 = vld [vmem:[#allocation4 + $0x1b00] sm:$0xff]
    %v978 = vld [vmem:[#allocation4 + $0x1b08] sm:$0xff]
    %v979 = vld [vmem:[#allocation4 + $0x1b10] sm:$0xff]
    %v980 = vld [vmem:[#allocation4 + $0x1b18] sm:$0xff]
    %v981 = vld [vmem:[#allocation4 + $0x1b20] sm:$0xff]
    %v982 = vld [vmem:[#allocation4 + $0x1b28] sm:$0xff]
    %v983 = vld [vmem:[#allocation4 + $0x1b30] sm:$0xff]
    %v984 = vld [vmem:[#allocation4 + $0x1b38] sm:$0xff]
    %v985 = vld [vmem:[#allocation4 + $0x1b40] sm:$0xff]
    %v986 = vld [vmem:[#allocation4 + $0x1b48] sm:$0xff]
    %v987 = vld [vmem:[#allocation4 + $0x1b50] sm:$0xff]
    %v988 = vld [vmem:[#allocation4 + $0x1b58] sm:$0xff]
    %v989 = vld [vmem:[#allocation4 + $0x1b60] sm:$0xff]
    %v990 = vld [vmem:[#allocation4 + $0x1b68] sm:$0xff]
    %v991 = vld [vmem:[#allocation4 + $0x1b70] sm:$0xff]
    %v992 = vld [vmem:[#allocation4 + $0x1b78] sm:$0xff]
    %v993 = vld [vmem:[#allocation4 + $0x1b80] sm:$0xff]
    %v994 = vld [vmem:[#allocation4 + $0x1b88] sm:$0xff]
    %v995 = vld [vmem:[#allocation4 + $0x1b90] sm:$0xff]
    %v996 = vld [vmem:[#allocation4 + $0x1b98] sm:$0xff]
    %v997 = vld [vmem:[#allocation4 + $0x1ba0] sm:$0xff]
    %v998 = vld [vmem:[#allocation4 + $0x1ba8] sm:$0xff]
    %v999 = vld [vmem:[#allocation4 + $0x1bb0] sm:$0xff]
    %v1000 = vld [vmem:[#allocation4 + $0x1bb8] sm:$0xff]
    %v1001 = vld [vmem:[#allocation4 + $0x1bc0] sm:$0xff]
    %v1002 = vld [vmem:[#allocation4 + $0x1bc8] sm:$0xff]
    %v1003 = vld [vmem:[#allocation4 + $0x1bd0] sm:$0xff]
    %v1004 = vld [vmem:[#allocation4 + $0x1bd8] sm:$0xff]
    %v1005 = vld [vmem:[#allocation4 + $0x1be0] sm:$0xff]
    %v1006 = vld [vmem:[#allocation4 + $0x1be8] sm:$0xff]
    %v1007 = vld [vmem:[#allocation4 + $0x1bf0] sm:$0xff]
    %v1008 = vld [vmem:[#allocation4 + $0x1bf8] sm:$0xff]
    %v1009 = vld [vmem:[#allocation4 + $0x1c00] sm:$0xff]
    %v1010 = vld [vmem:[#allocation4 + $0x1c08] sm:$0xff]
    %v1011 = vld [vmem:[#allocation4 + $0x1c10] sm:$0xff]
    %v1012 = vld [vmem:[#allocation4 + $0x1c18] sm:$0xff]
    %v1013 = vld [vmem:[#allocation4 + $0x1c20] sm:$0xff]
    %v1014 = vld [vmem:[#allocation4 + $0x1c28] sm:$0xff]
    %v1015 = vld [vmem:[#allocation4 + $0x1c30] sm:$0xff]
    %v1016 = vld [vmem:[#allocation4 + $0x1c38] sm:$0xff]
    %v1017 = vld [vmem:[#allocation4 + $0x1c40] sm:$0xff]
    %v1018 = vld [vmem:[#allocation4 + $0x1c48] sm:$0xff]
    %v1019 = vld [vmem:[#allocation4 + $0x1c50] sm:$0xff]
    %v1020 = vld [vmem:[#allocation4 + $0x1c58] sm:$0xff]
    %v1021 = vld [vmem:[#allocation4 + $0x1c60] sm:$0xff]
    %v1022 = vld [vmem:[#allocation4 + $0x1c68] sm:$0xff]
    %v1023 = vld [vmem:[#allocation4 + $0x1c70] sm:$0xff]
    %v1024 = vld [vmem:[#allocation4 + $0x1c78] sm:$0xff]
    %v1025 = vld [vmem:[#allocation4 + $0x1c80] sm:$0xff]
    %v1026 = vld [vmem:[#allocation4 + $0x1c88] sm:$0xff]
    %v1027 = vld [vmem:[#allocation4 + $0x1c90] sm:$0xff]
    %v1028 = vld [vmem:[#allocation4 + $0x1c98] sm:$0xff]
    %v1029 = vld [vmem:[#allocation4 + $0x1ca0] sm:$0xff]
    %v1030 = vld [vmem:[#allocation4 + $0x1ca8] sm:$0xff]
    %v1031 = vld [vmem:[#allocation4 + $0x1cb0] sm:$0xff]
    %v1032 = vld [vmem:[#allocation4 + $0x1cb8] sm:$0xff]
    %v1033 = vld [vmem:[#allocation4 + $0x1cc0] sm:$0xff]
    %v1034 = vld [vmem:[#allocation4 + $0x1cc8] sm:$0xff]
    %v1035 = vld [vmem:[#allocation4 + $0x1cd0] sm:$0xff]
    %v1036 = vld [vmem:[#allocation4 + $0x1cd8] sm:$0xff]
    %v1037 = vld [vmem:[#allocation4 + $0x1ce0] sm:$0xff]
    %v1038 = vld [vmem:[#allocation4 + $0x1ce8] sm:$0xff]
    %v1039 = vld [vmem:[#allocation4 + $0x1cf0] sm:$0xff]
    %v1040 = vld [vmem:[#allocation4 + $0x1cf8] sm:$0xff]
    %v1041 = vld [vmem:[#allocation4 + $0x1d00] sm:$0xff]
    %v1042 = vld [vmem:[#allocation4 + $0x1d08] sm:$0xff]
    %v1043 = vld [vmem:[#allocation4 + $0x1d10] sm:$0xff]
    %v1044 = vld [vmem:[#allocation4 + $0x1d18] sm:$0xff]
    %v1045 = vld [vmem:[#allocation4 + $0x1d20] sm:$0xff]
    %v1046 = vld [vmem:[#allocation4 + $0x1d28] sm:$0xff]
    %v1047 = vld [vmem:[#allocation4 + $0x1d30] sm:$0xff]
    %v1048 = vld [vmem:[#allocation4 + $0x1d38] sm:$0xff]
    %v1049 = vld [vmem:[#allocation4 + $0x1d40] sm:$0xff]
    %v1050 = vld [vmem:[#allocation4 + $0x1d48] sm:$0xff]
    %v1051 = vld [vmem:[#allocation4 + $0x1d50] sm:$0xff]
    %v1052 = vld [vmem:[#allocation4 + $0x1d58] sm:$0xff]
    %v1053 = vld [vmem:[#allocation4 + $0x1d60] sm:$0xff]
    %v1054 = vld [vmem:[#allocation4 + $0x1d68] sm:$0xff]
    %v1055 = vld [vmem:[#allocation4 + $0x1d70] sm:$0xff]
    %v1056 = vld [vmem:[#allocation4 + $0x1d78] sm:$0xff]
    %v1057 = vld [vmem:[#allocation4 + $0x1d80] sm:$0xff]
    %v1058 = vld [vmem:[#allocation4 + $0x1d88] sm:$0xff]
    %v1059 = vld [vmem:[#allocation4 + $0x1d90] sm:$0xff]
    %v1060 = vld [vmem:[#allocation4 + $0x1d98] sm:$0xff]
    %v1061 = vld [vmem:[#allocation4 + $0x1da0] sm:$0xff]
    %v1062 = vld [vmem:[#allocation4 + $0x1da8] sm:$0xff]
    %v1063 = vld [vmem:[#allocation4 + $0x1db0] sm:$0xff]
    %v1064 = vld [vmem:[#allocation4 + $0x1db8] sm:$0xff]
    %v1065 = vld [vmem:[#allocation4 + $0x1dc0] sm:$0xff]
    %v1066 = vld [vmem:[#allocation4 + $0x1dc8] sm:$0xff]
    %v1067 = vld [vmem:[#allocation4 + $0x1dd0] sm:$0xff]
    %v1068 = vld [vmem:[#allocation4 + $0x1dd8] sm:$0xff]
    %v1069 = vld [vmem:[#allocation4 + $0x1de0] sm:$0xff]
    %v1070 = vld [vmem:[#allocation4 + $0x1de8] sm:$0xff]
    %v1071 = vld [vmem:[#allocation4 + $0x1df0] sm:$0xff]
    %v1072 = vld [vmem:[#allocation4 + $0x1df8] sm:$0xff]
    %v1073 = vld [vmem:[#allocation4 + $0x1e00] sm:$0xff]
    %v1074 = vld [vmem:[#allocation4 + $0x1e08] sm:$0xff]
    %v1075 = vld [vmem:[#allocation4 + $0x1e10] sm:$0xff]
    %v1076 = vld [vmem:[#allocation4 + $0x1e18] sm:$0xff]
    %v1077 = vld [vmem:[#allocation4 + $0x1e20] sm:$0xff]
    %v1078 = vld [vmem:[#allocation4 + $0x1e28] sm:$0xff]
    %v1079 = vld [vmem:[#allocation4 + $0x1e30] sm:$0xff]
    %v1080 = vld [vmem:[#allocation4 + $0x1e38] sm:$0xff]
    %v1081 = vld [vmem:[#allocation4 + $0x1e40] sm:$0xff]
    %v1082 = vld [vmem:[#allocation4 + $0x1e48] sm:$0xff]
    %v1083 = vld [vmem:[#allocation4 + $0x1e50] sm:$0xff]
    %v1084 = vld [vmem:[#allocation4 + $0x1e58] sm:$0xff]
    %v1085 = vld [vmem:[#allocation4 + $0x1e60] sm:$0xff]
    %v1086 = vld [vmem:[#allocation4 + $0x1e68] sm:$0xff]
    %v1087 = vld [vmem:[#allocation4 + $0x1e70] sm:$0xff]
    %v1088 = vld [vmem:[#allocation4 + $0x1e78] sm:$0xff]
    %v1089 = vld [vmem:[#allocation4 + $0x1e80] sm:$0xff]
    %v1090 = vld [vmem:[#allocation4 + $0x1e88] sm:$0xff]
    %v1091 = vld [vmem:[#allocation4 + $0x1e90] sm:$0xff]
    %v1092 = vld [vmem:[#allocation4 + $0x1e98] sm:$0xff]
    %v1093 = vld [vmem:[#allocation4 + $0x1ea0] sm:$0xff]
    %v1094 = vld [vmem:[#allocation4 + $0x1ea8] sm:$0xff]
    %v1095 = vld [vmem:[#allocation4 + $0x1eb0] sm:$0xff]
    %v1096 = vld [vmem:[#allocation4 + $0x1eb8] sm:$0xff]
    %v1097 = vld [vmem:[#allocation4 + $0x1ec0] sm:$0xff]
    %v1098 = vld [vmem:[#allocation4 + $0x1ec8] sm:$0xff]
    %v1099 = vld [vmem:[#allocation4 + $0x1ed0] sm:$0xff]
    %v1100 = vld [vmem:[#allocation4 + $0x1ed8] sm:$0xff]
    %v1101 = vld [vmem:[#allocation4 + $0x1ee0] sm:$0xff]
    %v1102 = vld [vmem:[#allocation4 + $0x1ee8] sm:$0xff]
    %v1103 = vld [vmem:[#allocation4 + $0x1ef0] sm:$0xff]
    %v1104 = vld [vmem:[#allocation4 + $0x1ef8] sm:$0xff]
    %v1105 = vld [vmem:[#allocation4 + $0x1f00] sm:$0xff]
    %v1106 = vld [vmem:[#allocation4 + $0x1f08] sm:$0xff]
    %v1107 = vld [vmem:[#allocation4 + $0x1f10] sm:$0xff]
    %v1108 = vld [vmem:[#allocation4 + $0x1f18] sm:$0xff]
    %v1109 = vld [vmem:[#allocation4 + $0x1f20] sm:$0xff]
    %v1110 = vld [vmem:[#allocation4 + $0x1f28] sm:$0xff]
    %v1111 = vld [vmem:[#allocation4 + $0x1f30] sm:$0xff]
    %v1112 = vld [vmem:[#allocation4 + $0x1f38] sm:$0xff]
    %v1113 = vld [vmem:[#allocation6] sm:$0xff]
    %v1115 = vlaneseq
    %v1116 = vshrl.u32 %v1115, 7
    %v1117 = vsub.s32 0, %v1116
    %v1118 = vrot.slane %v1113, %v1117
    %v1119 = vlaneseq
    %v1120 = vshrl.u32 %v1119, 7
    %v1121 = vsub.s32 1, %v1120
    %v1122 = vrot.slane %v1113, %v1121
    %v1123 = vlaneseq
    %v1124 = vshrl.u32 %v1123, 7
    %v1125 = vsub.s32 2, %v1124
    %v1126 = vrot.slane %v1113, %v1125
    %v1127 = vlaneseq
    %v1128 = vshrl.u32 %v1127, 7
    %v1129 = vsub.s32 3, %v1128
    %v1130 = vrot.slane %v1113, %v1129
    %v1131 = vlaneseq
    %v1132 = vshrl.u32 %v1131, 7
    %v1133 = vsub.s32 4, %v1132
    %v1134 = vrot.slane %v1113, %v1133
    %v1135 = vlaneseq
    %v1136 = vshrl.u32 %v1135, 7
    %v1137 = vsub.s32 5, %v1136
    %v1138 = vrot.slane %v1113, %v1137
    %v1139 = vlaneseq
    %v1140 = vshrl.u32 %v1139, 7
    %v1141 = vsub.s32 6, %v1140
    %v1142 = vrot.slane %v1113, %v1141
    %v1143 = vlaneseq
    %v1144 = vshrl.u32 %v1143, 7
    %v1145 = vsub.s32 7, %v1144
    %v1146 = vrot.slane %v1113, %v1145
    %v2155 = vunpack.c.l.b16 %v113
    %v2156 = vunpack.c.h.b16 %v113
    %v2157 = vunpack.c.l.b16 %v114
    %v2158 = vunpack.c.h.b16 %v114
    %v2159 = vunpack.c.l.b16 %v115
    %v2160 = vunpack.c.h.b16 %v115
    %v2161 = vunpack.c.l.b16 %v116
    %v2162 = vunpack.c.h.b16 %v116
    %v2163 = vunpack.c.l.b16 %v117
    %v2164 = vunpack.c.h.b16 %v117
    %v2165 = vunpack.c.l.b16 %v118
    %v2166 = vunpack.c.h.b16 %v118
    %v2167 = vunpack.c.l.b16 %v119
    %v2168 = vunpack.c.h.b16 %v119
    %v2169 = vunpack.c.l.b16 %v120
    %v2170 = vunpack.c.h.b16 %v120
    %v2171 = vunpack.c.l.b16 %v121
    %v2172 = vunpack.c.h.b16 %v121
    %v2173 = vunpack.c.l.b16 %v122
    %v2174 = vunpack.c.h.b16 %v122
    %v2175 = vunpack.c.l.b16 %v123
    %v2176 = vunpack.c.h.b16 %v123
    %v2177 = vunpack.c.l.b16 %v124
    %v2178 = vunpack.c.h.b16 %v124
    %v2179 = vunpack.c.l.b16 %v125
    %v2180 = vunpack.c.h.b16 %v125
    %v2181 = vunpack.c.l.b16 %v126
    %v2182 = vunpack.c.h.b16 %v126
    %v2183 = vunpack.c.l.b16 %v127
    %v2184 = vunpack.c.h.b16 %v127
    %v2185 = vunpack.c.l.b16 %v128
    %v2186 = vunpack.c.h.b16 %v128
    %v2187 = vunpack.c.l.b16 %v129
    %v2188 = vunpack.c.h.b16 %v129
    %v2189 = vunpack.c.l.b16 %v130
    %v2190 = vunpack.c.h.b16 %v130
    %v2191 = vunpack.c.l.b16 %v131
    %v2192 = vunpack.c.h.b16 %v131
    %v2193 = vunpack.c.l.b16 %v132
    %v2194 = vunpack.c.h.b16 %v132
    %v2195 = vunpack.c.l.b16 %v133
    %v2196 = vunpack.c.h.b16 %v133
    %v2197 = vunpack.c.l.b16 %v134
    %v2198 = vunpack.c.h.b16 %v134
    %v2199 = vunpack.c.l.b16 %v135
    %v2200 = vunpack.c.h.b16 %v135
    %v2201 = vunpack.c.l.b16 %v136
    %v2202 = vunpack.c.h.b16 %v136
    %v2203 = vunpack.c.l.b16 %v137
    %v2204 = vunpack.c.h.b16 %v137
    %v2205 = vunpack.c.l.b16 %v138
    %v2206 = vunpack.c.h.b16 %v138
    %v2207 = vunpack.c.l.b16 %v139
    %v2208 = vunpack.c.h.b16 %v139
    %v2209 = vunpack.c.l.b16 %v140
    %v2210 = vunpack.c.h.b16 %v140
    %v2211 = vunpack.c.l.b16 %v141
    %v2212 = vunpack.c.h.b16 %v141
    %v2213 = vunpack.c.l.b16 %v142
    %v2214 = vunpack.c.h.b16 %v142
    %v2215 = vunpack.c.l.b16 %v143
    %v2216 = vunpack.c.h.b16 %v143
    %v2217 = vunpack.c.l.b16 %v144
    %v2218 = vunpack.c.h.b16 %v144
    %v2219 = vunpack.c.l.b16 %v145
    %v2220 = vunpack.c.h.b16 %v145
    %v2221 = vunpack.c.l.b16 %v146
    %v2222 = vunpack.c.h.b16 %v146
    %v2223 = vunpack.c.l.b16 %v147
    %v2224 = vunpack.c.h.b16 %v147
    %v2225 = vunpack.c.l.b16 %v148
    %v2226 = vunpack.c.h.b16 %v148
    %v2227 = vunpack.c.l.b16 %v149
    %v2228 = vunpack.c.h.b16 %v149
    %v2229 = vunpack.c.l.b16 %v150
    %v2230 = vunpack.c.h.b16 %v150
    %v2231 = vunpack.c.l.b16 %v151
    %v2232 = vunpack.c.h.b16 %v151
    %v2233 = vunpack.c.l.b16 %v152
    %v2234 = vunpack.c.h.b16 %v152
    %v2235 = vunpack.c.l.b16 %v153
    %v2236 = vunpack.c.h.b16 %v153
    %v2237 = vunpack.c.l.b16 %v154
    %v2238 = vunpack.c.h.b16 %v154
    %v2239 = vunpack.c.l.b16 %v155
    %v2240 = vunpack.c.h.b16 %v155
    %v2241 = vunpack.c.l.b16 %v156
    %v2242 = vunpack.c.h.b16 %v156
    %v2243 = vunpack.c.l.b16 %v157
    %v2244 = vunpack.c.h.b16 %v157
    %v2245 = vunpack.c.l.b16 %v158
    %v2246 = vunpack.c.h.b16 %v158
    %v2247 = vunpack.c.l.b16 %v159
    %v2248 = vunpack.c.h.b16 %v159
    %v2249 = vunpack.c.l.b16 %v160
    %v2250 = vunpack.c.h.b16 %v160
    %v2251 = vunpack.c.l.b16 %v161
    %v2252 = vunpack.c.h.b16 %v161
    %v2253 = vunpack.c.l.b16 %v162
    %v2254 = vunpack.c.h.b16 %v162
    %v2255 = vunpack.c.l.b16 %v163
    %v2256 = vunpack.c.h.b16 %v163
    %v2257 = vunpack.c.l.b16 %v164
    %v2258 = vunpack.c.h.b16 %v164
    %v2259 = vunpack.c.l.b16 %v165
    %v2260 = vunpack.c.h.b16 %v165
    %v2261 = vunpack.c.l.b16 %v166
    %v2262 = vunpack.c.h.b16 %v166
    %v2263 = vunpack.c.l.b16 %v167
    %v2264 = vunpack.c.h.b16 %v167
    %v2265 = vunpack.c.l.b16 %v168
    %v2266 = vunpack.c.h.b16 %v168
    %v2267 = vunpack.c.l.b16 %v169
    %v2268 = vunpack.c.h.b16 %v169
    %v2269 = vunpack.c.l.b16 %v170
    %v2270 = vunpack.c.h.b16 %v170
    %v2271 = vunpack.c.l.b16 %v171
    %v2272 = vunpack.c.h.b16 %v171
    %v2273 = vunpack.c.l.b16 %v172
    %v2274 = vunpack.c.h.b16 %v172
    %v2275 = vunpack.c.l.b16 %v173
    %v2276 = vunpack.c.h.b16 %v173
    %v2277 = vunpack.c.l.b16 %v174
    %v2278 = vunpack.c.h.b16 %v174
    %v2279 = vunpack.c.l.b16 %v175
    %v2280 = vunpack.c.h.b16 %v175
    %v2281 = vunpack.c.l.b16 %v176
    %v2282 = vunpack.c.h.b16 %v176
    %v2283 = vunpack.c.l.b16 %v177
    %v2284 = vunpack.c.h.b16 %v177
    %v2285 = vunpack.c.l.b16 %v178
    %v2286 = vunpack.c.h.b16 %v178
    %v2287 = vunpack.c.l.b16 %v179
    %v2288 = vunpack.c.h.b16 %v179
    %v2289 = vunpack.c.l.b16 %v180
    %v2290 = vunpack.c.h.b16 %v180
    %v2291 = vunpack.c.l.b16 %v181
    %v2292 = vunpack.c.h.b16 %v181
    %v2293 = vunpack.c.l.b16 %v182
    %v2294 = vunpack.c.h.b16 %v182
    %v2295 = vunpack.c.l.b16 %v183
    %v2296 = vunpack.c.h.b16 %v183
    %v2297 = vunpack.c.l.b16 %v184
    %v2298 = vunpack.c.h.b16 %v184
    %v2299 = vunpack.c.l.b16 %v185
    %v2300 = vunpack.c.h.b16 %v185
    %v2301 = vunpack.c.l.b16 %v186
    %v2302 = vunpack.c.h.b16 %v186
    %v2303 = vunpack.c.l.b16 %v187
    %v2304 = vunpack.c.h.b16 %v187
    %v2305 = vunpack.c.l.b16 %v188
    %v2306 = vunpack.c.h.b16 %v188
    %v2307 = vunpack.c.l.b16 %v189
    %v2308 = vunpack.c.h.b16 %v189
    %v2309 = vunpack.c.l.b16 %v190
    %v2310 = vunpack.c.h.b16 %v190
    %v2311 = vunpack.c.l.b16 %v191
    %v2312 = vunpack.c.h.b16 %v191
    %v2313 = vunpack.c.l.b16 %v192
    %v2314 = vunpack.c.h.b16 %v192
    %v2315 = vunpack.c.l.b16 %v193
    %v2316 = vunpack.c.h.b16 %v193
    %v2317 = vunpack.c.l.b16 %v194
    %v2318 = vunpack.c.h.b16 %v194
    %v2319 = vunpack.c.l.b16 %v195
    %v2320 = vunpack.c.h.b16 %v195
    %v2321 = vunpack.c.l.b16 %v196
    %v2322 = vunpack.c.h.b16 %v196
    %v2323 = vunpack.c.l.b16 %v197
    %v2324 = vunpack.c.h.b16 %v197
    %v2325 = vunpack.c.l.b16 %v198
    %v2326 = vunpack.c.h.b16 %v198
    %v2327 = vunpack.c.l.b16 %v199
    %v2328 = vunpack.c.h.b16 %v199
    %v2329 = vunpack.c.l.b16 %v200
    %v2330 = vunpack.c.h.b16 %v200
    %v2331 = vunpack.c.l.b16 %v201
    %v2332 = vunpack.c.h.b16 %v201
    %v2333 = vunpack.c.l.b16 %v202
    %v2334 = vunpack.c.h.b16 %v202
    %v2335 = vunpack.c.l.b16 %v203
    %v2336 = vunpack.c.h.b16 %v203
    %v2337 = vunpack.c.l.b16 %v204
    %v2338 = vunpack.c.h.b16 %v204
    %v2339 = vunpack.c.l.b16 %v205
    %v2340 = vunpack.c.h.b16 %v205
    %v2341 = vunpack.c.l.b16 %v206
    %v2342 = vunpack.c.h.b16 %v206
    %v2343 = vunpack.c.l.b16 %v207
    %v2344 = vunpack.c.h.b16 %v207
    %v2345 = vunpack.c.l.b16 %v208
    %v2346 = vunpack.c.h.b16 %v208
    %v2347 = vunpack.c.l.b16 %v209
    %v2348 = vunpack.c.h.b16 %v209
    %v2349 = vunpack.c.l.b16 %v210
    %v2350 = vunpack.c.h.b16 %v210
    %v2351 = vunpack.c.l.b16 %v211
    %v2352 = vunpack.c.h.b16 %v211
    %v2353 = vunpack.c.l.b16 %v212
    %v2354 = vunpack.c.h.b16 %v212
    %v2355 = vunpack.c.l.b16 %v213
    %v2356 = vunpack.c.h.b16 %v213
    %v2357 = vunpack.c.l.b16 %v214
    %v2358 = vunpack.c.h.b16 %v214
    %v2359 = vunpack.c.l.b16 %v215
    %v2360 = vunpack.c.h.b16 %v215
    %v2361 = vunpack.c.l.b16 %v216
    %v2362 = vunpack.c.h.b16 %v216
    %v2363 = vunpack.c.l.b16 %v217
    %v2364 = vunpack.c.h.b16 %v217
    %v2365 = vunpack.c.l.b16 %v218
    %v2366 = vunpack.c.h.b16 %v218
    %v2367 = vunpack.c.l.b16 %v219
    %v2368 = vunpack.c.h.b16 %v219
    %v2369 = vunpack.c.l.b16 %v220
    %v2370 = vunpack.c.h.b16 %v220
    %v2371 = vunpack.c.l.b16 %v221
    %v2372 = vunpack.c.h.b16 %v221
    %v2373 = vunpack.c.l.b16 %v222
    %v2374 = vunpack.c.h.b16 %v222
    %v2375 = vunpack.c.l.b16 %v223
    %v2376 = vunpack.c.h.b16 %v223
    %v2377 = vunpack.c.l.b16 %v224
    %v2378 = vunpack.c.h.b16 %v224
    %v2379 = vunpack.c.l.b16 %v225
    %v2380 = vunpack.c.h.b16 %v225
    %v2381 = vunpack.c.l.b16 %v226
    %v2382 = vunpack.c.h.b16 %v226
    %v2383 = vunpack.c.l.b16 %v227
    %v2384 = vunpack.c.h.b16 %v227
    %v2385 = vunpack.c.l.b16 %v228
    %v2386 = vunpack.c.h.b16 %v228
    %v2387 = vunpack.c.l.b16 %v229
    %v2388 = vunpack.c.h.b16 %v229
    %v2389 = vunpack.c.l.b16 %v230
    %v2390 = vunpack.c.h.b16 %v230
    %v2391 = vunpack.c.l.b16 %v231
    %v2392 = vunpack.c.h.b16 %v231
    %v2393 = vunpack.c.l.b16 %v232
    %v2394 = vunpack.c.h.b16 %v232
    %v2395 = vunpack.c.l.b16 %v233
    %v2396 = vunpack.c.h.b16 %v233
    %v2397 = vunpack.c.l.b16 %v234
    %v2398 = vunpack.c.h.b16 %v234
    %v2399 = vunpack.c.l.b16 %v235
    %v2400 = vunpack.c.h.b16 %v235
    %v2401 = vunpack.c.l.b16 %v236
    %v2402 = vunpack.c.h.b16 %v236
    %v2403 = vunpack.c.l.b16 %v237
    %v2404 = vunpack.c.h.b16 %v237
    %v2405 = vunpack.c.l.b16 %v238
    %v2406 = vunpack.c.h.b16 %v238
    %v2407 = vunpack.c.l.b16 %v239
    %v2408 = vunpack.c.h.b16 %v239
    %v2409 = vunpack.c.l.b16 %v240
    %v2410 = vunpack.c.h.b16 %v240
    %v2411 = vunpack.c.l.b16 %v241
    %v2412 = vunpack.c.h.b16 %v241
    %v2413 = vunpack.c.l.b16 %v242
    %v2414 = vunpack.c.h.b16 %v242
    %v2415 = vunpack.c.l.b16 %v243
    %v2416 = vunpack.c.h.b16 %v243
    %v2417 = vunpack.c.l.b16 %v244
    %v2418 = vunpack.c.h.b16 %v244
    %v2419 = vunpack.c.l.b16 %v245
    %v2420 = vunpack.c.h.b16 %v245
    %v2421 = vunpack.c.l.b16 %v246
    %v2422 = vunpack.c.h.b16 %v246
    %v2423 = vunpack.c.l.b16 %v247
    %v2424 = vunpack.c.h.b16 %v247
    %v2425 = vunpack.c.l.b16 %v248
    %v2426 = vunpack.c.h.b16 %v248
    %v2427 = vunpack.c.l.b16 %v249
    %v2428 = vunpack.c.h.b16 %v249
    %v2429 = vunpack.c.l.b16 %v250
    %v2430 = vunpack.c.h.b16 %v250
    %v2431 = vunpack.c.l.b16 %v251
    %v2432 = vunpack.c.h.b16 %v251
    %v2433 = vunpack.c.l.b16 %v252
    %v2434 = vunpack.c.h.b16 %v252
    %v2435 = vunpack.c.l.b16 %v253
    %v2436 = vunpack.c.h.b16 %v253
    %v2437 = vunpack.c.l.b16 %v254
    %v2438 = vunpack.c.h.b16 %v254
    %v2439 = vunpack.c.l.b16 %v255
    %v2440 = vunpack.c.h.b16 %v255
    %v2441 = vunpack.c.l.b16 %v256
    %v2442 = vunpack.c.h.b16 %v256
    %v2443 = vunpack.c.l.b16 %v257
    %v2444 = vunpack.c.h.b16 %v257
    %v2445 = vunpack.c.l.b16 %v258
    %v2446 = vunpack.c.h.b16 %v258
    %v2447 = vunpack.c.l.b16 %v259
    %v2448 = vunpack.c.h.b16 %v259
    %v2449 = vunpack.c.l.b16 %v260
    %v2450 = vunpack.c.h.b16 %v260
    %v2451 = vunpack.c.l.b16 %v261
    %v2452 = vunpack.c.h.b16 %v261
    %v2453 = vunpack.c.l.b16 %v262
    %v2454 = vunpack.c.h.b16 %v262
    %v2455 = vunpack.c.l.b16 %v263
    %v2456 = vunpack.c.h.b16 %v263
    %v2457 = vunpack.c.l.b16 %v264
    %v2458 = vunpack.c.h.b16 %v264
    %v2459 = vunpack.c.l.b16 %v265
    %v2460 = vunpack.c.h.b16 %v265
    %v2461 = vunpack.c.l.b16 %v266
    %v2462 = vunpack.c.h.b16 %v266
    %v2463 = vunpack.c.l.b16 %v267
    %v2464 = vunpack.c.h.b16 %v267
    %v2465 = vunpack.c.l.b16 %v268
    %v2466 = vunpack.c.h.b16 %v268
    %v2467 = vunpack.c.l.b16 %v269
    %v2468 = vunpack.c.h.b16 %v269
    %v2469 = vunpack.c.l.b16 %v270
    %v2470 = vunpack.c.h.b16 %v270
    %v2471 = vunpack.c.l.b16 %v271
    %v2472 = vunpack.c.h.b16 %v271
    %v2473 = vunpack.c.l.b16 %v272
    %v2474 = vunpack.c.h.b16 %v272
    %v2475 = vunpack.c.l.b16 %v273
    %v2476 = vunpack.c.h.b16 %v273
    %v2477 = vunpack.c.l.b16 %v274
    %v2478 = vunpack.c.h.b16 %v274
    %v2479 = vunpack.c.l.b16 %v275
    %v2480 = vunpack.c.h.b16 %v275
    %v2481 = vunpack.c.l.b16 %v276
    %v2482 = vunpack.c.h.b16 %v276
    %v2483 = vunpack.c.l.b16 %v277
    %v2484 = vunpack.c.h.b16 %v277
    %v2485 = vunpack.c.l.b16 %v278
    %v2486 = vunpack.c.h.b16 %v278
    %v2487 = vunpack.c.l.b16 %v279
    %v2488 = vunpack.c.h.b16 %v279
    %v2489 = vunpack.c.l.b16 %v280
    %v2490 = vunpack.c.h.b16 %v280
    %v2491 = vunpack.c.l.b16 %v281
    %v2492 = vunpack.c.h.b16 %v281
    %v2493 = vunpack.c.l.b16 %v282
    %v2494 = vunpack.c.h.b16 %v282
    %v2495 = vunpack.c.l.b16 %v283
    %v2496 = vunpack.c.h.b16 %v283
    %v2497 = vunpack.c.l.b16 %v284
    %v2498 = vunpack.c.h.b16 %v284
    %v2499 = vunpack.c.l.b16 %v285
    %v2500 = vunpack.c.h.b16 %v285
    %v2501 = vunpack.c.l.b16 %v286
    %v2502 = vunpack.c.h.b16 %v286
    %v2503 = vunpack.c.l.b16 %v287
    %v2504 = vunpack.c.h.b16 %v287
    %v2505 = vunpack.c.l.b16 %v288
    %v2506 = vunpack.c.h.b16 %v288
    %v2507 = vunpack.c.l.b16 %v289
    %v2508 = vunpack.c.h.b16 %v289
    %v2509 = vunpack.c.l.b16 %v290
    %v2510 = vunpack.c.h.b16 %v290
    %v2511 = vunpack.c.l.b16 %v291
    %v2512 = vunpack.c.h.b16 %v291
    %v2513 = vunpack.c.l.b16 %v292
    %v2514 = vunpack.c.h.b16 %v292
    %v2515 = vunpack.c.l.b16 %v293
    %v2516 = vunpack.c.h.b16 %v293
    %v2517 = vunpack.c.l.b16 %v294
    %v2518 = vunpack.c.h.b16 %v294
    %v2519 = vunpack.c.l.b16 %v295
    %v2520 = vunpack.c.h.b16 %v295
    %v2521 = vunpack.c.l.b16 %v296
    %v2522 = vunpack.c.h.b16 %v296
    %v2523 = vunpack.c.l.b16 %v297
    %v2524 = vunpack.c.h.b16 %v297
    %v2525 = vunpack.c.l.b16 %v298
    %v2526 = vunpack.c.h.b16 %v298
    %v2527 = vunpack.c.l.b16 %v299
    %v2528 = vunpack.c.h.b16 %v299
    %v2529 = vunpack.c.l.b16 %v300
    %v2530 = vunpack.c.h.b16 %v300
    %v2531 = vunpack.c.l.b16 %v301
    %v2532 = vunpack.c.h.b16 %v301
    %v2533 = vunpack.c.l.b16 %v302
    %v2534 = vunpack.c.h.b16 %v302
    %v2535 = vunpack.c.l.b16 %v303
    %v2536 = vunpack.c.h.b16 %v303
    %v2537 = vunpack.c.l.b16 %v304
    %v2538 = vunpack.c.h.b16 %v304
    %v2539 = vunpack.c.l.b16 %v305
    %v2540 = vunpack.c.h.b16 %v305
    %v2541 = vunpack.c.l.b16 %v306
    %v2542 = vunpack.c.h.b16 %v306
    %v2543 = vunpack.c.l.b16 %v307
    %v2544 = vunpack.c.h.b16 %v307
    %v2545 = vunpack.c.l.b16 %v308
    %v2546 = vunpack.c.h.b16 %v308
    %v2547 = vunpack.c.l.b16 %v309
    %v2548 = vunpack.c.h.b16 %v309
    %v2549 = vunpack.c.l.b16 %v310
    %v2550 = vunpack.c.h.b16 %v310
    %v2551 = vunpack.c.l.b16 %v311
    %v2552 = vunpack.c.h.b16 %v311
    %v2553 = vunpack.c.l.b16 %v312
    %v2554 = vunpack.c.h.b16 %v312
    %v2555 = vunpack.c.l.b16 %v313
    %v2556 = vunpack.c.h.b16 %v313
    %v2557 = vunpack.c.l.b16 %v314
    %v2558 = vunpack.c.h.b16 %v314
    %v2559 = vunpack.c.l.b16 %v315
    %v2560 = vunpack.c.h.b16 %v315
    %v2561 = vunpack.c.l.b16 %v316
    %v2562 = vunpack.c.h.b16 %v316
    %v2563 = vunpack.c.l.b16 %v317
    %v2564 = vunpack.c.h.b16 %v317
    %v2565 = vunpack.c.l.b16 %v318
    %v2566 = vunpack.c.h.b16 %v318
    %v2567 = vunpack.c.l.b16 %v319
    %v2568 = vunpack.c.h.b16 %v319
    %v2569 = vunpack.c.l.b16 %v320
    %v2570 = vunpack.c.h.b16 %v320
    %v2571 = vunpack.c.l.b16 %v321
    %v2572 = vunpack.c.h.b16 %v321
    %v2573 = vunpack.c.l.b16 %v322
    %v2574 = vunpack.c.h.b16 %v322
    %v2575 = vunpack.c.l.b16 %v323
    %v2576 = vunpack.c.h.b16 %v323
    %v2577 = vunpack.c.l.b16 %v324
    %v2578 = vunpack.c.h.b16 %v324
    %v2579 = vunpack.c.l.b16 %v325
    %v2580 = vunpack.c.h.b16 %v325
    %v2581 = vunpack.c.l.b16 %v326
    %v2582 = vunpack.c.h.b16 %v326
    %v2583 = vunpack.c.l.b16 %v327
    %v2584 = vunpack.c.h.b16 %v327
    %v2585 = vunpack.c.l.b16 %v328
    %v2586 = vunpack.c.h.b16 %v328
    %v2587 = vunpack.c.l.b16 %v329
    %v2588 = vunpack.c.h.b16 %v329
    %v2589 = vunpack.c.l.b16 %v330
    %v2590 = vunpack.c.h.b16 %v330
    %v2591 = vunpack.c.l.b16 %v331
    %v2592 = vunpack.c.h.b16 %v331
    %v2593 = vunpack.c.l.b16 %v332
    %v2594 = vunpack.c.h.b16 %v332
    %v2595 = vunpack.c.l.b16 %v333
    %v2596 = vunpack.c.h.b16 %v333
    %v2597 = vunpack.c.l.b16 %v334
    %v2598 = vunpack.c.h.b16 %v334
    %v2599 = vunpack.c.l.b16 %v335
    %v2600 = vunpack.c.h.b16 %v335
    %v2601 = vunpack.c.l.b16 %v336
    %v2602 = vunpack.c.h.b16 %v336
    %v2603 = vunpack.c.l.b16 %v337
    %v2604 = vunpack.c.h.b16 %v337
    %v2605 = vunpack.c.l.b16 %v338
    %v2606 = vunpack.c.h.b16 %v338
    %v2607 = vunpack.c.l.b16 %v339
    %v2608 = vunpack.c.h.b16 %v339
    %v2609 = vunpack.c.l.b16 %v340
    %v2610 = vunpack.c.h.b16 %v340
    %v2611 = vunpack.c.l.b16 %v341
    %v2612 = vunpack.c.h.b16 %v341
    %v2613 = vunpack.c.l.b16 %v342
    %v2614 = vunpack.c.h.b16 %v342
    %v2615 = vunpack.c.l.b16 %v343
    %v2616 = vunpack.c.h.b16 %v343
    %v2617 = vunpack.c.l.b16 %v344
    %v2618 = vunpack.c.h.b16 %v344
    %v2619 = vunpack.c.l.b16 %v345
    %v2620 = vunpack.c.h.b16 %v345
    %v2621 = vunpack.c.l.b16 %v346
    %v2622 = vunpack.c.h.b16 %v346
    %v2623 = vunpack.c.l.b16 %v347
    %v2624 = vunpack.c.h.b16 %v347
    %v2625 = vunpack.c.l.b16 %v348
    %v2626 = vunpack.c.h.b16 %v348
    %v2627 = vunpack.c.l.b16 %v349
    %v2628 = vunpack.c.h.b16 %v349
    %v2629 = vunpack.c.l.b16 %v350
    %v2630 = vunpack.c.h.b16 %v350
    %v2631 = vunpack.c.l.b16 %v351
    %v2632 = vunpack.c.h.b16 %v351
    %v2633 = vunpack.c.l.b16 %v352
    %v2634 = vunpack.c.h.b16 %v352
    %v2635 = vunpack.c.l.b16 %v353
    %v2636 = vunpack.c.h.b16 %v353
    %v2637 = vunpack.c.l.b16 %v354
    %v2638 = vunpack.c.h.b16 %v354
    %v2639 = vunpack.c.l.b16 %v355
    %v2640 = vunpack.c.h.b16 %v355
    %v2641 = vunpack.c.l.b16 %v356
    %v2642 = vunpack.c.h.b16 %v356
    %v2643 = vunpack.c.l.b16 %v357
    %v2644 = vunpack.c.h.b16 %v357
    %v2645 = vunpack.c.l.b16 %v358
    %v2646 = vunpack.c.h.b16 %v358
    %v2647 = vunpack.c.l.b16 %v359
    %v2648 = vunpack.c.h.b16 %v359
    %v2649 = vunpack.c.l.b16 %v360
    %v2650 = vunpack.c.h.b16 %v360
    %v2651 = vunpack.c.l.b16 %v361
    %v2652 = vunpack.c.h.b16 %v361
    %v2653 = vunpack.c.l.b16 %v362
    %v2654 = vunpack.c.h.b16 %v362
    %v2655 = vunpack.c.l.b16 %v363
    %v2656 = vunpack.c.h.b16 %v363
    %v2657 = vunpack.c.l.b16 %v364
    %v2658 = vunpack.c.h.b16 %v364
    %v2659 = vunpack.c.l.b16 %v365
    %v2660 = vunpack.c.h.b16 %v365
    %v2661 = vunpack.c.l.b16 %v366
    %v2662 = vunpack.c.h.b16 %v366
    %v2663 = vunpack.c.l.b16 %v367
    %v2664 = vunpack.c.h.b16 %v367
    %v2665 = vunpack.c.l.b16 %v368
    %v2666 = vunpack.c.h.b16 %v368
    %v2667 = vunpack.c.l.b16 %v369
    %v2668 = vunpack.c.h.b16 %v369
    %v2669 = vunpack.c.l.b16 %v370
    %v2670 = vunpack.c.h.b16 %v370
    %v2671 = vunpack.c.l.b16 %v371
    %v2672 = vunpack.c.h.b16 %v371
    %v2673 = vunpack.c.l.b16 %v372
    %v2674 = vunpack.c.h.b16 %v372
    %v2675 = vunpack.c.l.b16 %v373
    %v2676 = vunpack.c.h.b16 %v373
    %v2677 = vunpack.c.l.b16 %v374
    %v2678 = vunpack.c.h.b16 %v374
    %v2679 = vunpack.c.l.b16 %v375
    %v2680 = vunpack.c.h.b16 %v375
    %v2681 = vunpack.c.l.b16 %v376
    %v2682 = vunpack.c.h.b16 %v376
    %v2683 = vunpack.c.l.b16 %v377
    %v2684 = vunpack.c.h.b16 %v377
    %v2685 = vunpack.c.l.b16 %v378
    %v2686 = vunpack.c.h.b16 %v378
    %v2687 = vunpack.c.l.b16 %v379
    %v2688 = vunpack.c.h.b16 %v379
    %v2689 = vunpack.c.l.b16 %v380
    %v2690 = vunpack.c.h.b16 %v380
    %v2691 = vunpack.c.l.b16 %v381
    %v2692 = vunpack.c.h.b16 %v381
    %v2693 = vunpack.c.l.b16 %v382
    %v2694 = vunpack.c.h.b16 %v382
    %v2695 = vunpack.c.l.b16 %v383
    %v2696 = vunpack.c.h.b16 %v383
    %v2697 = vunpack.c.l.b16 %v384
    %v2698 = vunpack.c.h.b16 %v384
    %v2699 = vunpack.c.l.b16 %v385
    %v2700 = vunpack.c.h.b16 %v385
    %v2701 = vunpack.c.l.b16 %v386
    %v2702 = vunpack.c.h.b16 %v386
    %v2703 = vunpack.c.l.b16 %v387
    %v2704 = vunpack.c.h.b16 %v387
    %v2705 = vunpack.c.l.b16 %v388
    %v2706 = vunpack.c.h.b16 %v388
    %v2707 = vunpack.c.l.b16 %v389
    %v2708 = vunpack.c.h.b16 %v389
    %v2709 = vunpack.c.l.b16 %v390
    %v2710 = vunpack.c.h.b16 %v390
    %v2711 = vunpack.c.l.b16 %v391
    %v2712 = vunpack.c.h.b16 %v391
    %v2713 = vunpack.c.l.b16 %v392
    %v2714 = vunpack.c.h.b16 %v392
    %v2715 = vunpack.c.l.b16 %v393
    %v2716 = vunpack.c.h.b16 %v393
    %v2717 = vunpack.c.l.b16 %v394
    %v2718 = vunpack.c.h.b16 %v394
    %v2719 = vunpack.c.l.b16 %v395
    %v2720 = vunpack.c.h.b16 %v395
    %v2721 = vunpack.c.l.b16 %v396
    %v2722 = vunpack.c.h.b16 %v396
    %v2723 = vunpack.c.l.b16 %v397
    %v2724 = vunpack.c.h.b16 %v397
    %v2725 = vunpack.c.l.b16 %v398
    %v2726 = vunpack.c.h.b16 %v398
    %v2727 = vunpack.c.l.b16 %v399
    %v2728 = vunpack.c.h.b16 %v399
    %v2729 = vunpack.c.l.b16 %v400
    %v2730 = vunpack.c.h.b16 %v400
    %v2731 = vunpack.c.l.b16 %v401
    %v2732 = vunpack.c.h.b16 %v401
    %v2733 = vunpack.c.l.b16 %v402
    %v2734 = vunpack.c.h.b16 %v402
    %v2735 = vunpack.c.l.b16 %v403
    %v2736 = vunpack.c.h.b16 %v403
    %v2737 = vunpack.c.l.b16 %v404
    %v2738 = vunpack.c.h.b16 %v404
    %v2739 = vunpack.c.l.b16 %v405
    %v2740 = vunpack.c.h.b16 %v405
    %v2741 = vunpack.c.l.b16 %v406
    %v2742 = vunpack.c.h.b16 %v406
    %v2743 = vunpack.c.l.b16 %v407
    %v2744 = vunpack.c.h.b16 %v407
    %v2745 = vunpack.c.l.b16 %v408
    %v2746 = vunpack.c.h.b16 %v408
    %v2747 = vunpack.c.l.b16 %v409
    %v2748 = vunpack.c.h.b16 %v409
    %v2749 = vunpack.c.l.b16 %v410
    %v2750 = vunpack.c.h.b16 %v410
    %v2751 = vunpack.c.l.b16 %v411
    %v2752 = vunpack.c.h.b16 %v411
    %v2753 = vunpack.c.l.b16 %v412
    %v2754 = vunpack.c.h.b16 %v412
    %v2755 = vunpack.c.l.b16 %v413
    %v2756 = vunpack.c.h.b16 %v413
    %v2757 = vunpack.c.l.b16 %v414
    %v2758 = vunpack.c.h.b16 %v414
    %v2759 = vunpack.c.l.b16 %v415
    %v2760 = vunpack.c.h.b16 %v415
    %v2761 = vunpack.c.l.b16 %v416
    %v2762 = vunpack.c.h.b16 %v416
    %v2763 = vunpack.c.l.b16 %v417
    %v2764 = vunpack.c.h.b16 %v417
    %v2765 = vunpack.c.l.b16 %v418
    %v2766 = vunpack.c.h.b16 %v418
    %v2767 = vunpack.c.l.b16 %v419
    %v2768 = vunpack.c.h.b16 %v419
    %v2769 = vunpack.c.l.b16 %v420
    %v2770 = vunpack.c.h.b16 %v420
    %v2771 = vunpack.c.l.b16 %v421
    %v2772 = vunpack.c.h.b16 %v421
    %v2773 = vunpack.c.l.b16 %v422
    %v2774 = vunpack.c.h.b16 %v422
    %v2775 = vunpack.c.l.b16 %v423
    %v2776 = vunpack.c.h.b16 %v423
    %v2777 = vunpack.c.l.b16 %v424
    %v2778 = vunpack.c.h.b16 %v424
    %v2779 = vunpack.c.l.b16 %v425
    %v2780 = vunpack.c.h.b16 %v425
    %v2781 = vunpack.c.l.b16 %v426
    %v2782 = vunpack.c.h.b16 %v426
    %v2783 = vunpack.c.l.b16 %v427
    %v2784 = vunpack.c.h.b16 %v427
    %v2785 = vunpack.c.l.b16 %v428
    %v2786 = vunpack.c.h.b16 %v428
    %v2787 = vunpack.c.l.b16 %v429
    %v2788 = vunpack.c.h.b16 %v429
    %v2789 = vunpack.c.l.b16 %v430
    %v2790 = vunpack.c.h.b16 %v430
    %v2791 = vunpack.c.l.b16 %v431
    %v2792 = vunpack.c.h.b16 %v431
    %v2793 = vunpack.c.l.b16 %v432
    %v2794 = vunpack.c.h.b16 %v432
    %v2795 = vunpack.c.l.b16 %v433
    %v2796 = vunpack.c.h.b16 %v433
    %v2797 = vunpack.c.l.b16 %v434
    %v2798 = vunpack.c.h.b16 %v434
    %v2799 = vunpack.c.l.b16 %v435
    %v2800 = vunpack.c.h.b16 %v435
    %v2801 = vunpack.c.l.b16 %v436
    %v2802 = vunpack.c.h.b16 %v436
    %v2803 = vunpack.c.l.b16 %v437
    %v2804 = vunpack.c.h.b16 %v437
    %v2805 = vunpack.c.l.b16 %v438
    %v2806 = vunpack.c.h.b16 %v438
    %v2807 = vunpack.c.l.b16 %v439
    %v2808 = vunpack.c.h.b16 %v439
    %v2809 = vunpack.c.l.b16 %v440
    %v2810 = vunpack.c.h.b16 %v440
    %v2811 = vunpack.c.l.b16 %v441
    %v2812 = vunpack.c.h.b16 %v441
    %v2813 = vunpack.c.l.b16 %v442
    %v2814 = vunpack.c.h.b16 %v442
    %v2815 = vunpack.c.l.b16 %v443
    %v2816 = vunpack.c.h.b16 %v443
    %v2817 = vunpack.c.l.b16 %v444
    %v2818 = vunpack.c.h.b16 %v444
    %v2819 = vunpack.c.l.b16 %v445
    %v2820 = vunpack.c.h.b16 %v445
    %v2821 = vunpack.c.l.b16 %v446
    %v2822 = vunpack.c.h.b16 %v446
    %v2823 = vunpack.c.l.b16 %v447
    %v2824 = vunpack.c.h.b16 %v447
    %v2825 = vunpack.c.l.b16 %v448
    %v2826 = vunpack.c.h.b16 %v448
    %v2827 = vunpack.c.l.b16 %v449
    %v2828 = vunpack.c.h.b16 %v449
    %v2829 = vunpack.c.l.b16 %v450
    %v2830 = vunpack.c.h.b16 %v450
    %v2831 = vunpack.c.l.b16 %v451
    %v2832 = vunpack.c.h.b16 %v451
    %v2833 = vunpack.c.l.b16 %v452
    %v2834 = vunpack.c.h.b16 %v452
    %v2835 = vunpack.c.l.b16 %v453
    %v2836 = vunpack.c.h.b16 %v453
    %v2837 = vunpack.c.l.b16 %v454
    %v2838 = vunpack.c.h.b16 %v454
    %v2839 = vunpack.c.l.b16 %v455
    %v2840 = vunpack.c.h.b16 %v455
    %v2841 = vunpack.c.l.b16 %v456
    %v2842 = vunpack.c.h.b16 %v456
    %v2843 = vunpack.c.l.b16 %v457
    %v2844 = vunpack.c.h.b16 %v457
    %v2845 = vunpack.c.l.b16 %v458
    %v2846 = vunpack.c.h.b16 %v458
    %v2847 = vunpack.c.l.b16 %v459
    %v2848 = vunpack.c.h.b16 %v459
    %v2849 = vunpack.c.l.b16 %v460
    %v2850 = vunpack.c.h.b16 %v460
    %v2851 = vunpack.c.l.b16 %v461
    %v2852 = vunpack.c.h.b16 %v461
    %v2853 = vunpack.c.l.b16 %v462
    %v2854 = vunpack.c.h.b16 %v462
    %v2855 = vunpack.c.l.b16 %v463
    %v2856 = vunpack.c.h.b16 %v463
    %v2857 = vunpack.c.l.b16 %v464
    %v2858 = vunpack.c.h.b16 %v464
    %v2859 = vunpack.c.l.b16 %v465
    %v2860 = vunpack.c.h.b16 %v465
    %v2861 = vunpack.c.l.b16 %v466
    %v2862 = vunpack.c.h.b16 %v466
    %v2863 = vunpack.c.l.b16 %v467
    %v2864 = vunpack.c.h.b16 %v467
    %v2865 = vunpack.c.l.b16 %v468
    %v2866 = vunpack.c.h.b16 %v468
    %v2867 = vunpack.c.l.b16 %v469
    %v2868 = vunpack.c.h.b16 %v469
    %v2869 = vunpack.c.l.b16 %v470
    %v2870 = vunpack.c.h.b16 %v470
    %v2871 = vunpack.c.l.b16 %v471
    %v2872 = vunpack.c.h.b16 %v471
    %v2873 = vunpack.c.l.b16 %v472
    %v2874 = vunpack.c.h.b16 %v472
    %v2875 = vunpack.c.l.b16 %v473
    %v2876 = vunpack.c.h.b16 %v473
    %v2877 = vunpack.c.l.b16 %v474
    %v2878 = vunpack.c.h.b16 %v474
    %v2879 = vunpack.c.l.b16 %v475
    %v2880 = vunpack.c.h.b16 %v475
    %v2881 = vunpack.c.l.b16 %v476
    %v2882 = vunpack.c.h.b16 %v476
    %v2883 = vunpack.c.l.b16 %v477
    %v2884 = vunpack.c.h.b16 %v477
    %v2885 = vunpack.c.l.b16 %v478
    %v2886 = vunpack.c.h.b16 %v478
    %v2887 = vunpack.c.l.b16 %v479
    %v2888 = vunpack.c.h.b16 %v479
    %v2889 = vunpack.c.l.b16 %v480
    %v2890 = vunpack.c.h.b16 %v480
    %v2891 = vunpack.c.l.b16 %v481
    %v2892 = vunpack.c.h.b16 %v481
    %v2893 = vunpack.c.l.b16 %v482
    %v2894 = vunpack.c.h.b16 %v482
    %v2895 = vunpack.c.l.b16 %v483
    %v2896 = vunpack.c.h.b16 %v483
    %v2897 = vunpack.c.l.b16 %v484
    %v2898 = vunpack.c.h.b16 %v484
    %v2899 = vunpack.c.l.b16 %v485
    %v2900 = vunpack.c.h.b16 %v485
    %v2901 = vunpack.c.l.b16 %v486
    %v2902 = vunpack.c.h.b16 %v486
    %v2903 = vunpack.c.l.b16 %v487
    %v2904 = vunpack.c.h.b16 %v487
    %v2905 = vunpack.c.l.b16 %v488
    %v2906 = vunpack.c.h.b16 %v488
    %v2907 = vunpack.c.l.b16 %v489
    %v2908 = vunpack.c.h.b16 %v489
    %v2909 = vunpack.c.l.b16 %v490
    %v2910 = vunpack.c.h.b16 %v490
    %v2911 = vunpack.c.l.b16 %v491
    %v2912 = vunpack.c.h.b16 %v491
    %v2913 = vunpack.c.l.b16 %v492
    %v2914 = vunpack.c.h.b16 %v492
    %v2915 = vunpack.c.l.b16 %v493
    %v2916 = vunpack.c.h.b16 %v493
    %v2917 = vunpack.c.l.b16 %v494
    %v2918 = vunpack.c.h.b16 %v494
    %v2919 = vunpack.c.l.b16 %v495
    %v2920 = vunpack.c.h.b16 %v495
    %v2921 = vunpack.c.l.b16 %v496
    %v2922 = vunpack.c.h.b16 %v496
    %v2923 = vunpack.c.l.b16 %v497
    %v2924 = vunpack.c.h.b16 %v497
    %v2925 = vunpack.c.l.b16 %v498
    %v2926 = vunpack.c.h.b16 %v498
    %v2927 = vunpack.c.l.b16 %v499
    %v2928 = vunpack.c.h.b16 %v499
    %v2929 = vunpack.c.l.b16 %v500
    %v2930 = vunpack.c.h.b16 %v500
    %v2931 = vunpack.c.l.b16 %v501
    %v2932 = vunpack.c.h.b16 %v501
    %v2933 = vunpack.c.l.b16 %v502
    %v2934 = vunpack.c.h.b16 %v502
    %v2935 = vunpack.c.l.b16 %v503
    %v2936 = vunpack.c.h.b16 %v503
    %v2937 = vunpack.c.l.b16 %v504
    %v2938 = vunpack.c.h.b16 %v504
    %v2939 = vunpack.c.l.b16 %v505
    %v2940 = vunpack.c.h.b16 %v505
    %v2941 = vunpack.c.l.b16 %v506
    %v2942 = vunpack.c.h.b16 %v506
    %v2943 = vunpack.c.l.b16 %v507
    %v2944 = vunpack.c.h.b16 %v507
    %v2945 = vunpack.c.l.b16 %v508
    %v2946 = vunpack.c.h.b16 %v508
    %v2947 = vunpack.c.l.b16 %v509
    %v2948 = vunpack.c.h.b16 %v509
    %v2949 = vunpack.c.l.b16 %v510
    %v2950 = vunpack.c.h.b16 %v510
    %v2951 = vunpack.c.l.b16 %v511
    %v2952 = vunpack.c.h.b16 %v511
    %v2953 = vunpack.c.l.b16 %v512
    %v2954 = vunpack.c.h.b16 %v512
    %v2955 = vunpack.c.l.b16 %v513
    %v2956 = vunpack.c.h.b16 %v513
    %v2957 = vunpack.c.l.b16 %v514
    %v2958 = vunpack.c.h.b16 %v514
    %v2959 = vunpack.c.l.b16 %v515
    %v2960 = vunpack.c.h.b16 %v515
    %v2961 = vunpack.c.l.b16 %v516
    %v2962 = vunpack.c.h.b16 %v516
    %v2963 = vunpack.c.l.b16 %v517
    %v2964 = vunpack.c.h.b16 %v517
    %v2965 = vunpack.c.l.b16 %v518
    %v2966 = vunpack.c.h.b16 %v518
    %v2967 = vunpack.c.l.b16 %v519
    %v2968 = vunpack.c.h.b16 %v519
    %v2969 = vunpack.c.l.b16 %v520
    %v2970 = vunpack.c.h.b16 %v520
    %v2971 = vunpack.c.l.b16 %v521
    %v2972 = vunpack.c.h.b16 %v521
    %v2973 = vunpack.c.l.b16 %v522
    %v2974 = vunpack.c.h.b16 %v522
    %v2975 = vunpack.c.l.b16 %v523
    %v2976 = vunpack.c.h.b16 %v523
    %v2977 = vunpack.c.l.b16 %v524
    %v2978 = vunpack.c.h.b16 %v524
    %v2979 = vunpack.c.l.b16 %v525
    %v2980 = vunpack.c.h.b16 %v525
    %v2981 = vunpack.c.l.b16 %v526
    %v2982 = vunpack.c.h.b16 %v526
    %v2983 = vunpack.c.l.b16 %v527
    %v2984 = vunpack.c.h.b16 %v527
    %v2985 = vunpack.c.l.b16 %v528
    %v2986 = vunpack.c.h.b16 %v528
    %v2987 = vunpack.c.l.b16 %v529
    %v2988 = vunpack.c.h.b16 %v529
    %v2989 = vunpack.c.l.b16 %v530
    %v2990 = vunpack.c.h.b16 %v530
    %v2991 = vunpack.c.l.b16 %v531
    %v2992 = vunpack.c.h.b16 %v531
    %v2993 = vunpack.c.l.b16 %v532
    %v2994 = vunpack.c.h.b16 %v532
    %v2995 = vunpack.c.l.b16 %v533
    %v2996 = vunpack.c.h.b16 %v533
    %v2997 = vunpack.c.l.b16 %v534
    %v2998 = vunpack.c.h.b16 %v534
    %v2999 = vunpack.c.l.b16 %v535
    %v3000 = vunpack.c.h.b16 %v535
    %v3001 = vunpack.c.l.b16 %v536
    %v3002 = vunpack.c.h.b16 %v536
    %v3003 = vunpack.c.l.b16 %v537
    %v3004 = vunpack.c.h.b16 %v537
    %v3005 = vunpack.c.l.b16 %v538
    %v3006 = vunpack.c.h.b16 %v538
    %v3007 = vunpack.c.l.b16 %v539
    %v3008 = vunpack.c.h.b16 %v539
    %v3009 = vunpack.c.l.b16 %v540
    %v3010 = vunpack.c.h.b16 %v540
    %v3011 = vunpack.c.l.b16 %v541
    %v3012 = vunpack.c.h.b16 %v541
    %v3013 = vunpack.c.l.b16 %v542
    %v3014 = vunpack.c.h.b16 %v542
    %v3015 = vunpack.c.l.b16 %v543
    %v3016 = vunpack.c.h.b16 %v543
    %v3017 = vunpack.c.l.b16 %v544
    %v3018 = vunpack.c.h.b16 %v544
    %v3019 = vunpack.c.l.b16 %v545
    %v3020 = vunpack.c.h.b16 %v545
    %v3021 = vunpack.c.l.b16 %v546
    %v3022 = vunpack.c.h.b16 %v546
    %v3023 = vunpack.c.l.b16 %v547
    %v3024 = vunpack.c.h.b16 %v547
    %v3025 = vunpack.c.l.b16 %v548
    %v3026 = vunpack.c.h.b16 %v548
    %v3027 = vunpack.c.l.b16 %v549
    %v3028 = vunpack.c.h.b16 %v549
    %v3029 = vunpack.c.l.b16 %v550
    %v3030 = vunpack.c.h.b16 %v550
    %v3031 = vunpack.c.l.b16 %v551
    %v3032 = vunpack.c.h.b16 %v551
    %v3033 = vunpack.c.l.b16 %v552
    %v3034 = vunpack.c.h.b16 %v552
    %v3035 = vunpack.c.l.b16 %v553
    %v3036 = vunpack.c.h.b16 %v553
    %v3037 = vunpack.c.l.b16 %v554
    %v3038 = vunpack.c.h.b16 %v554
    %v3039 = vunpack.c.l.b16 %v555
    %v3040 = vunpack.c.h.b16 %v555
    %v3041 = vunpack.c.l.b16 %v556
    %v3042 = vunpack.c.h.b16 %v556
    %v3043 = vunpack.c.l.b16 %v557
    %v3044 = vunpack.c.h.b16 %v557
    %v3045 = vunpack.c.l.b16 %v558
    %v3046 = vunpack.c.h.b16 %v558
    %v3047 = vunpack.c.l.b16 %v559
    %v3048 = vunpack.c.h.b16 %v559
    %v3049 = vunpack.c.l.b16 %v560
    %v3050 = vunpack.c.h.b16 %v560
    %v3051 = vunpack.c.l.b16 %v561
    %v3052 = vunpack.c.h.b16 %v561
    %v3053 = vunpack.c.l.b16 %v562
    %v3054 = vunpack.c.h.b16 %v562
    %v3055 = vunpack.c.l.b16 %v563
    %v3056 = vunpack.c.h.b16 %v563
    %v3057 = vunpack.c.l.b16 %v564
    %v3058 = vunpack.c.h.b16 %v564
    %v3059 = vunpack.c.l.b16 %v565
    %v3060 = vunpack.c.h.b16 %v565
    %v3061 = vunpack.c.l.b16 %v566
    %v3062 = vunpack.c.h.b16 %v566
    %v3063 = vunpack.c.l.b16 %v567
    %v3064 = vunpack.c.h.b16 %v567
    %v3065 = vunpack.c.l.b16 %v568
    %v3066 = vunpack.c.h.b16 %v568
    %v3067 = vunpack.c.l.b16 %v569
    %v3068 = vunpack.c.h.b16 %v569
    %v3069 = vunpack.c.l.b16 %v570
    %v3070 = vunpack.c.h.b16 %v570
    %v3071 = vunpack.c.l.b16 %v571
    %v3072 = vunpack.c.h.b16 %v571
    %v3073 = vunpack.c.l.b16 %v572
    %v3074 = vunpack.c.h.b16 %v572
    %v3075 = vunpack.c.l.b16 %v573
    %v3076 = vunpack.c.h.b16 %v573
    %v3077 = vunpack.c.l.b16 %v574
    %v3078 = vunpack.c.h.b16 %v574
    %v3079 = vunpack.c.l.b16 %v575
    %v3080 = vunpack.c.h.b16 %v575
    %v3081 = vunpack.c.l.b16 %v576
    %v3082 = vunpack.c.h.b16 %v576
    %v3083 = vunpack.c.l.b16 %v577
    %v3084 = vunpack.c.h.b16 %v577
    %v3085 = vunpack.c.l.b16 %v578
    %v3086 = vunpack.c.h.b16 %v578
    %v3087 = vunpack.c.l.b16 %v579
    %v3088 = vunpack.c.h.b16 %v579
    %v3089 = vunpack.c.l.b16 %v580
    %v3090 = vunpack.c.h.b16 %v580
    %v3091 = vunpack.c.l.b16 %v581
    %v3092 = vunpack.c.h.b16 %v581
    %v3093 = vunpack.c.l.b16 %v582
    %v3094 = vunpack.c.h.b16 %v582
    %v3095 = vunpack.c.l.b16 %v583
    %v3096 = vunpack.c.h.b16 %v583
    %v3097 = vunpack.c.l.b16 %v584
    %v3098 = vunpack.c.h.b16 %v584
    %v3099 = vunpack.c.l.b16 %v585
    %v3100 = vunpack.c.h.b16 %v585
    %v3101 = vunpack.c.l.b16 %v586
    %v3102 = vunpack.c.h.b16 %v586
    %v3103 = vunpack.c.l.b16 %v587
    %v3104 = vunpack.c.h.b16 %v587
    %v3105 = vunpack.c.l.b16 %v588
    %v3106 = vunpack.c.h.b16 %v588
    %v3107 = vunpack.c.l.b16 %v589
    %v3108 = vunpack.c.h.b16 %v589
    %v3109 = vunpack.c.l.b16 %v590
    %v3110 = vunpack.c.h.b16 %v590
    %v3111 = vunpack.c.l.b16 %v591
    %v3112 = vunpack.c.h.b16 %v591
    %v3113 = vunpack.c.l.b16 %v592
    %v3114 = vunpack.c.h.b16 %v592
    %v3115 = vunpack.c.l.b16 %v593
    %v3116 = vunpack.c.h.b16 %v593
    %v3117 = vunpack.c.l.b16 %v594
    %v3118 = vunpack.c.h.b16 %v594
    %v3119 = vunpack.c.l.b16 %v595
    %v3120 = vunpack.c.h.b16 %v595
    %v3121 = vunpack.c.l.b16 %v596
    %v3122 = vunpack.c.h.b16 %v596
    %v3123 = vunpack.c.l.b16 %v597
    %v3124 = vunpack.c.h.b16 %v597
    %v3125 = vunpack.c.l.b16 %v598
    %v3126 = vunpack.c.h.b16 %v598
    %v3127 = vunpack.c.l.b16 %v599
    %v3128 = vunpack.c.h.b16 %v599
    %v3129 = vunpack.c.l.b16 %v600
    %v3130 = vunpack.c.h.b16 %v600
    %v3131 = vunpack.c.l.b16 %v601
    %v3132 = vunpack.c.h.b16 %v601
    %v3133 = vunpack.c.l.b16 %v602
    %v3134 = vunpack.c.h.b16 %v602
    %v3135 = vunpack.c.l.b16 %v603
    %v3136 = vunpack.c.h.b16 %v603
    %v3137 = vunpack.c.l.b16 %v604
    %v3138 = vunpack.c.h.b16 %v604
    %v3139 = vunpack.c.l.b16 %v605
    %v3140 = vunpack.c.h.b16 %v605
    %v3141 = vunpack.c.l.b16 %v606
    %v3142 = vunpack.c.h.b16 %v606
    %v3143 = vunpack.c.l.b16 %v607
    %v3144 = vunpack.c.h.b16 %v607
    %v3145 = vunpack.c.l.b16 %v608
    %v3146 = vunpack.c.h.b16 %v608
    %v3147 = vunpack.c.l.b16 %v609
    %v3148 = vunpack.c.h.b16 %v609
    %v3149 = vunpack.c.l.b16 %v610
    %v3150 = vunpack.c.h.b16 %v610
    %v3151 = vunpack.c.l.b16 %v611
    %v3152 = vunpack.c.h.b16 %v611
    %v3153 = vunpack.c.l.b16 %v612
    %v3154 = vunpack.c.h.b16 %v612
    %v3155 = vunpack.c.l.b16 %v613
    %v3156 = vunpack.c.h.b16 %v613
    %v3157 = vunpack.c.l.b16 %v614
    %v3158 = vunpack.c.h.b16 %v614
    %v3159 = vunpack.c.l.b16 %v615
    %v3160 = vunpack.c.h.b16 %v615
    %v3161 = vunpack.c.l.b16 %v616
    %v3162 = vunpack.c.h.b16 %v616
    %v3163 = vunpack.c.l.b16 %v617
    %v3164 = vunpack.c.h.b16 %v617
    %v3165 = vunpack.c.l.b16 %v618
    %v3166 = vunpack.c.h.b16 %v618
    %v3167 = vunpack.c.l.b16 %v619
    %v3168 = vunpack.c.h.b16 %v619
    %v3169 = vunpack.c.l.b16 %v620
    %v3170 = vunpack.c.h.b16 %v620
    %v3171 = vunpack.c.l.b16 %v621
    %v3172 = vunpack.c.h.b16 %v621
    %v3173 = vunpack.c.l.b16 %v622
    %v3174 = vunpack.c.h.b16 %v622
    %v3175 = vunpack.c.l.b16 %v623
    %v3176 = vunpack.c.h.b16 %v623
    %v3177 = vunpack.c.l.b16 %v624
    %v3178 = vunpack.c.h.b16 %v624
    %v3179 = vunpack.c.l.b16 %v625
    %v3180 = vunpack.c.h.b16 %v625
    %v3181 = vunpack.c.l.b16 %v626
    %v3182 = vunpack.c.h.b16 %v626
    %v3183 = vunpack.c.l.b16 %v627
    %v3184 = vunpack.c.h.b16 %v627
    %v3185 = vunpack.c.l.b16 %v628
    %v3186 = vunpack.c.h.b16 %v628
    %v3187 = vunpack.c.l.b16 %v629
    %v3188 = vunpack.c.h.b16 %v629
    %v3189 = vunpack.c.l.b16 %v630
    %v3190 = vunpack.c.h.b16 %v630
    %v3191 = vunpack.c.l.b16 %v631
    %v3192 = vunpack.c.h.b16 %v631
    %v3193 = vunpack.c.l.b16 %v632
    %v3194 = vunpack.c.h.b16 %v632
    %v3195 = vunpack.c.l.b16 %v633
    %v3196 = vunpack.c.h.b16 %v633
    %v3197 = vunpack.c.l.b16 %v634
    %v3198 = vunpack.c.h.b16 %v634
    %v3199 = vunpack.c.l.b16 %v635
    %v3200 = vunpack.c.h.b16 %v635
    %v3201 = vunpack.c.l.b16 %v636
    %v3202 = vunpack.c.h.b16 %v636
    %v3203 = vunpack.c.l.b16 %v637
    %v3204 = vunpack.c.h.b16 %v637
    %v3205 = vunpack.c.l.b16 %v638
    %v3206 = vunpack.c.h.b16 %v638
    %v3207 = vunpack.c.l.b16 %v639
    %v3208 = vunpack.c.h.b16 %v639
    %v3209 = vunpack.c.l.b16 %v640
    %v3210 = vunpack.c.h.b16 %v640
    %v3211 = vunpack.c.l.b16 %v641
    %v3212 = vunpack.c.h.b16 %v641
    %v3213 = vunpack.c.l.b16 %v642
    %v3214 = vunpack.c.h.b16 %v642
    %v3215 = vunpack.c.l.b16 %v643
    %v3216 = vunpack.c.h.b16 %v643
    %v3217 = vunpack.c.l.b16 %v644
    %v3218 = vunpack.c.h.b16 %v644
    %v3219 = vunpack.c.l.b16 %v645
    %v3220 = vunpack.c.h.b16 %v645
    %v3221 = vunpack.c.l.b16 %v646
    %v3222 = vunpack.c.h.b16 %v646
    %v3223 = vunpack.c.l.b16 %v647
    %v3224 = vunpack.c.h.b16 %v647
    %v3225 = vunpack.c.l.b16 %v648
    %v3226 = vunpack.c.h.b16 %v648
    %v3227 = vunpack.c.l.b16 %v649
    %v3228 = vunpack.c.h.b16 %v649
    %v3229 = vunpack.c.l.b16 %v650
    %v3230 = vunpack.c.h.b16 %v650
    %v3231 = vunpack.c.l.b16 %v651
    %v3232 = vunpack.c.h.b16 %v651
    %v3233 = vunpack.c.l.b16 %v652
    %v3234 = vunpack.c.h.b16 %v652
    %v3235 = vunpack.c.l.b16 %v653
    %v3236 = vunpack.c.h.b16 %v653
    %v3237 = vunpack.c.l.b16 %v654
    %v3238 = vunpack.c.h.b16 %v654
    %v3239 = vunpack.c.l.b16 %v655
    %v3240 = vunpack.c.h.b16 %v655
    %v3241 = vunpack.c.l.b16 %v656
    %v3242 = vunpack.c.h.b16 %v656
    %v3243 = vunpack.c.l.b16 %v657
    %v3244 = vunpack.c.h.b16 %v657
    %v3245 = vunpack.c.l.b16 %v658
    %v3246 = vunpack.c.h.b16 %v658
    %v3247 = vunpack.c.l.b16 %v659
    %v3248 = vunpack.c.h.b16 %v659
    %v3249 = vunpack.c.l.b16 %v660
    %v3250 = vunpack.c.h.b16 %v660
    %v3251 = vunpack.c.l.b16 %v661
    %v3252 = vunpack.c.h.b16 %v661
    %v3253 = vunpack.c.l.b16 %v662
    %v3254 = vunpack.c.h.b16 %v662
    %v3255 = vunpack.c.l.b16 %v663
    %v3256 = vunpack.c.h.b16 %v663
    %v3257 = vunpack.c.l.b16 %v664
    %v3258 = vunpack.c.h.b16 %v664
    %v3259 = vunpack.c.l.b16 %v665
    %v3260 = vunpack.c.h.b16 %v665
    %v3261 = vunpack.c.l.b16 %v666
    %v3262 = vunpack.c.h.b16 %v666
    %v3263 = vunpack.c.l.b16 %v667
    %v3264 = vunpack.c.h.b16 %v667
    %v3265 = vunpack.c.l.b16 %v668
    %v3266 = vunpack.c.h.b16 %v668
    %v3267 = vunpack.c.l.b16 %v669
    %v3268 = vunpack.c.h.b16 %v669
    %v3269 = vunpack.c.l.b16 %v670
    %v3270 = vunpack.c.h.b16 %v670
    %v3271 = vunpack.c.l.b16 %v671
    %v3272 = vunpack.c.h.b16 %v671
    %v3273 = vunpack.c.l.b16 %v672
    %v3274 = vunpack.c.h.b16 %v672
    %v3275 = vunpack.c.l.b16 %v673
    %v3276 = vunpack.c.h.b16 %v673
    %v3277 = vunpack.c.l.b16 %v674
    %v3278 = vunpack.c.h.b16 %v674
    %v3279 = vunpack.c.l.b16 %v675
    %v3280 = vunpack.c.h.b16 %v675
    %v3281 = vunpack.c.l.b16 %v676
    %v3282 = vunpack.c.h.b16 %v676
    %v3283 = vunpack.c.l.b16 %v677
    %v3284 = vunpack.c.h.b16 %v677
    %v3285 = vunpack.c.l.b16 %v678
    %v3286 = vunpack.c.h.b16 %v678
    %v3287 = vunpack.c.l.b16 %v679
    %v3288 = vunpack.c.h.b16 %v679
    %v3289 = vunpack.c.l.b16 %v680
    %v3290 = vunpack.c.h.b16 %v680
    %v3291 = vunpack.c.l.b16 %v681
    %v3292 = vunpack.c.h.b16 %v681
    %v3293 = vunpack.c.l.b16 %v682
    %v3294 = vunpack.c.h.b16 %v682
    %v3295 = vunpack.c.l.b16 %v683
    %v3296 = vunpack.c.h.b16 %v683
    %v3297 = vunpack.c.l.b16 %v684
    %v3298 = vunpack.c.h.b16 %v684
    %v3299 = vunpack.c.l.b16 %v685
    %v3300 = vunpack.c.h.b16 %v685
    %v3301 = vunpack.c.l.b16 %v686
    %v3302 = vunpack.c.h.b16 %v686
    %v3303 = vunpack.c.l.b16 %v687
    %v3304 = vunpack.c.h.b16 %v687
    %v3305 = vunpack.c.l.b16 %v688
    %v3306 = vunpack.c.h.b16 %v688
    %v3307 = vunpack.c.l.b16 %v689
    %v3308 = vunpack.c.h.b16 %v689
    %v3309 = vunpack.c.l.b16 %v690
    %v3310 = vunpack.c.h.b16 %v690
    %v3311 = vunpack.c.l.b16 %v691
    %v3312 = vunpack.c.h.b16 %v691
    %v3313 = vunpack.c.l.b16 %v692
    %v3314 = vunpack.c.h.b16 %v692
    %v3315 = vunpack.c.l.b16 %v693
    %v3316 = vunpack.c.h.b16 %v693
    %v3317 = vunpack.c.l.b16 %v694
    %v3318 = vunpack.c.h.b16 %v694
    %v3319 = vunpack.c.l.b16 %v695
    %v3320 = vunpack.c.h.b16 %v695
    %v3321 = vunpack.c.l.b16 %v696
    %v3322 = vunpack.c.h.b16 %v696
    %v3323 = vunpack.c.l.b16 %v697
    %v3324 = vunpack.c.h.b16 %v697
    %v3325 = vunpack.c.l.b16 %v698
    %v3326 = vunpack.c.h.b16 %v698
    %v3327 = vunpack.c.l.b16 %v699
    %v3328 = vunpack.c.h.b16 %v699
    %v3329 = vunpack.c.l.b16 %v700
    %v3330 = vunpack.c.h.b16 %v700
    %v3331 = vunpack.c.l.b16 %v701
    %v3332 = vunpack.c.h.b16 %v701
    %v3333 = vunpack.c.l.b16 %v702
    %v3334 = vunpack.c.h.b16 %v702
    %v3335 = vunpack.c.l.b16 %v703
    %v3336 = vunpack.c.h.b16 %v703
    %v3337 = vunpack.c.l.b16 %v704
    %v3338 = vunpack.c.h.b16 %v704
    %v3339 = vunpack.c.l.b16 %v705
    %v3340 = vunpack.c.h.b16 %v705
    %v3341 = vunpack.c.l.b16 %v706
    %v3342 = vunpack.c.h.b16 %v706
    %v3343 = vunpack.c.l.b16 %v707
    %v3344 = vunpack.c.h.b16 %v707
    %v3345 = vunpack.c.l.b16 %v708
    %v3346 = vunpack.c.h.b16 %v708
    %v3347 = vunpack.c.l.b16 %v709
    %v3348 = vunpack.c.h.b16 %v709
    %v3349 = vunpack.c.l.b16 %v710
    %v3350 = vunpack.c.h.b16 %v710
    %v3351 = vunpack.c.l.b16 %v711
    %v3352 = vunpack.c.h.b16 %v711
    %v3353 = vunpack.c.l.b16 %v712
    %v3354 = vunpack.c.h.b16 %v712
    %v3355 = vunpack.c.l.b16 %v713
    %v3356 = vunpack.c.h.b16 %v713
    %v3357 = vunpack.c.l.b16 %v714
    %v3358 = vunpack.c.h.b16 %v714
    %v3359 = vunpack.c.l.b16 %v715
    %v3360 = vunpack.c.h.b16 %v715
    %v3361 = vunpack.c.l.b16 %v716
    %v3362 = vunpack.c.h.b16 %v716
    %v3363 = vunpack.c.l.b16 %v717
    %v3364 = vunpack.c.h.b16 %v717
    %v3365 = vunpack.c.l.b16 %v718
    %v3366 = vunpack.c.h.b16 %v718
    %v3367 = vunpack.c.l.b16 %v719
    %v3368 = vunpack.c.h.b16 %v719
    %v3369 = vunpack.c.l.b16 %v720
    %v3370 = vunpack.c.h.b16 %v720
    %v3371 = vunpack.c.l.b16 %v721
    %v3372 = vunpack.c.h.b16 %v721
    %v3373 = vunpack.c.l.b16 %v722
    %v3374 = vunpack.c.h.b16 %v722
    %v3375 = vunpack.c.l.b16 %v723
    %v3376 = vunpack.c.h.b16 %v723
    %v3377 = vunpack.c.l.b16 %v724
    %v3378 = vunpack.c.h.b16 %v724
    %v3379 = vunpack.c.l.b16 %v725
    %v3380 = vunpack.c.h.b16 %v725
    %v3381 = vunpack.c.l.b16 %v726
    %v3382 = vunpack.c.h.b16 %v726
    %v3383 = vunpack.c.l.b16 %v727
    %v3384 = vunpack.c.h.b16 %v727
    %v3385 = vunpack.c.l.b16 %v728
    %v3386 = vunpack.c.h.b16 %v728
    %v3387 = vunpack.c.l.b16 %v729
    %v3388 = vunpack.c.h.b16 %v729
    %v3389 = vunpack.c.l.b16 %v730
    %v3390 = vunpack.c.h.b16 %v730
    %v3391 = vunpack.c.l.b16 %v731
    %v3392 = vunpack.c.h.b16 %v731
    %v3393 = vunpack.c.l.b16 %v732
    %v3394 = vunpack.c.h.b16 %v732
    %v3395 = vunpack.c.l.b16 %v733
    %v3396 = vunpack.c.h.b16 %v733
    %v3397 = vunpack.c.l.b16 %v734
    %v3398 = vunpack.c.h.b16 %v734
    %v3399 = vunpack.c.l.b16 %v735
    %v3400 = vunpack.c.h.b16 %v735
    %v3401 = vunpack.c.l.b16 %v736
    %v3402 = vunpack.c.h.b16 %v736
    %v3403 = vunpack.c.l.b16 %v737
    %v3404 = vunpack.c.h.b16 %v737
    %v3405 = vunpack.c.l.b16 %v738
    %v3406 = vunpack.c.h.b16 %v738
    %v3407 = vunpack.c.l.b16 %v739
    %v3408 = vunpack.c.h.b16 %v739
    %v3409 = vunpack.c.l.b16 %v740
    %v3410 = vunpack.c.h.b16 %v740
    %v3411 = vunpack.c.l.b16 %v741
    %v3412 = vunpack.c.h.b16 %v741
    %v3413 = vunpack.c.l.b16 %v742
    %v3414 = vunpack.c.h.b16 %v742
    %v3415 = vunpack.c.l.b16 %v743
    %v3416 = vunpack.c.h.b16 %v743
    %v3417 = vunpack.c.l.b16 %v744
    %v3418 = vunpack.c.h.b16 %v744
    %v3419 = vunpack.c.l.b16 %v745
    %v3420 = vunpack.c.h.b16 %v745
    %v3421 = vunpack.c.l.b16 %v746
    %v3422 = vunpack.c.h.b16 %v746
    %v3423 = vunpack.c.l.b16 %v747
    %v3424 = vunpack.c.h.b16 %v747
    %v3425 = vunpack.c.l.b16 %v748
    %v3426 = vunpack.c.h.b16 %v748
    %v3427 = vunpack.c.l.b16 %v749
    %v3428 = vunpack.c.h.b16 %v749
    %v3429 = vunpack.c.l.b16 %v750
    %v3430 = vunpack.c.h.b16 %v750
    %v3431 = vunpack.c.l.b16 %v751
    %v3432 = vunpack.c.h.b16 %v751
    %v3433 = vunpack.c.l.b16 %v752
    %v3434 = vunpack.c.h.b16 %v752
    %v3435 = vunpack.c.l.b16 %v753
    %v3436 = vunpack.c.h.b16 %v753
    %v3437 = vunpack.c.l.b16 %v754
    %v3438 = vunpack.c.h.b16 %v754
    %v3439 = vunpack.c.l.b16 %v755
    %v3440 = vunpack.c.h.b16 %v755
    %v3441 = vunpack.c.l.b16 %v756
    %v3442 = vunpack.c.h.b16 %v756
    %v3443 = vunpack.c.l.b16 %v757
    %v3444 = vunpack.c.h.b16 %v757
    %v3445 = vunpack.c.l.b16 %v758
    %v3446 = vunpack.c.h.b16 %v758
    %v3447 = vunpack.c.l.b16 %v759
    %v3448 = vunpack.c.h.b16 %v759
    %v3449 = vunpack.c.l.b16 %v760
    %v3450 = vunpack.c.h.b16 %v760
    %v3451 = vunpack.c.l.b16 %v761
    %v3452 = vunpack.c.h.b16 %v761
    %v3453 = vunpack.c.l.b16 %v762
    %v3454 = vunpack.c.h.b16 %v762
    %v3455 = vunpack.c.l.b16 %v763
    %v3456 = vunpack.c.h.b16 %v763
    %v3457 = vunpack.c.l.b16 %v764
    %v3458 = vunpack.c.h.b16 %v764
    %v3459 = vunpack.c.l.b16 %v765
    %v3460 = vunpack.c.h.b16 %v765
    %v3461 = vunpack.c.l.b16 %v766
    %v3462 = vunpack.c.h.b16 %v766
    %v3463 = vunpack.c.l.b16 %v767
    %v3464 = vunpack.c.h.b16 %v767
    %v3465 = vunpack.c.l.b16 %v768
    %v3466 = vunpack.c.h.b16 %v768
    %v3467 = vunpack.c.l.b16 %v769
    %v3468 = vunpack.c.h.b16 %v769
    %v3469 = vunpack.c.l.b16 %v770
    %v3470 = vunpack.c.h.b16 %v770
    %v3471 = vunpack.c.l.b16 %v771
    %v3472 = vunpack.c.h.b16 %v771
    %v3473 = vunpack.c.l.b16 %v772
    %v3474 = vunpack.c.h.b16 %v772
    %v3475 = vunpack.c.l.b16 %v773
    %v3476 = vunpack.c.h.b16 %v773
    %v3477 = vunpack.c.l.b16 %v774
    %v3478 = vunpack.c.h.b16 %v774
    %v3479 = vunpack.c.l.b16 %v775
    %v3480 = vunpack.c.h.b16 %v775
    %v3481 = vunpack.c.l.b16 %v776
    %v3482 = vunpack.c.h.b16 %v776
    %v3483 = vunpack.c.l.b16 %v777
    %v3484 = vunpack.c.h.b16 %v777
    %v3485 = vunpack.c.l.b16 %v778
    %v3486 = vunpack.c.h.b16 %v778
    %v3487 = vunpack.c.l.b16 %v779
    %v3488 = vunpack.c.h.b16 %v779
    %v3489 = vunpack.c.l.b16 %v780
    %v3490 = vunpack.c.h.b16 %v780
    %v3491 = vunpack.c.l.b16 %v781
    %v3492 = vunpack.c.h.b16 %v781
    %v3493 = vunpack.c.l.b16 %v782
    %v3494 = vunpack.c.h.b16 %v782
    %v3495 = vunpack.c.l.b16 %v783
    %v3496 = vunpack.c.h.b16 %v783
    %v3497 = vunpack.c.l.b16 %v784
    %v3498 = vunpack.c.h.b16 %v784
    %v3499 = vunpack.c.l.b16 %v785
    %v3500 = vunpack.c.h.b16 %v785
    %v3501 = vunpack.c.l.b16 %v786
    %v3502 = vunpack.c.h.b16 %v786
    %v3503 = vunpack.c.l.b16 %v787
    %v3504 = vunpack.c.h.b16 %v787
    %v3505 = vunpack.c.l.b16 %v788
    %v3506 = vunpack.c.h.b16 %v788
    %v3507 = vunpack.c.l.b16 %v789
    %v3508 = vunpack.c.h.b16 %v789
    %v3509 = vunpack.c.l.b16 %v790
    %v3510 = vunpack.c.h.b16 %v790
    %v3511 = vunpack.c.l.b16 %v791
    %v3512 = vunpack.c.h.b16 %v791
    %v3513 = vunpack.c.l.b16 %v792
    %v3514 = vunpack.c.h.b16 %v792
    %v3515 = vunpack.c.l.b16 %v793
    %v3516 = vunpack.c.h.b16 %v793
    %v3517 = vunpack.c.l.b16 %v794
    %v3518 = vunpack.c.h.b16 %v794
    %v3519 = vunpack.c.l.b16 %v795
    %v3520 = vunpack.c.h.b16 %v795
    %v3521 = vunpack.c.l.b16 %v796
    %v3522 = vunpack.c.h.b16 %v796
    %v3523 = vunpack.c.l.b16 %v797
    %v3524 = vunpack.c.h.b16 %v797
    %v3525 = vunpack.c.l.b16 %v798
    %v3526 = vunpack.c.h.b16 %v798
    %v3527 = vunpack.c.l.b16 %v799
    %v3528 = vunpack.c.h.b16 %v799
    %v3529 = vunpack.c.l.b16 %v800
    %v3530 = vunpack.c.h.b16 %v800
    %v3531 = vunpack.c.l.b16 %v801
    %v3532 = vunpack.c.h.b16 %v801
    %v3533 = vunpack.c.l.b16 %v802
    %v3534 = vunpack.c.h.b16 %v802
    %v3535 = vunpack.c.l.b16 %v803
    %v3536 = vunpack.c.h.b16 %v803
    %v3537 = vunpack.c.l.b16 %v804
    %v3538 = vunpack.c.h.b16 %v804
    %v3539 = vunpack.c.l.b16 %v805
    %v3540 = vunpack.c.h.b16 %v805
    %v3541 = vunpack.c.l.b16 %v806
    %v3542 = vunpack.c.h.b16 %v806
    %v3543 = vunpack.c.l.b16 %v807
    %v3544 = vunpack.c.h.b16 %v807
    %v3545 = vunpack.c.l.b16 %v808
    %v3546 = vunpack.c.h.b16 %v808
    %v3547 = vunpack.c.l.b16 %v809
    %v3548 = vunpack.c.h.b16 %v809
    %v3549 = vunpack.c.l.b16 %v810
    %v3550 = vunpack.c.h.b16 %v810
    %v3551 = vunpack.c.l.b16 %v811
    %v3552 = vunpack.c.h.b16 %v811
    %v3553 = vunpack.c.l.b16 %v812
    %v3554 = vunpack.c.h.b16 %v812
    %v3555 = vunpack.c.l.b16 %v813
    %v3556 = vunpack.c.h.b16 %v813
    %v3557 = vunpack.c.l.b16 %v814
    %v3558 = vunpack.c.h.b16 %v814
    %v3559 = vunpack.c.l.b16 %v815
    %v3560 = vunpack.c.h.b16 %v815
    %v3561 = vunpack.c.l.b16 %v816
    %v3562 = vunpack.c.h.b16 %v816
    %v3563 = vunpack.c.l.b16 %v817
    %v3564 = vunpack.c.h.b16 %v817
    %v3565 = vunpack.c.l.b16 %v818
    %v3566 = vunpack.c.h.b16 %v818
    %v3567 = vunpack.c.l.b16 %v819
    %v3568 = vunpack.c.h.b16 %v819
    %v3569 = vunpack.c.l.b16 %v820
    %v3570 = vunpack.c.h.b16 %v820
    %v3571 = vunpack.c.l.b16 %v821
    %v3572 = vunpack.c.h.b16 %v821
    %v3573 = vunpack.c.l.b16 %v822
    %v3574 = vunpack.c.h.b16 %v822
    %v3575 = vunpack.c.l.b16 %v823
    %v3576 = vunpack.c.h.b16 %v823
    %v3577 = vunpack.c.l.b16 %v824
    %v3578 = vunpack.c.h.b16 %v824
    %v3579 = vunpack.c.l.b16 %v825
    %v3580 = vunpack.c.h.b16 %v825
    %v3581 = vunpack.c.l.b16 %v826
    %v3582 = vunpack.c.h.b16 %v826
    %v3583 = vunpack.c.l.b16 %v827
    %v3584 = vunpack.c.h.b16 %v827
    %v3585 = vunpack.c.l.b16 %v828
    %v3586 = vunpack.c.h.b16 %v828
    %v3587 = vunpack.c.l.b16 %v829
    %v3588 = vunpack.c.h.b16 %v829
    %v3589 = vunpack.c.l.b16 %v830
    %v3590 = vunpack.c.h.b16 %v830
    %v3591 = vunpack.c.l.b16 %v831
    %v3592 = vunpack.c.h.b16 %v831
    %v3593 = vunpack.c.l.b16 %v832
    %v3594 = vunpack.c.h.b16 %v832
    %v3595 = vunpack.c.l.b16 %v833
    %v3596 = vunpack.c.h.b16 %v833
    %v3597 = vunpack.c.l.b16 %v834
    %v3598 = vunpack.c.h.b16 %v834
    %v3599 = vunpack.c.l.b16 %v835
    %v3600 = vunpack.c.h.b16 %v835
    %v3601 = vunpack.c.l.b16 %v836
    %v3602 = vunpack.c.h.b16 %v836
    %v3603 = vunpack.c.l.b16 %v837
    %v3604 = vunpack.c.h.b16 %v837
    %v3605 = vunpack.c.l.b16 %v838
    %v3606 = vunpack.c.h.b16 %v838
    %v3607 = vunpack.c.l.b16 %v839
    %v3608 = vunpack.c.h.b16 %v839
    %v3609 = vunpack.c.l.b16 %v840
    %v3610 = vunpack.c.h.b16 %v840
    %v3611 = vunpack.c.l.b16 %v841
    %v3612 = vunpack.c.h.b16 %v841
    %v3613 = vunpack.c.l.b16 %v842
    %v3614 = vunpack.c.h.b16 %v842
    %v3615 = vunpack.c.l.b16 %v843
    %v3616 = vunpack.c.h.b16 %v843
    %v3617 = vunpack.c.l.b16 %v844
    %v3618 = vunpack.c.h.b16 %v844
    %v3619 = vunpack.c.l.b16 %v845
    %v3620 = vunpack.c.h.b16 %v845
    %v3621 = vunpack.c.l.b16 %v846
    %v3622 = vunpack.c.h.b16 %v846
    %v3623 = vunpack.c.l.b16 %v847
    %v3624 = vunpack.c.h.b16 %v847
    %v3625 = vunpack.c.l.b16 %v848
    %v3626 = vunpack.c.h.b16 %v848
    %v3627 = vunpack.c.l.b16 %v849
    %v3628 = vunpack.c.h.b16 %v849
    %v3629 = vunpack.c.l.b16 %v850
    %v3630 = vunpack.c.h.b16 %v850
    %v3631 = vunpack.c.l.b16 %v851
    %v3632 = vunpack.c.h.b16 %v851
    %v3633 = vunpack.c.l.b16 %v852
    %v3634 = vunpack.c.h.b16 %v852
    %v3635 = vunpack.c.l.b16 %v853
    %v3636 = vunpack.c.h.b16 %v853
    %v3637 = vunpack.c.l.b16 %v854
    %v3638 = vunpack.c.h.b16 %v854
    %v3639 = vunpack.c.l.b16 %v855
    %v3640 = vunpack.c.h.b16 %v855
    %v3641 = vunpack.c.l.b16 %v856
    %v3642 = vunpack.c.h.b16 %v856
    %v3643 = vunpack.c.l.b16 %v857
    %v3644 = vunpack.c.h.b16 %v857
    %v3645 = vunpack.c.l.b16 %v858
    %v3646 = vunpack.c.h.b16 %v858
    %v3647 = vunpack.c.l.b16 %v859
    %v3648 = vunpack.c.h.b16 %v859
    %v3649 = vunpack.c.l.b16 %v860
    %v3650 = vunpack.c.h.b16 %v860
    %v3651 = vunpack.c.l.b16 %v861
    %v3652 = vunpack.c.h.b16 %v861
    %v3653 = vunpack.c.l.b16 %v862
    %v3654 = vunpack.c.h.b16 %v862
    %v3655 = vunpack.c.l.b16 %v863
    %v3656 = vunpack.c.h.b16 %v863
    %v3657 = vunpack.c.l.b16 %v864
    %v3658 = vunpack.c.h.b16 %v864
    %v3659 = vunpack.c.l.b16 %v865
    %v3660 = vunpack.c.h.b16 %v865
    %v3661 = vunpack.c.l.b16 %v866
    %v3662 = vunpack.c.h.b16 %v866
    %v3663 = vunpack.c.l.b16 %v867
    %v3664 = vunpack.c.h.b16 %v867
    %v3665 = vunpack.c.l.b16 %v868
    %v3666 = vunpack.c.h.b16 %v868
    %v3667 = vunpack.c.l.b16 %v869
    %v3668 = vunpack.c.h.b16 %v869
    %v3669 = vunpack.c.l.b16 %v870
    %v3670 = vunpack.c.h.b16 %v870
    %v3671 = vunpack.c.l.b16 %v871
    %v3672 = vunpack.c.h.b16 %v871
    %v3673 = vunpack.c.l.b16 %v872
    %v3674 = vunpack.c.h.b16 %v872
    %v3675 = vunpack.c.l.b16 %v873
    %v3676 = vunpack.c.h.b16 %v873
    %v3677 = vunpack.c.l.b16 %v874
    %v3678 = vunpack.c.h.b16 %v874
    %v3679 = vunpack.c.l.b16 %v875
    %v3680 = vunpack.c.h.b16 %v875
    %v3681 = vunpack.c.l.b16 %v876
    %v3682 = vunpack.c.h.b16 %v876
    %v3683 = vunpack.c.l.b16 %v877
    %v3684 = vunpack.c.h.b16 %v877
    %v3685 = vunpack.c.l.b16 %v878
    %v3686 = vunpack.c.h.b16 %v878
    %v3687 = vunpack.c.l.b16 %v879
    %v3688 = vunpack.c.h.b16 %v879
    %v3689 = vunpack.c.l.b16 %v880
    %v3690 = vunpack.c.h.b16 %v880
    %v3691 = vunpack.c.l.b16 %v881
    %v3692 = vunpack.c.h.b16 %v881
    %v3693 = vunpack.c.l.b16 %v882
    %v3694 = vunpack.c.h.b16 %v882
    %v3695 = vunpack.c.l.b16 %v883
    %v3696 = vunpack.c.h.b16 %v883
    %v3697 = vunpack.c.l.b16 %v884
    %v3698 = vunpack.c.h.b16 %v884
    %v3699 = vunpack.c.l.b16 %v885
    %v3700 = vunpack.c.h.b16 %v885
    %v3701 = vunpack.c.l.b16 %v886
    %v3702 = vunpack.c.h.b16 %v886
    %v3703 = vunpack.c.l.b16 %v887
    %v3704 = vunpack.c.h.b16 %v887
    %v3705 = vunpack.c.l.b16 %v888
    %v3706 = vunpack.c.h.b16 %v888
    %v3707 = vunpack.c.l.b16 %v889
    %v3708 = vunpack.c.h.b16 %v889
    %v3709 = vunpack.c.l.b16 %v890
    %v3710 = vunpack.c.h.b16 %v890
    %v3711 = vunpack.c.l.b16 %v891
    %v3712 = vunpack.c.h.b16 %v891
    %v3713 = vunpack.c.l.b16 %v892
    %v3714 = vunpack.c.h.b16 %v892
    %v3715 = vunpack.c.l.b16 %v893
    %v3716 = vunpack.c.h.b16 %v893
    %v3717 = vunpack.c.l.b16 %v894
    %v3718 = vunpack.c.h.b16 %v894
    %v3719 = vunpack.c.l.b16 %v895
    %v3720 = vunpack.c.h.b16 %v895
    %v3721 = vunpack.c.l.b16 %v896
    %v3722 = vunpack.c.h.b16 %v896
    %v3723 = vunpack.c.l.b16 %v897
    %v3724 = vunpack.c.h.b16 %v897
    %v3725 = vunpack.c.l.b16 %v898
    %v3726 = vunpack.c.h.b16 %v898
    %v3727 = vunpack.c.l.b16 %v899
    %v3728 = vunpack.c.h.b16 %v899
    %v3729 = vunpack.c.l.b16 %v900
    %v3730 = vunpack.c.h.b16 %v900
    %v3731 = vunpack.c.l.b16 %v901
    %v3732 = vunpack.c.h.b16 %v901
    %v3733 = vunpack.c.l.b16 %v902
    %v3734 = vunpack.c.h.b16 %v902
    %v3735 = vunpack.c.l.b16 %v903
    %v3736 = vunpack.c.h.b16 %v903
    %v3737 = vunpack.c.l.b16 %v904
    %v3738 = vunpack.c.h.b16 %v904
    %v3739 = vunpack.c.l.b16 %v905
    %v3740 = vunpack.c.h.b16 %v905
    %v3741 = vunpack.c.l.b16 %v906
    %v3742 = vunpack.c.h.b16 %v906
    %v3743 = vunpack.c.l.b16 %v907
    %v3744 = vunpack.c.h.b16 %v907
    %v3745 = vunpack.c.l.b16 %v908
    %v3746 = vunpack.c.h.b16 %v908
    %v3747 = vunpack.c.l.b16 %v909
    %v3748 = vunpack.c.h.b16 %v909
    %v3749 = vunpack.c.l.b16 %v910
    %v3750 = vunpack.c.h.b16 %v910
    %v3751 = vunpack.c.l.b16 %v911
    %v3752 = vunpack.c.h.b16 %v911
    %v3753 = vunpack.c.l.b16 %v912
    %v3754 = vunpack.c.h.b16 %v912
    %v3755 = vunpack.c.l.b16 %v913
    %v3756 = vunpack.c.h.b16 %v913
    %v3757 = vunpack.c.l.b16 %v914
    %v3758 = vunpack.c.h.b16 %v914
    %v3759 = vunpack.c.l.b16 %v915
    %v3760 = vunpack.c.h.b16 %v915
    %v3761 = vunpack.c.l.b16 %v916
    %v3762 = vunpack.c.h.b16 %v916
    %v3763 = vunpack.c.l.b16 %v917
    %v3764 = vunpack.c.h.b16 %v917
    %v3765 = vunpack.c.l.b16 %v918
    %v3766 = vunpack.c.h.b16 %v918
    %v3767 = vunpack.c.l.b16 %v919
    %v3768 = vunpack.c.h.b16 %v919
    %v3769 = vunpack.c.l.b16 %v920
    %v3770 = vunpack.c.h.b16 %v920
    %v3771 = vunpack.c.l.b16 %v921
    %v3772 = vunpack.c.h.b16 %v921
    %v3773 = vunpack.c.l.b16 %v922
    %v3774 = vunpack.c.h.b16 %v922
    %v3775 = vunpack.c.l.b16 %v923
    %v3776 = vunpack.c.h.b16 %v923
    %v3777 = vunpack.c.l.b16 %v924
    %v3778 = vunpack.c.h.b16 %v924
    %v3779 = vunpack.c.l.b16 %v925
    %v3780 = vunpack.c.h.b16 %v925
    %v3781 = vunpack.c.l.b16 %v926
    %v3782 = vunpack.c.h.b16 %v926
    %v3783 = vunpack.c.l.b16 %v927
    %v3784 = vunpack.c.h.b16 %v927
    %v3785 = vunpack.c.l.b16 %v928
    %v3786 = vunpack.c.h.b16 %v928
    %v3787 = vunpack.c.l.b16 %v929
    %v3788 = vunpack.c.h.b16 %v929
    %v3789 = vunpack.c.l.b16 %v930
    %v3790 = vunpack.c.h.b16 %v930
    %v3791 = vunpack.c.l.b16 %v931
    %v3792 = vunpack.c.h.b16 %v931
    %v3793 = vunpack.c.l.b16 %v932
    %v3794 = vunpack.c.h.b16 %v932
    %v3795 = vunpack.c.l.b16 %v933
    %v3796 = vunpack.c.h.b16 %v933
    %v3797 = vunpack.c.l.b16 %v934
    %v3798 = vunpack.c.h.b16 %v934
    %v3799 = vunpack.c.l.b16 %v935
    %v3800 = vunpack.c.h.b16 %v935
    %v3801 = vunpack.c.l.b16 %v936
    %v3802 = vunpack.c.h.b16 %v936
    %v3803 = vunpack.c.l.b16 %v937
    %v3804 = vunpack.c.h.b16 %v937
    %v3805 = vunpack.c.l.b16 %v938
    %v3806 = vunpack.c.h.b16 %v938
    %v3807 = vunpack.c.l.b16 %v939
    %v3808 = vunpack.c.h.b16 %v939
    %v3809 = vunpack.c.l.b16 %v940
    %v3810 = vunpack.c.h.b16 %v940
    %v3811 = vunpack.c.l.b16 %v941
    %v3812 = vunpack.c.h.b16 %v941
    %v3813 = vunpack.c.l.b16 %v942
    %v3814 = vunpack.c.h.b16 %v942
    %v3815 = vunpack.c.l.b16 %v943
    %v3816 = vunpack.c.h.b16 %v943
    %v3817 = vunpack.c.l.b16 %v944
    %v3818 = vunpack.c.h.b16 %v944
    %v3819 = vunpack.c.l.b16 %v945
    %v3820 = vunpack.c.h.b16 %v945
    %v3821 = vunpack.c.l.b16 %v946
    %v3822 = vunpack.c.h.b16 %v946
    %v3823 = vunpack.c.l.b16 %v947
    %v3824 = vunpack.c.h.b16 %v947
    %v3825 = vunpack.c.l.b16 %v948
    %v3826 = vunpack.c.h.b16 %v948
    %v3827 = vunpack.c.l.b16 %v949
    %v3828 = vunpack.c.h.b16 %v949
    %v3829 = vunpack.c.l.b16 %v950
    %v3830 = vunpack.c.h.b16 %v950
    %v3831 = vunpack.c.l.b16 %v951
    %v3832 = vunpack.c.h.b16 %v951
    %v3833 = vunpack.c.l.b16 %v952
    %v3834 = vunpack.c.h.b16 %v952
    %v3835 = vunpack.c.l.b16 %v953
    %v3836 = vunpack.c.h.b16 %v953
    %v3837 = vunpack.c.l.b16 %v954
    %v3838 = vunpack.c.h.b16 %v954
    %v3839 = vunpack.c.l.b16 %v955
    %v3840 = vunpack.c.h.b16 %v955
    %v3841 = vunpack.c.l.b16 %v956
    %v3842 = vunpack.c.h.b16 %v956
    %v3843 = vunpack.c.l.b16 %v957
    %v3844 = vunpack.c.h.b16 %v957
    %v3845 = vunpack.c.l.b16 %v958
    %v3846 = vunpack.c.h.b16 %v958
    %v3847 = vunpack.c.l.b16 %v959
    %v3848 = vunpack.c.h.b16 %v959
    %v3849 = vunpack.c.l.b16 %v960
    %v3850 = vunpack.c.h.b16 %v960
    %v3851 = vunpack.c.l.b16 %v961
    %v3852 = vunpack.c.h.b16 %v961
    %v3853 = vunpack.c.l.b16 %v962
    %v3854 = vunpack.c.h.b16 %v962
    %v3855 = vunpack.c.l.b16 %v963
    %v3856 = vunpack.c.h.b16 %v963
    %v3857 = vunpack.c.l.b16 %v964
    %v3858 = vunpack.c.h.b16 %v964
    %v3859 = vunpack.c.l.b16 %v965
    %v3860 = vunpack.c.h.b16 %v965
    %v3861 = vunpack.c.l.b16 %v966
    %v3862 = vunpack.c.h.b16 %v966
    %v3863 = vunpack.c.l.b16 %v967
    %v3864 = vunpack.c.h.b16 %v967
    %v3865 = vunpack.c.l.b16 %v968
    %v3866 = vunpack.c.h.b16 %v968
    %v3867 = vunpack.c.l.b16 %v969
    %v3868 = vunpack.c.h.b16 %v969
    %v3869 = vunpack.c.l.b16 %v970
    %v3870 = vunpack.c.h.b16 %v970
    %v3871 = vunpack.c.l.b16 %v971
    %v3872 = vunpack.c.h.b16 %v971
    %v3873 = vunpack.c.l.b16 %v972
    %v3874 = vunpack.c.h.b16 %v972
    %v3875 = vunpack.c.l.b16 %v973
    %v3876 = vunpack.c.h.b16 %v973
    %v3877 = vunpack.c.l.b16 %v974
    %v3878 = vunpack.c.h.b16 %v974
    %v3879 = vunpack.c.l.b16 %v975
    %v3880 = vunpack.c.h.b16 %v975
    %v3881 = vunpack.c.l.b16 %v976
    %v3882 = vunpack.c.h.b16 %v976
    %v3883 = vunpack.c.l.b16 %v977
    %v3884 = vunpack.c.h.b16 %v977
    %v3885 = vunpack.c.l.b16 %v978
    %v3886 = vunpack.c.h.b16 %v978
    %v3887 = vunpack.c.l.b16 %v979
    %v3888 = vunpack.c.h.b16 %v979
    %v3889 = vunpack.c.l.b16 %v980
    %v3890 = vunpack.c.h.b16 %v980
    %v3891 = vunpack.c.l.b16 %v981
    %v3892 = vunpack.c.h.b16 %v981
    %v3893 = vunpack.c.l.b16 %v982
    %v3894 = vunpack.c.h.b16 %v982
    %v3895 = vunpack.c.l.b16 %v983
    %v3896 = vunpack.c.h.b16 %v983
    %v3897 = vunpack.c.l.b16 %v984
    %v3898 = vunpack.c.h.b16 %v984
    %v3899 = vunpack.c.l.b16 %v985
    %v3900 = vunpack.c.h.b16 %v985
    %v3901 = vunpack.c.l.b16 %v986
    %v3902 = vunpack.c.h.b16 %v986
    %v3903 = vunpack.c.l.b16 %v987
    %v3904 = vunpack.c.h.b16 %v987
    %v3905 = vunpack.c.l.b16 %v988
    %v3906 = vunpack.c.h.b16 %v988
    %v3907 = vunpack.c.l.b16 %v989
    %v3908 = vunpack.c.h.b16 %v989
    %v3909 = vunpack.c.l.b16 %v990
    %v3910 = vunpack.c.h.b16 %v990
    %v3911 = vunpack.c.l.b16 %v991
    %v3912 = vunpack.c.h.b16 %v991
    %v3913 = vunpack.c.l.b16 %v992
    %v3914 = vunpack.c.h.b16 %v992
    %v3915 = vunpack.c.l.b16 %v993
    %v3916 = vunpack.c.h.b16 %v993
    %v3917 = vunpack.c.l.b16 %v994
    %v3918 = vunpack.c.h.b16 %v994
    %v3919 = vunpack.c.l.b16 %v995
    %v3920 = vunpack.c.h.b16 %v995
    %v3921 = vunpack.c.l.b16 %v996
    %v3922 = vunpack.c.h.b16 %v996
    %v3923 = vunpack.c.l.b16 %v997
    %v3924 = vunpack.c.h.b16 %v997
    %v3925 = vunpack.c.l.b16 %v998
    %v3926 = vunpack.c.h.b16 %v998
    %v3927 = vunpack.c.l.b16 %v999
    %v3928 = vunpack.c.h.b16 %v999
    %v3929 = vunpack.c.l.b16 %v1000
    %v3930 = vunpack.c.h.b16 %v1000
    %v3931 = vunpack.c.l.b16 %v1001
    %v3932 = vunpack.c.h.b16 %v1001
    %v3933 = vunpack.c.l.b16 %v1002
    %v3934 = vunpack.c.h.b16 %v1002
    %v3935 = vunpack.c.l.b16 %v1003
    %v3936 = vunpack.c.h.b16 %v1003
    %v3937 = vunpack.c.l.b16 %v1004
    %v3938 = vunpack.c.h.b16 %v1004
    %v3939 = vunpack.c.l.b16 %v1005
    %v3940 = vunpack.c.h.b16 %v1005
    %v3941 = vunpack.c.l.b16 %v1006
    %v3942 = vunpack.c.h.b16 %v1006
    %v3943 = vunpack.c.l.b16 %v1007
    %v3944 = vunpack.c.h.b16 %v1007
    %v3945 = vunpack.c.l.b16 %v1008
    %v3946 = vunpack.c.h.b16 %v1008
    %v3947 = vunpack.c.l.b16 %v1009
    %v3948 = vunpack.c.h.b16 %v1009
    %v3949 = vunpack.c.l.b16 %v1010
    %v3950 = vunpack.c.h.b16 %v1010
    %v3951 = vunpack.c.l.b16 %v1011
    %v3952 = vunpack.c.h.b16 %v1011
    %v3953 = vunpack.c.l.b16 %v1012
    %v3954 = vunpack.c.h.b16 %v1012
    %v3955 = vunpack.c.l.b16 %v1013
    %v3956 = vunpack.c.h.b16 %v1013
    %v3957 = vunpack.c.l.b16 %v1014
    %v3958 = vunpack.c.h.b16 %v1014
    %v3959 = vunpack.c.l.b16 %v1015
    %v3960 = vunpack.c.h.b16 %v1015
    %v3961 = vunpack.c.l.b16 %v1016
    %v3962 = vunpack.c.h.b16 %v1016
    %v3963 = vunpack.c.l.b16 %v1017
    %v3964 = vunpack.c.h.b16 %v1017
    %v3965 = vunpack.c.l.b16 %v1018
    %v3966 = vunpack.c.h.b16 %v1018
    %v3967 = vunpack.c.l.b16 %v1019
    %v3968 = vunpack.c.h.b16 %v1019
    %v3969 = vunpack.c.l.b16 %v1020
    %v3970 = vunpack.c.h.b16 %v1020
    %v3971 = vunpack.c.l.b16 %v1021
    %v3972 = vunpack.c.h.b16 %v1021
    %v3973 = vunpack.c.l.b16 %v1022
    %v3974 = vunpack.c.h.b16 %v1022
    %v3975 = vunpack.c.l.b16 %v1023
    %v3976 = vunpack.c.h.b16 %v1023
    %v3977 = vunpack.c.l.b16 %v1024
    %v3978 = vunpack.c.h.b16 %v1024
    %v3979 = vunpack.c.l.b16 %v1025
    %v3980 = vunpack.c.h.b16 %v1025
    %v3981 = vunpack.c.l.b16 %v1026
    %v3982 = vunpack.c.h.b16 %v1026
    %v3983 = vunpack.c.l.b16 %v1027
    %v3984 = vunpack.c.h.b16 %v1027
    %v3985 = vunpack.c.l.b16 %v1028
    %v3986 = vunpack.c.h.b16 %v1028
    %v3987 = vunpack.c.l.b16 %v1029
    %v3988 = vunpack.c.h.b16 %v1029
    %v3989 = vunpack.c.l.b16 %v1030
    %v3990 = vunpack.c.h.b16 %v1030
    %v3991 = vunpack.c.l.b16 %v1031
    %v3992 = vunpack.c.h.b16 %v1031
    %v3993 = vunpack.c.l.b16 %v1032
    %v3994 = vunpack.c.h.b16 %v1032
    %v3995 = vunpack.c.l.b16 %v1033
    %v3996 = vunpack.c.h.b16 %v1033
    %v3997 = vunpack.c.l.b16 %v1034
    %v3998 = vunpack.c.h.b16 %v1034
    %v3999 = vunpack.c.l.b16 %v1035
    %v4000 = vunpack.c.h.b16 %v1035
    %v4001 = vunpack.c.l.b16 %v1036
    %v4002 = vunpack.c.h.b16 %v1036
    %v4003 = vunpack.c.l.b16 %v1037
    %v4004 = vunpack.c.h.b16 %v1037
    %v4005 = vunpack.c.l.b16 %v1038
    %v4006 = vunpack.c.h.b16 %v1038
    %v4007 = vunpack.c.l.b16 %v1039
    %v4008 = vunpack.c.h.b16 %v1039
    %v4009 = vunpack.c.l.b16 %v1040
    %v4010 = vunpack.c.h.b16 %v1040
    %v4011 = vunpack.c.l.b16 %v1041
    %v4012 = vunpack.c.h.b16 %v1041
    %v4013 = vunpack.c.l.b16 %v1042
    %v4014 = vunpack.c.h.b16 %v1042
    %v4015 = vunpack.c.l.b16 %v1043
    %v4016 = vunpack.c.h.b16 %v1043
    %v4017 = vunpack.c.l.b16 %v1044
    %v4018 = vunpack.c.h.b16 %v1044
    %v4019 = vunpack.c.l.b16 %v1045
    %v4020 = vunpack.c.h.b16 %v1045
    %v4021 = vunpack.c.l.b16 %v1046
    %v4022 = vunpack.c.h.b16 %v1046
    %v4023 = vunpack.c.l.b16 %v1047
    %v4024 = vunpack.c.h.b16 %v1047
    %v4025 = vunpack.c.l.b16 %v1048
    %v4026 = vunpack.c.h.b16 %v1048
    %v4027 = vunpack.c.l.b16 %v1049
    %v4028 = vunpack.c.h.b16 %v1049
    %v4029 = vunpack.c.l.b16 %v1050
    %v4030 = vunpack.c.h.b16 %v1050
    %v4031 = vunpack.c.l.b16 %v1051
    %v4032 = vunpack.c.h.b16 %v1051
    %v4033 = vunpack.c.l.b16 %v1052
    %v4034 = vunpack.c.h.b16 %v1052
    %v4035 = vunpack.c.l.b16 %v1053
    %v4036 = vunpack.c.h.b16 %v1053
    %v4037 = vunpack.c.l.b16 %v1054
    %v4038 = vunpack.c.h.b16 %v1054
    %v4039 = vunpack.c.l.b16 %v1055
    %v4040 = vunpack.c.h.b16 %v1055
    %v4041 = vunpack.c.l.b16 %v1056
    %v4042 = vunpack.c.h.b16 %v1056
    %v4043 = vunpack.c.l.b16 %v1057
    %v4044 = vunpack.c.h.b16 %v1057
    %v4045 = vunpack.c.l.b16 %v1058
    %v4046 = vunpack.c.h.b16 %v1058
    %v4047 = vunpack.c.l.b16 %v1059
    %v4048 = vunpack.c.h.b16 %v1059
    %v4049 = vunpack.c.l.b16 %v1060
    %v4050 = vunpack.c.h.b16 %v1060
    %v4051 = vunpack.c.l.b16 %v1061
    %v4052 = vunpack.c.h.b16 %v1061
    %v4053 = vunpack.c.l.b16 %v1062
    %v4054 = vunpack.c.h.b16 %v1062
    %v4055 = vunpack.c.l.b16 %v1063
    %v4056 = vunpack.c.h.b16 %v1063
    %v4057 = vunpack.c.l.b16 %v1064
    %v4058 = vunpack.c.h.b16 %v1064
    %v4059 = vunpack.c.l.b16 %v1065
    %v4060 = vunpack.c.h.b16 %v1065
    %v4061 = vunpack.c.l.b16 %v1066
    %v4062 = vunpack.c.h.b16 %v1066
    %v4063 = vunpack.c.l.b16 %v1067
    %v4064 = vunpack.c.h.b16 %v1067
    %v4065 = vunpack.c.l.b16 %v1068
    %v4066 = vunpack.c.h.b16 %v1068
    %v4067 = vunpack.c.l.b16 %v1069
    %v4068 = vunpack.c.h.b16 %v1069
    %v4069 = vunpack.c.l.b16 %v1070
    %v4070 = vunpack.c.h.b16 %v1070
    %v4071 = vunpack.c.l.b16 %v1071
    %v4072 = vunpack.c.h.b16 %v1071
    %v4073 = vunpack.c.l.b16 %v1072
    %v4074 = vunpack.c.h.b16 %v1072
    %v4075 = vunpack.c.l.b16 %v1073
    %v4076 = vunpack.c.h.b16 %v1073
    %v4077 = vunpack.c.l.b16 %v1074
    %v4078 = vunpack.c.h.b16 %v1074
    %v4079 = vunpack.c.l.b16 %v1075
    %v4080 = vunpack.c.h.b16 %v1075
    %v4081 = vunpack.c.l.b16 %v1076
    %v4082 = vunpack.c.h.b16 %v1076
    %v4083 = vunpack.c.l.b16 %v1077
    %v4084 = vunpack.c.h.b16 %v1077
    %v4085 = vunpack.c.l.b16 %v1078
    %v4086 = vunpack.c.h.b16 %v1078
    %v4087 = vunpack.c.l.b16 %v1079
    %v4088 = vunpack.c.h.b16 %v1079
    %v4089 = vunpack.c.l.b16 %v1080
    %v4090 = vunpack.c.h.b16 %v1080
    %v4091 = vunpack.c.l.b16 %v1081
    %v4092 = vunpack.c.h.b16 %v1081
    %v4093 = vunpack.c.l.b16 %v1082
    %v4094 = vunpack.c.h.b16 %v1082
    %v4095 = vunpack.c.l.b16 %v1083
    %v4096 = vunpack.c.h.b16 %v1083
    %v4097 = vunpack.c.l.b16 %v1084
    %v4098 = vunpack.c.h.b16 %v1084
    %v4099 = vunpack.c.l.b16 %v1085
    %v4100 = vunpack.c.h.b16 %v1085
    %v4101 = vunpack.c.l.b16 %v1086
    %v4102 = vunpack.c.h.b16 %v1086
    %v4103 = vunpack.c.l.b16 %v1087
    %v4104 = vunpack.c.h.b16 %v1087
    %v4105 = vunpack.c.l.b16 %v1088
    %v4106 = vunpack.c.h.b16 %v1088
    %v4107 = vunpack.c.l.b16 %v1089
    %v4108 = vunpack.c.h.b16 %v1089
    %v4109 = vunpack.c.l.b16 %v1090
    %v4110 = vunpack.c.h.b16 %v1090
    %v4111 = vunpack.c.l.b16 %v1091
    %v4112 = vunpack.c.h.b16 %v1091
    %v4113 = vunpack.c.l.b16 %v1092
    %v4114 = vunpack.c.h.b16 %v1092
    %v4115 = vunpack.c.l.b16 %v1093
    %v4116 = vunpack.c.h.b16 %v1093
    %v4117 = vunpack.c.l.b16 %v1094
    %v4118 = vunpack.c.h.b16 %v1094
    %v4119 = vunpack.c.l.b16 %v1095
    %v4120 = vunpack.c.h.b16 %v1095
    %v4121 = vunpack.c.l.b16 %v1096
    %v4122 = vunpack.c.h.b16 %v1096
    %v4123 = vunpack.c.l.b16 %v1097
    %v4124 = vunpack.c.h.b16 %v1097
    %v4125 = vunpack.c.l.b16 %v1098
    %v4126 = vunpack.c.h.b16 %v1098
    %v4127 = vunpack.c.l.b16 %v1099
    %v4128 = vunpack.c.h.b16 %v1099
    %v4129 = vunpack.c.l.b16 %v1100
    %v4130 = vunpack.c.h.b16 %v1100
    %v4131 = vunpack.c.l.b16 %v1101
    %v4132 = vunpack.c.h.b16 %v1101
    %v4133 = vunpack.c.l.b16 %v1102
    %v4134 = vunpack.c.h.b16 %v1102
    %v4135 = vunpack.c.l.b16 %v1103
    %v4136 = vunpack.c.h.b16 %v1103
    %v4137 = vunpack.c.l.b16 %v1104
    %v4138 = vunpack.c.h.b16 %v1104
    %v4139 = vunpack.c.l.b16 %v1105
    %v4140 = vunpack.c.h.b16 %v1105
    %v4141 = vunpack.c.l.b16 %v1106
    %v4142 = vunpack.c.h.b16 %v1106
    %v4143 = vunpack.c.l.b16 %v1107
    %v4144 = vunpack.c.h.b16 %v1107
    %v4145 = vunpack.c.l.b16 %v1108
    %v4146 = vunpack.c.h.b16 %v1108
    %v4147 = vunpack.c.l.b16 %v1109
    %v4148 = vunpack.c.h.b16 %v1109
    %v4149 = vunpack.c.l.b16 %v1110
    %v4150 = vunpack.c.h.b16 %v1110
    %v4151 = vunpack.c.l.b16 %v1111
    %v4152 = vunpack.c.h.b16 %v1111
    %v4153 = vunpack.c.l.b16 %v1112
    %v4154 = vunpack.c.h.b16 %v1112
    %v4155 = vpack.c.b16 %v2163, %v2155
    %v4156 = vpack.c.b16 %v2164, %v2156
    %v4157 = vpack.c.b16 %v2165, %v2157
    %v4158 = vpack.c.b16 %v2166, %v2158
    %v4159 = vpack.c.b16 %v2167, %v2159
    %v4160 = vpack.c.b16 %v2168, %v2160
    %v4161 = vpack.c.b16 %v2169, %v2161
    %v4162 = vpack.c.b16 %v2170, %v2162
    %v4163 = vpack.c.b16 %v2179, %v2171
    %v4164 = vpack.c.b16 %v2180, %v2172
    %v4165 = vpack.c.b16 %v2181, %v2173
    %v4166 = vpack.c.b16 %v2182, %v2174
    %v4167 = vpack.c.b16 %v2183, %v2175
    %v4168 = vpack.c.b16 %v2184, %v2176
    %v4169 = vpack.c.b16 %v2185, %v2177
    %v4170 = vpack.c.b16 %v2186, %v2178
    %v4171 = vpack.c.b16 %v2195, %v2187
    %v4172 = vpack.c.b16 %v2196, %v2188
    %v4173 = vpack.c.b16 %v2197, %v2189
    %v4174 = vpack.c.b16 %v2198, %v2190
    %v4175 = vpack.c.b16 %v2199, %v2191
    %v4176 = vpack.c.b16 %v2200, %v2192
    %v4177 = vpack.c.b16 %v2201, %v2193
    %v4178 = vpack.c.b16 %v2202, %v2194
    %v4179 = vpack.c.b16 %v2211, %v2203
    %v4180 = vpack.c.b16 %v2212, %v2204
    %v4181 = vpack.c.b16 %v2213, %v2205
    %v4182 = vpack.c.b16 %v2214, %v2206
    %v4183 = vpack.c.b16 %v2215, %v2207
    %v4184 = vpack.c.b16 %v2216, %v2208
    %v4185 = vpack.c.b16 %v2217, %v2209
    %v4186 = vpack.c.b16 %v2218, %v2210
    %v4187 = vpack.c.b16 %v2227, %v2219
    %v4188 = vpack.c.b16 %v2228, %v2220
    %v4189 = vpack.c.b16 %v2229, %v2221
    %v4190 = vpack.c.b16 %v2230, %v2222
    %v4191 = vpack.c.b16 %v2231, %v2223
    %v4192 = vpack.c.b16 %v2232, %v2224
    %v4193 = vpack.c.b16 %v2233, %v2225
    %v4194 = vpack.c.b16 %v2234, %v2226
    %v4195 = vpack.c.b16 %v2243, %v2235
    %v4196 = vpack.c.b16 %v2244, %v2236
    %v4197 = vpack.c.b16 %v2245, %v2237
    %v4198 = vpack.c.b16 %v2246, %v2238
    %v4199 = vpack.c.b16 %v2247, %v2239
    %v4200 = vpack.c.b16 %v2248, %v2240
    %v4201 = vpack.c.b16 %v2249, %v2241
    %v4202 = vpack.c.b16 %v2250, %v2242
    %v4203 = vpack.c.b16 %v2259, %v2251
    %v4204 = vpack.c.b16 %v2260, %v2252
    %v4205 = vpack.c.b16 %v2261, %v2253
    %v4206 = vpack.c.b16 %v2262, %v2254
    %v4207 = vpack.c.b16 %v2263, %v2255
    %v4208 = vpack.c.b16 %v2264, %v2256
    %v4209 = vpack.c.b16 %v2265, %v2257
    %v4210 = vpack.c.b16 %v2266, %v2258
    %v4211 = vpack.c.b16 %v2275, %v2267
    %v4212 = vpack.c.b16 %v2276, %v2268
    %v4213 = vpack.c.b16 %v2277, %v2269
    %v4214 = vpack.c.b16 %v2278, %v2270
    %v4215 = vpack.c.b16 %v2279, %v2271
    %v4216 = vpack.c.b16 %v2280, %v2272
    %v4217 = vpack.c.b16 %v2281, %v2273
    %v4218 = vpack.c.b16 %v2282, %v2274
    %v4219 = vpack.c.b16 %v2291, %v2283
    %v4220 = vpack.c.b16 %v2292, %v2284
    %v4221 = vpack.c.b16 %v2293, %v2285
    %v4222 = vpack.c.b16 %v2294, %v2286
    %v4223 = vpack.c.b16 %v2295, %v2287
    %v4224 = vpack.c.b16 %v2296, %v2288
    %v4225 = vpack.c.b16 %v2297, %v2289
    %v4226 = vpack.c.b16 %v2298, %v2290
    %v4227 = vpack.c.b16 %v2307, %v2299
    %v4228 = vpack.c.b16 %v2308, %v2300
    %v4229 = vpack.c.b16 %v2309, %v2301
    %v4230 = vpack.c.b16 %v2310, %v2302
    %v4231 = vpack.c.b16 %v2311, %v2303
    %v4232 = vpack.c.b16 %v2312, %v2304
    %v4233 = vpack.c.b16 %v2313, %v2305
    %v4234 = vpack.c.b16 %v2314, %v2306
    %v4235 = vpack.c.b16 %v2323, %v2315
    %v4236 = vpack.c.b16 %v2324, %v2316
    %v4237 = vpack.c.b16 %v2325, %v2317
    %v4238 = vpack.c.b16 %v2326, %v2318
    %v4239 = vpack.c.b16 %v2327, %v2319
    %v4240 = vpack.c.b16 %v2328, %v2320
    %v4241 = vpack.c.b16 %v2329, %v2321
    %v4242 = vpack.c.b16 %v2330, %v2322
    %v4243 = vpack.c.b16 %v2339, %v2331
    %v4244 = vpack.c.b16 %v2340, %v2332
    %v4245 = vpack.c.b16 %v2341, %v2333
    %v4246 = vpack.c.b16 %v2342, %v2334
    %v4247 = vpack.c.b16 %v2343, %v2335
    %v4248 = vpack.c.b16 %v2344, %v2336
    %v4249 = vpack.c.b16 %v2345, %v2337
    %v4250 = vpack.c.b16 %v2346, %v2338
    %v4251 = vpack.c.b16 %v2355, %v2347
    %v4252 = vpack.c.b16 %v2356, %v2348
    %v4253 = vpack.c.b16 %v2357, %v2349
    %v4254 = vpack.c.b16 %v2358, %v2350
    %v4255 = vpack.c.b16 %v2359, %v2351
    %v4256 = vpack.c.b16 %v2360, %v2352
    %v4257 = vpack.c.b16 %v2361, %v2353
    %v4258 = vpack.c.b16 %v2362, %v2354
    %v4259 = vpack.c.b16 %v2371, %v2363
    %v4260 = vpack.c.b16 %v2372, %v2364
    %v4261 = vpack.c.b16 %v2373, %v2365
    %v4262 = vpack.c.b16 %v2374, %v2366
    %v4263 = vpack.c.b16 %v2375, %v2367
    %v4264 = vpack.c.b16 %v2376, %v2368
    %v4265 = vpack.c.b16 %v2377, %v2369
    %v4266 = vpack.c.b16 %v2378, %v2370
    %v4267 = vpack.c.b16 %v2387, %v2379
    %v4268 = vpack.c.b16 %v2388, %v2380
    %v4269 = vpack.c.b16 %v2389, %v2381
    %v4270 = vpack.c.b16 %v2390, %v2382
    %v4271 = vpack.c.b16 %v2391, %v2383
    %v4272 = vpack.c.b16 %v2392, %v2384
    %v4273 = vpack.c.b16 %v2393, %v2385
    %v4274 = vpack.c.b16 %v2394, %v2386
    %v4275 = vpack.c.b16 %v2403, %v2395
    %v4276 = vpack.c.b16 %v2404, %v2396
    %v4277 = vpack.c.b16 %v2405, %v2397
    %v4278 = vpack.c.b16 %v2406, %v2398
    %v4279 = vpack.c.b16 %v2407, %v2399
    %v4280 = vpack.c.b16 %v2408, %v2400
    %v4281 = vpack.c.b16 %v2409, %v2401
    %v4282 = vpack.c.b16 %v2410, %v2402
    %v4283 = vpack.c.b16 %v2419, %v2411
    %v4284 = vpack.c.b16 %v2420, %v2412
    %v4285 = vpack.c.b16 %v2421, %v2413
    %v4286 = vpack.c.b16 %v2422, %v2414
    %v4287 = vpack.c.b16 %v2423, %v2415
    %v4288 = vpack.c.b16 %v2424, %v2416
    %v4289 = vpack.c.b16 %v2425, %v2417
    %v4290 = vpack.c.b16 %v2426, %v2418
    %v4291 = vpack.c.b16 %v2435, %v2427
    %v4292 = vpack.c.b16 %v2436, %v2428
    %v4293 = vpack.c.b16 %v2437, %v2429
    %v4294 = vpack.c.b16 %v2438, %v2430
    %v4295 = vpack.c.b16 %v2439, %v2431
    %v4296 = vpack.c.b16 %v2440, %v2432
    %v4297 = vpack.c.b16 %v2441, %v2433
    %v4298 = vpack.c.b16 %v2442, %v2434
    %v4299 = vpack.c.b16 %v2451, %v2443
    %v4300 = vpack.c.b16 %v2452, %v2444
    %v4301 = vpack.c.b16 %v2453, %v2445
    %v4302 = vpack.c.b16 %v2454, %v2446
    %v4303 = vpack.c.b16 %v2455, %v2447
    %v4304 = vpack.c.b16 %v2456, %v2448
    %v4305 = vpack.c.b16 %v2457, %v2449
    %v4306 = vpack.c.b16 %v2458, %v2450
    %v4307 = vpack.c.b16 %v2467, %v2459
    %v4308 = vpack.c.b16 %v2468, %v2460
    %v4309 = vpack.c.b16 %v2469, %v2461
    %v4310 = vpack.c.b16 %v2470, %v2462
    %v4311 = vpack.c.b16 %v2471, %v2463
    %v4312 = vpack.c.b16 %v2472, %v2464
    %v4313 = vpack.c.b16 %v2473, %v2465
    %v4314 = vpack.c.b16 %v2474, %v2466
    %v4315 = vpack.c.b16 %v2483, %v2475
    %v4316 = vpack.c.b16 %v2484, %v2476
    %v4317 = vpack.c.b16 %v2485, %v2477
    %v4318 = vpack.c.b16 %v2486, %v2478
    %v4319 = vpack.c.b16 %v2487, %v2479
    %v4320 = vpack.c.b16 %v2488, %v2480
    %v4321 = vpack.c.b16 %v2489, %v2481
    %v4322 = vpack.c.b16 %v2490, %v2482
    %v4323 = vpack.c.b16 %v2499, %v2491
    %v4324 = vpack.c.b16 %v2500, %v2492
    %v4325 = vpack.c.b16 %v2501, %v2493
    %v4326 = vpack.c.b16 %v2502, %v2494
    %v4327 = vpack.c.b16 %v2503, %v2495
    %v4328 = vpack.c.b16 %v2504, %v2496
    %v4329 = vpack.c.b16 %v2505, %v2497
    %v4330 = vpack.c.b16 %v2506, %v2498
    %v4331 = vpack.c.b16 %v2515, %v2507
    %v4332 = vpack.c.b16 %v2516, %v2508
    %v4333 = vpack.c.b16 %v2517, %v2509
    %v4334 = vpack.c.b16 %v2518, %v2510
    %v4335 = vpack.c.b16 %v2519, %v2511
    %v4336 = vpack.c.b16 %v2520, %v2512
    %v4337 = vpack.c.b16 %v2521, %v2513
    %v4338 = vpack.c.b16 %v2522, %v2514
    %v4339 = vpack.c.b16 %v2531, %v2523
    %v4340 = vpack.c.b16 %v2532, %v2524
    %v4341 = vpack.c.b16 %v2533, %v2525
    %v4342 = vpack.c.b16 %v2534, %v2526
    %v4343 = vpack.c.b16 %v2535, %v2527
    %v4344 = vpack.c.b16 %v2536, %v2528
    %v4345 = vpack.c.b16 %v2537, %v2529
    %v4346 = vpack.c.b16 %v2538, %v2530
    %v4347 = vpack.c.b16 %v2547, %v2539
    %v4348 = vpack.c.b16 %v2548, %v2540
    %v4349 = vpack.c.b16 %v2549, %v2541
    %v4350 = vpack.c.b16 %v2550, %v2542
    %v4351 = vpack.c.b16 %v2551, %v2543
    %v4352 = vpack.c.b16 %v2552, %v2544
    %v4353 = vpack.c.b16 %v2553, %v2545
    %v4354 = vpack.c.b16 %v2554, %v2546
    %v4355 = vpack.c.b16 %v2563, %v2555
    %v4356 = vpack.c.b16 %v2564, %v2556
    %v4357 = vpack.c.b16 %v2565, %v2557
    %v4358 = vpack.c.b16 %v2566, %v2558
    %v4359 = vpack.c.b16 %v2567, %v2559
    %v4360 = vpack.c.b16 %v2568, %v2560
    %v4361 = vpack.c.b16 %v2569, %v2561
    %v4362 = vpack.c.b16 %v2570, %v2562
    %v4363 = vpack.c.b16 %v2579, %v2571
    %v4364 = vpack.c.b16 %v2580, %v2572
    %v4365 = vpack.c.b16 %v2581, %v2573
    %v4366 = vpack.c.b16 %v2582, %v2574
    %v4367 = vpack.c.b16 %v2583, %v2575
    %v4368 = vpack.c.b16 %v2584, %v2576
    %v4369 = vpack.c.b16 %v2585, %v2577
    %v4370 = vpack.c.b16 %v2586, %v2578
    %v4371 = vpack.c.b16 %v2595, %v2587
    %v4372 = vpack.c.b16 %v2596, %v2588
    %v4373 = vpack.c.b16 %v2597, %v2589
    %v4374 = vpack.c.b16 %v2598, %v2590
    %v4375 = vpack.c.b16 %v2599, %v2591
    %v4376 = vpack.c.b16 %v2600, %v2592
    %v4377 = vpack.c.b16 %v2601, %v2593
    %v4378 = vpack.c.b16 %v2602, %v2594
    %v4379 = vpack.c.b16 %v2611, %v2603
    %v4380 = vpack.c.b16 %v2612, %v2604
    %v4381 = vpack.c.b16 %v2613, %v2605
    %v4382 = vpack.c.b16 %v2614, %v2606
    %v4383 = vpack.c.b16 %v2615, %v2607
    %v4384 = vpack.c.b16 %v2616, %v2608
    %v4385 = vpack.c.b16 %v2617, %v2609
    %v4386 = vpack.c.b16 %v2618, %v2610
    %v4387 = vpack.c.b16 %v2627, %v2619
    %v4388 = vpack.c.b16 %v2628, %v2620
    %v4389 = vpack.c.b16 %v2629, %v2621
    %v4390 = vpack.c.b16 %v2630, %v2622
    %v4391 = vpack.c.b16 %v2631, %v2623
    %v4392 = vpack.c.b16 %v2632, %v2624
    %v4393 = vpack.c.b16 %v2633, %v2625
    %v4394 = vpack.c.b16 %v2634, %v2626
    %v4395 = vpack.c.b16 %v2643, %v2635
    %v4396 = vpack.c.b16 %v2644, %v2636
    %v4397 = vpack.c.b16 %v2645, %v2637
    %v4398 = vpack.c.b16 %v2646, %v2638
    %v4399 = vpack.c.b16 %v2647, %v2639
    %v4400 = vpack.c.b16 %v2648, %v2640
    %v4401 = vpack.c.b16 %v2649, %v2641
    %v4402 = vpack.c.b16 %v2650, %v2642
    %v4403 = vpack.c.b16 %v2659, %v2651
    %v4404 = vpack.c.b16 %v2660, %v2652
    %v4405 = vpack.c.b16 %v2661, %v2653
    %v4406 = vpack.c.b16 %v2662, %v2654
    %v4407 = vpack.c.b16 %v2663, %v2655
    %v4408 = vpack.c.b16 %v2664, %v2656
    %v4409 = vpack.c.b16 %v2665, %v2657
    %v4410 = vpack.c.b16 %v2666, %v2658
    %v4411 = vpack.c.b16 %v2675, %v2667
    %v4412 = vpack.c.b16 %v2676, %v2668
    %v4413 = vpack.c.b16 %v2677, %v2669
    %v4414 = vpack.c.b16 %v2678, %v2670
    %v4415 = vpack.c.b16 %v2679, %v2671
    %v4416 = vpack.c.b16 %v2680, %v2672
    %v4417 = vpack.c.b16 %v2681, %v2673
    %v4418 = vpack.c.b16 %v2682, %v2674
    %v4419 = vpack.c.b16 %v2691, %v2683
    %v4420 = vpack.c.b16 %v2692, %v2684
    %v4421 = vpack.c.b16 %v2693, %v2685
    %v4422 = vpack.c.b16 %v2694, %v2686
    %v4423 = vpack.c.b16 %v2695, %v2687
    %v4424 = vpack.c.b16 %v2696, %v2688
    %v4425 = vpack.c.b16 %v2697, %v2689
    %v4426 = vpack.c.b16 %v2698, %v2690
    %v4427 = vpack.c.b16 %v2707, %v2699
    %v4428 = vpack.c.b16 %v2708, %v2700
    %v4429 = vpack.c.b16 %v2709, %v2701
    %v4430 = vpack.c.b16 %v2710, %v2702
    %v4431 = vpack.c.b16 %v2711, %v2703
    %v4432 = vpack.c.b16 %v2712, %v2704
    %v4433 = vpack.c.b16 %v2713, %v2705
    %v4434 = vpack.c.b16 %v2714, %v2706
    %v4435 = vpack.c.b16 %v2723, %v2715
    %v4436 = vpack.c.b16 %v2724, %v2716
    %v4437 = vpack.c.b16 %v2725, %v2717
    %v4438 = vpack.c.b16 %v2726, %v2718
    %v4439 = vpack.c.b16 %v2727, %v2719
    %v4440 = vpack.c.b16 %v2728, %v2720
    %v4441 = vpack.c.b16 %v2729, %v2721
    %v4442 = vpack.c.b16 %v2730, %v2722
    %v4443 = vpack.c.b16 %v2739, %v2731
    %v4444 = vpack.c.b16 %v2740, %v2732
    %v4445 = vpack.c.b16 %v2741, %v2733
    %v4446 = vpack.c.b16 %v2742, %v2734
    %v4447 = vpack.c.b16 %v2743, %v2735
    %v4448 = vpack.c.b16 %v2744, %v2736
    %v4449 = vpack.c.b16 %v2745, %v2737
    %v4450 = vpack.c.b16 %v2746, %v2738
    %v4451 = vpack.c.b16 %v2755, %v2747
    %v4452 = vpack.c.b16 %v2756, %v2748
    %v4453 = vpack.c.b16 %v2757, %v2749
    %v4454 = vpack.c.b16 %v2758, %v2750
    %v4455 = vpack.c.b16 %v2759, %v2751
    %v4456 = vpack.c.b16 %v2760, %v2752
    %v4457 = vpack.c.b16 %v2761, %v2753
    %v4458 = vpack.c.b16 %v2762, %v2754
    %v4459 = vpack.c.b16 %v2771, %v2763
    %v4460 = vpack.c.b16 %v2772, %v2764
    %v4461 = vpack.c.b16 %v2773, %v2765
    %v4462 = vpack.c.b16 %v2774, %v2766
    %v4463 = vpack.c.b16 %v2775, %v2767
    %v4464 = vpack.c.b16 %v2776, %v2768
    %v4465 = vpack.c.b16 %v2777, %v2769
    %v4466 = vpack.c.b16 %v2778, %v2770
    %v4467 = vpack.c.b16 %v2787, %v2779
    %v4468 = vpack.c.b16 %v2788, %v2780
    %v4469 = vpack.c.b16 %v2789, %v2781
    %v4470 = vpack.c.b16 %v2790, %v2782
    %v4471 = vpack.c.b16 %v2791, %v2783
    %v4472 = vpack.c.b16 %v2792, %v2784
    %v4473 = vpack.c.b16 %v2793, %v2785
    %v4474 = vpack.c.b16 %v2794, %v2786
    %v4475 = vpack.c.b16 %v2803, %v2795
    %v4476 = vpack.c.b16 %v2804, %v2796
    %v4477 = vpack.c.b16 %v2805, %v2797
    %v4478 = vpack.c.b16 %v2806, %v2798
    %v4479 = vpack.c.b16 %v2807, %v2799
    %v4480 = vpack.c.b16 %v2808, %v2800
    %v4481 = vpack.c.b16 %v2809, %v2801
    %v4482 = vpack.c.b16 %v2810, %v2802
    %v4483 = vpack.c.b16 %v2819, %v2811
    %v4484 = vpack.c.b16 %v2820, %v2812
    %v4485 = vpack.c.b16 %v2821, %v2813
    %v4486 = vpack.c.b16 %v2822, %v2814
    %v4487 = vpack.c.b16 %v2823, %v2815
    %v4488 = vpack.c.b16 %v2824, %v2816
    %v4489 = vpack.c.b16 %v2825, %v2817
    %v4490 = vpack.c.b16 %v2826, %v2818
    %v4491 = vpack.c.b16 %v2835, %v2827
    %v4492 = vpack.c.b16 %v2836, %v2828
    %v4493 = vpack.c.b16 %v2837, %v2829
    %v4494 = vpack.c.b16 %v2838, %v2830
    %v4495 = vpack.c.b16 %v2839, %v2831
    %v4496 = vpack.c.b16 %v2840, %v2832
    %v4497 = vpack.c.b16 %v2841, %v2833
    %v4498 = vpack.c.b16 %v2842, %v2834
    %v4499 = vpack.c.b16 %v2851, %v2843
    %v4500 = vpack.c.b16 %v2852, %v2844
    %v4501 = vpack.c.b16 %v2853, %v2845
    %v4502 = vpack.c.b16 %v2854, %v2846
    %v4503 = vpack.c.b16 %v2855, %v2847
    %v4504 = vpack.c.b16 %v2856, %v2848
    %v4505 = vpack.c.b16 %v2857, %v2849
    %v4506 = vpack.c.b16 %v2858, %v2850
    %v4507 = vpack.c.b16 %v2867, %v2859
    %v4508 = vpack.c.b16 %v2868, %v2860
    %v4509 = vpack.c.b16 %v2869, %v2861
    %v4510 = vpack.c.b16 %v2870, %v2862
    %v4511 = vpack.c.b16 %v2871, %v2863
    %v4512 = vpack.c.b16 %v2872, %v2864
    %v4513 = vpack.c.b16 %v2873, %v2865
    %v4514 = vpack.c.b16 %v2874, %v2866
    %v4515 = vpack.c.b16 %v2883, %v2875
    %v4516 = vpack.c.b16 %v2884, %v2876
    %v4517 = vpack.c.b16 %v2885, %v2877
    %v4518 = vpack.c.b16 %v2886, %v2878
    %v4519 = vpack.c.b16 %v2887, %v2879
    %v4520 = vpack.c.b16 %v2888, %v2880
    %v4521 = vpack.c.b16 %v2889, %v2881
    %v4522 = vpack.c.b16 %v2890, %v2882
    %v4523 = vpack.c.b16 %v2899, %v2891
    %v4524 = vpack.c.b16 %v2900, %v2892
    %v4525 = vpack.c.b16 %v2901, %v2893
    %v4526 = vpack.c.b16 %v2902, %v2894
    %v4527 = vpack.c.b16 %v2903, %v2895
    %v4528 = vpack.c.b16 %v2904, %v2896
    %v4529 = vpack.c.b16 %v2905, %v2897
    %v4530 = vpack.c.b16 %v2906, %v2898
    %v4531 = vpack.c.b16 %v2915, %v2907
    %v4532 = vpack.c.b16 %v2916, %v2908
    %v4533 = vpack.c.b16 %v2917, %v2909
    %v4534 = vpack.c.b16 %v2918, %v2910
    %v4535 = vpack.c.b16 %v2919, %v2911
    %v4536 = vpack.c.b16 %v2920, %v2912
    %v4537 = vpack.c.b16 %v2921, %v2913
    %v4538 = vpack.c.b16 %v2922, %v2914
    %v4539 = vpack.c.b16 %v2931, %v2923
    %v4540 = vpack.c.b16 %v2932, %v2924
    %v4541 = vpack.c.b16 %v2933, %v2925
    %v4542 = vpack.c.b16 %v2934, %v2926
    %v4543 = vpack.c.b16 %v2935, %v2927
    %v4544 = vpack.c.b16 %v2936, %v2928
    %v4545 = vpack.c.b16 %v2937, %v2929
    %v4546 = vpack.c.b16 %v2938, %v2930
    %v4547 = vpack.c.b16 %v2947, %v2939
    %v4548 = vpack.c.b16 %v2948, %v2940
    %v4549 = vpack.c.b16 %v2949, %v2941
    %v4550 = vpack.c.b16 %v2950, %v2942
    %v4551 = vpack.c.b16 %v2951, %v2943
    %v4552 = vpack.c.b16 %v2952, %v2944
    %v4553 = vpack.c.b16 %v2953, %v2945
    %v4554 = vpack.c.b16 %v2954, %v2946
    %v4555 = vpack.c.b16 %v2963, %v2955
    %v4556 = vpack.c.b16 %v2964, %v2956
    %v4557 = vpack.c.b16 %v2965, %v2957
    %v4558 = vpack.c.b16 %v2966, %v2958
    %v4559 = vpack.c.b16 %v2967, %v2959
    %v4560 = vpack.c.b16 %v2968, %v2960
    %v4561 = vpack.c.b16 %v2969, %v2961
    %v4562 = vpack.c.b16 %v2970, %v2962
    %v4563 = vpack.c.b16 %v2979, %v2971
    %v4564 = vpack.c.b16 %v2980, %v2972
    %v4565 = vpack.c.b16 %v2981, %v2973
    %v4566 = vpack.c.b16 %v2982, %v2974
    %v4567 = vpack.c.b16 %v2983, %v2975
    %v4568 = vpack.c.b16 %v2984, %v2976
    %v4569 = vpack.c.b16 %v2985, %v2977
    %v4570 = vpack.c.b16 %v2986, %v2978
    %v4571 = vpack.c.b16 %v2995, %v2987
    %v4572 = vpack.c.b16 %v2996, %v2988
    %v4573 = vpack.c.b16 %v2997, %v2989
    %v4574 = vpack.c.b16 %v2998, %v2990
    %v4575 = vpack.c.b16 %v2999, %v2991
    %v4576 = vpack.c.b16 %v3000, %v2992
    %v4577 = vpack.c.b16 %v3001, %v2993
    %v4578 = vpack.c.b16 %v3002, %v2994
    %v4579 = vpack.c.b16 %v3011, %v3003
    %v4580 = vpack.c.b16 %v3012, %v3004
    %v4581 = vpack.c.b16 %v3013, %v3005
    %v4582 = vpack.c.b16 %v3014, %v3006
    %v4583 = vpack.c.b16 %v3015, %v3007
    %v4584 = vpack.c.b16 %v3016, %v3008
    %v4585 = vpack.c.b16 %v3017, %v3009
    %v4586 = vpack.c.b16 %v3018, %v3010
    %v4587 = vpack.c.b16 %v3027, %v3019
    %v4588 = vpack.c.b16 %v3028, %v3020
    %v4589 = vpack.c.b16 %v3029, %v3021
    %v4590 = vpack.c.b16 %v3030, %v3022
    %v4591 = vpack.c.b16 %v3031, %v3023
    %v4592 = vpack.c.b16 %v3032, %v3024
    %v4593 = vpack.c.b16 %v3033, %v3025
    %v4594 = vpack.c.b16 %v3034, %v3026
    %v4595 = vpack.c.b16 %v3043, %v3035
    %v4596 = vpack.c.b16 %v3044, %v3036
    %v4597 = vpack.c.b16 %v3045, %v3037
    %v4598 = vpack.c.b16 %v3046, %v3038
    %v4599 = vpack.c.b16 %v3047, %v3039
    %v4600 = vpack.c.b16 %v3048, %v3040
    %v4601 = vpack.c.b16 %v3049, %v3041
    %v4602 = vpack.c.b16 %v3050, %v3042
    %v4603 = vpack.c.b16 %v3059, %v3051
    %v4604 = vpack.c.b16 %v3060, %v3052
    %v4605 = vpack.c.b16 %v3061, %v3053
    %v4606 = vpack.c.b16 %v3062, %v3054
    %v4607 = vpack.c.b16 %v3063, %v3055
    %v4608 = vpack.c.b16 %v3064, %v3056
    %v4609 = vpack.c.b16 %v3065, %v3057
    %v4610 = vpack.c.b16 %v3066, %v3058
    %v4611 = vpack.c.b16 %v3075, %v3067
    %v4612 = vpack.c.b16 %v3076, %v3068
    %v4613 = vpack.c.b16 %v3077, %v3069
    %v4614 = vpack.c.b16 %v3078, %v3070
    %v4615 = vpack.c.b16 %v3079, %v3071
    %v4616 = vpack.c.b16 %v3080, %v3072
    %v4617 = vpack.c.b16 %v3081, %v3073
    %v4618 = vpack.c.b16 %v3082, %v3074
    %v4619 = vpack.c.b16 %v3091, %v3083
    %v4620 = vpack.c.b16 %v3092, %v3084
    %v4621 = vpack.c.b16 %v3093, %v3085
    %v4622 = vpack.c.b16 %v3094, %v3086
    %v4623 = vpack.c.b16 %v3095, %v3087
    %v4624 = vpack.c.b16 %v3096, %v3088
    %v4625 = vpack.c.b16 %v3097, %v3089
    %v4626 = vpack.c.b16 %v3098, %v3090
    %v4627 = vpack.c.b16 %v3107, %v3099
    %v4628 = vpack.c.b16 %v3108, %v3100
    %v4629 = vpack.c.b16 %v3109, %v3101
    %v4630 = vpack.c.b16 %v3110, %v3102
    %v4631 = vpack.c.b16 %v3111, %v3103
    %v4632 = vpack.c.b16 %v3112, %v3104
    %v4633 = vpack.c.b16 %v3113, %v3105
    %v4634 = vpack.c.b16 %v3114, %v3106
    %v4635 = vpack.c.b16 %v3123, %v3115
    %v4636 = vpack.c.b16 %v3124, %v3116
    %v4637 = vpack.c.b16 %v3125, %v3117
    %v4638 = vpack.c.b16 %v3126, %v3118
    %v4639 = vpack.c.b16 %v3127, %v3119
    %v4640 = vpack.c.b16 %v3128, %v3120
    %v4641 = vpack.c.b16 %v3129, %v3121
    %v4642 = vpack.c.b16 %v3130, %v3122
    %v4643 = vpack.c.b16 %v3139, %v3131
    %v4644 = vpack.c.b16 %v3140, %v3132
    %v4645 = vpack.c.b16 %v3141, %v3133
    %v4646 = vpack.c.b16 %v3142, %v3134
    %v4647 = vpack.c.b16 %v3143, %v3135
    %v4648 = vpack.c.b16 %v3144, %v3136
    %v4649 = vpack.c.b16 %v3145, %v3137
    %v4650 = vpack.c.b16 %v3146, %v3138
    %v4651 = vpack.c.b16 %v3155, %v3147
    %v4652 = vpack.c.b16 %v3156, %v3148
    %v4653 = vpack.c.b16 %v3157, %v3149
    %v4654 = vpack.c.b16 %v3158, %v3150
    %v4655 = vpack.c.b16 %v3159, %v3151
    %v4656 = vpack.c.b16 %v3160, %v3152
    %v4657 = vpack.c.b16 %v3161, %v3153
    %v4658 = vpack.c.b16 %v3162, %v3154
    %v4659 = vpack.c.b16 %v3171, %v3163
    %v4660 = vpack.c.b16 %v3172, %v3164
    %v4661 = vpack.c.b16 %v3173, %v3165
    %v4662 = vpack.c.b16 %v3174, %v3166
    %v4663 = vpack.c.b16 %v3175, %v3167
    %v4664 = vpack.c.b16 %v3176, %v3168
    %v4665 = vpack.c.b16 %v3177, %v3169
    %v4666 = vpack.c.b16 %v3178, %v3170
    %v4667 = vpack.c.b16 %v3187, %v3179
    %v4668 = vpack.c.b16 %v3188, %v3180
    %v4669 = vpack.c.b16 %v3189, %v3181
    %v4670 = vpack.c.b16 %v3190, %v3182
    %v4671 = vpack.c.b16 %v3191, %v3183
    %v4672 = vpack.c.b16 %v3192, %v3184
    %v4673 = vpack.c.b16 %v3193, %v3185
    %v4674 = vpack.c.b16 %v3194, %v3186
    %v4675 = vpack.c.b16 %v3203, %v3195
    %v4676 = vpack.c.b16 %v3204, %v3196
    %v4677 = vpack.c.b16 %v3205, %v3197
    %v4678 = vpack.c.b16 %v3206, %v3198
    %v4679 = vpack.c.b16 %v3207, %v3199
    %v4680 = vpack.c.b16 %v3208, %v3200
    %v4681 = vpack.c.b16 %v3209, %v3201
    %v4682 = vpack.c.b16 %v3210, %v3202
    %v4683 = vpack.c.b16 %v3219, %v3211
    %v4684 = vpack.c.b16 %v3220, %v3212
    %v4685 = vpack.c.b16 %v3221, %v3213
    %v4686 = vpack.c.b16 %v3222, %v3214
    %v4687 = vpack.c.b16 %v3223, %v3215
    %v4688 = vpack.c.b16 %v3224, %v3216
    %v4689 = vpack.c.b16 %v3225, %v3217
    %v4690 = vpack.c.b16 %v3226, %v3218
    %v4691 = vpack.c.b16 %v3235, %v3227
    %v4692 = vpack.c.b16 %v3236, %v3228
    %v4693 = vpack.c.b16 %v3237, %v3229
    %v4694 = vpack.c.b16 %v3238, %v3230
    %v4695 = vpack.c.b16 %v3239, %v3231
    %v4696 = vpack.c.b16 %v3240, %v3232
    %v4697 = vpack.c.b16 %v3241, %v3233
    %v4698 = vpack.c.b16 %v3242, %v3234
    %v4699 = vpack.c.b16 %v3251, %v3243
    %v4700 = vpack.c.b16 %v3252, %v3244
    %v4701 = vpack.c.b16 %v3253, %v3245
    %v4702 = vpack.c.b16 %v3254, %v3246
    %v4703 = vpack.c.b16 %v3255, %v3247
    %v4704 = vpack.c.b16 %v3256, %v3248
    %v4705 = vpack.c.b16 %v3257, %v3249
    %v4706 = vpack.c.b16 %v3258, %v3250
    %v4707 = vpack.c.b16 %v3267, %v3259
    %v4708 = vpack.c.b16 %v3268, %v3260
    %v4709 = vpack.c.b16 %v3269, %v3261
    %v4710 = vpack.c.b16 %v3270, %v3262
    %v4711 = vpack.c.b16 %v3271, %v3263
    %v4712 = vpack.c.b16 %v3272, %v3264
    %v4713 = vpack.c.b16 %v3273, %v3265
    %v4714 = vpack.c.b16 %v3274, %v3266
    %v4715 = vpack.c.b16 %v3283, %v3275
    %v4716 = vpack.c.b16 %v3284, %v3276
    %v4717 = vpack.c.b16 %v3285, %v3277
    %v4718 = vpack.c.b16 %v3286, %v3278
    %v4719 = vpack.c.b16 %v3287, %v3279
    %v4720 = vpack.c.b16 %v3288, %v3280
    %v4721 = vpack.c.b16 %v3289, %v3281
    %v4722 = vpack.c.b16 %v3290, %v3282
    %v4723 = vpack.c.b16 %v3299, %v3291
    %v4724 = vpack.c.b16 %v3300, %v3292
    %v4725 = vpack.c.b16 %v3301, %v3293
    %v4726 = vpack.c.b16 %v3302, %v3294
    %v4727 = vpack.c.b16 %v3303, %v3295
    %v4728 = vpack.c.b16 %v3304, %v3296
    %v4729 = vpack.c.b16 %v3305, %v3297
    %v4730 = vpack.c.b16 %v3306, %v3298
    %v4731 = vpack.c.b16 %v3315, %v3307
    %v4732 = vpack.c.b16 %v3316, %v3308
    %v4733 = vpack.c.b16 %v3317, %v3309
    %v4734 = vpack.c.b16 %v3318, %v3310
    %v4735 = vpack.c.b16 %v3319, %v3311
    %v4736 = vpack.c.b16 %v3320, %v3312
    %v4737 = vpack.c.b16 %v3321, %v3313
    %v4738 = vpack.c.b16 %v3322, %v3314
    %v4739 = vpack.c.b16 %v3331, %v3323
    %v4740 = vpack.c.b16 %v3332, %v3324
    %v4741 = vpack.c.b16 %v3333, %v3325
    %v4742 = vpack.c.b16 %v3334, %v3326
    %v4743 = vpack.c.b16 %v3335, %v3327
    %v4744 = vpack.c.b16 %v3336, %v3328
    %v4745 = vpack.c.b16 %v3337, %v3329
    %v4746 = vpack.c.b16 %v3338, %v3330
    %v4747 = vpack.c.b16 %v3347, %v3339
    %v4748 = vpack.c.b16 %v3348, %v3340
    %v4749 = vpack.c.b16 %v3349, %v3341
    %v4750 = vpack.c.b16 %v3350, %v3342
    %v4751 = vpack.c.b16 %v3351, %v3343
    %v4752 = vpack.c.b16 %v3352, %v3344
    %v4753 = vpack.c.b16 %v3353, %v3345
    %v4754 = vpack.c.b16 %v3354, %v3346
    %v4755 = vpack.c.b16 %v3363, %v3355
    %v4756 = vpack.c.b16 %v3364, %v3356
    %v4757 = vpack.c.b16 %v3365, %v3357
    %v4758 = vpack.c.b16 %v3366, %v3358
    %v4759 = vpack.c.b16 %v3367, %v3359
    %v4760 = vpack.c.b16 %v3368, %v3360
    %v4761 = vpack.c.b16 %v3369, %v3361
    %v4762 = vpack.c.b16 %v3370, %v3362
    %v4763 = vpack.c.b16 %v3379, %v3371
    %v4764 = vpack.c.b16 %v3380, %v3372
    %v4765 = vpack.c.b16 %v3381, %v3373
    %v4766 = vpack.c.b16 %v3382, %v3374
    %v4767 = vpack.c.b16 %v3383, %v3375
    %v4768 = vpack.c.b16 %v3384, %v3376
    %v4769 = vpack.c.b16 %v3385, %v3377
    %v4770 = vpack.c.b16 %v3386, %v3378
    %v4771 = vpack.c.b16 %v3395, %v3387
    %v4772 = vpack.c.b16 %v3396, %v3388
    %v4773 = vpack.c.b16 %v3397, %v3389
    %v4774 = vpack.c.b16 %v3398, %v3390
    %v4775 = vpack.c.b16 %v3399, %v3391
    %v4776 = vpack.c.b16 %v3400, %v3392
    %v4777 = vpack.c.b16 %v3401, %v3393
    %v4778 = vpack.c.b16 %v3402, %v3394
    %v4779 = vpack.c.b16 %v3411, %v3403
    %v4780 = vpack.c.b16 %v3412, %v3404
    %v4781 = vpack.c.b16 %v3413, %v3405
    %v4782 = vpack.c.b16 %v3414, %v3406
    %v4783 = vpack.c.b16 %v3415, %v3407
    %v4784 = vpack.c.b16 %v3416, %v3408
    %v4785 = vpack.c.b16 %v3417, %v3409
    %v4786 = vpack.c.b16 %v3418, %v3410
    %v4787 = vpack.c.b16 %v3427, %v3419
    %v4788 = vpack.c.b16 %v3428, %v3420
    %v4789 = vpack.c.b16 %v3429, %v3421
    %v4790 = vpack.c.b16 %v3430, %v3422
    %v4791 = vpack.c.b16 %v3431, %v3423
    %v4792 = vpack.c.b16 %v3432, %v3424
    %v4793 = vpack.c.b16 %v3433, %v3425
    %v4794 = vpack.c.b16 %v3434, %v3426
    %v4795 = vpack.c.b16 %v3443, %v3435
    %v4796 = vpack.c.b16 %v3444, %v3436
    %v4797 = vpack.c.b16 %v3445, %v3437
    %v4798 = vpack.c.b16 %v3446, %v3438
    %v4799 = vpack.c.b16 %v3447, %v3439
    %v4800 = vpack.c.b16 %v3448, %v3440
    %v4801 = vpack.c.b16 %v3449, %v3441
    %v4802 = vpack.c.b16 %v3450, %v3442
    %v4803 = vpack.c.b16 %v3459, %v3451
    %v4804 = vpack.c.b16 %v3460, %v3452
    %v4805 = vpack.c.b16 %v3461, %v3453
    %v4806 = vpack.c.b16 %v3462, %v3454
    %v4807 = vpack.c.b16 %v3463, %v3455
    %v4808 = vpack.c.b16 %v3464, %v3456
    %v4809 = vpack.c.b16 %v3465, %v3457
    %v4810 = vpack.c.b16 %v3466, %v3458
    %v4811 = vpack.c.b16 %v3475, %v3467
    %v4812 = vpack.c.b16 %v3476, %v3468
    %v4813 = vpack.c.b16 %v3477, %v3469
    %v4814 = vpack.c.b16 %v3478, %v3470
    %v4815 = vpack.c.b16 %v3479, %v3471
    %v4816 = vpack.c.b16 %v3480, %v3472
    %v4817 = vpack.c.b16 %v3481, %v3473
    %v4818 = vpack.c.b16 %v3482, %v3474
    %v4819 = vpack.c.b16 %v3491, %v3483
    %v4820 = vpack.c.b16 %v3492, %v3484
    %v4821 = vpack.c.b16 %v3493, %v3485
    %v4822 = vpack.c.b16 %v3494, %v3486
    %v4823 = vpack.c.b16 %v3495, %v3487
    %v4824 = vpack.c.b16 %v3496, %v3488
    %v4825 = vpack.c.b16 %v3497, %v3489
    %v4826 = vpack.c.b16 %v3498, %v3490
    %v4827 = vpack.c.b16 %v3507, %v3499
    %v4828 = vpack.c.b16 %v3508, %v3500
    %v4829 = vpack.c.b16 %v3509, %v3501
    %v4830 = vpack.c.b16 %v3510, %v3502
    %v4831 = vpack.c.b16 %v3511, %v3503
    %v4832 = vpack.c.b16 %v3512, %v3504
    %v4833 = vpack.c.b16 %v3513, %v3505
    %v4834 = vpack.c.b16 %v3514, %v3506
    %v4835 = vpack.c.b16 %v3523, %v3515
    %v4836 = vpack.c.b16 %v3524, %v3516
    %v4837 = vpack.c.b16 %v3525, %v3517
    %v4838 = vpack.c.b16 %v3526, %v3518
    %v4839 = vpack.c.b16 %v3527, %v3519
    %v4840 = vpack.c.b16 %v3528, %v3520
    %v4841 = vpack.c.b16 %v3529, %v3521
    %v4842 = vpack.c.b16 %v3530, %v3522
    %v4843 = vpack.c.b16 %v3539, %v3531
    %v4844 = vpack.c.b16 %v3540, %v3532
    %v4845 = vpack.c.b16 %v3541, %v3533
    %v4846 = vpack.c.b16 %v3542, %v3534
    %v4847 = vpack.c.b16 %v3543, %v3535
    %v4848 = vpack.c.b16 %v3544, %v3536
    %v4849 = vpack.c.b16 %v3545, %v3537
    %v4850 = vpack.c.b16 %v3546, %v3538
    %v4851 = vpack.c.b16 %v3555, %v3547
    %v4852 = vpack.c.b16 %v3556, %v3548
    %v4853 = vpack.c.b16 %v3557, %v3549
    %v4854 = vpack.c.b16 %v3558, %v3550
    %v4855 = vpack.c.b16 %v3559, %v3551
    %v4856 = vpack.c.b16 %v3560, %v3552
    %v4857 = vpack.c.b16 %v3561, %v3553
    %v4858 = vpack.c.b16 %v3562, %v3554
    %v4859 = vpack.c.b16 %v3571, %v3563
    %v4860 = vpack.c.b16 %v3572, %v3564
    %v4861 = vpack.c.b16 %v3573, %v3565
    %v4862 = vpack.c.b16 %v3574, %v3566
    %v4863 = vpack.c.b16 %v3575, %v3567
    %v4864 = vpack.c.b16 %v3576, %v3568
    %v4865 = vpack.c.b16 %v3577, %v3569
    %v4866 = vpack.c.b16 %v3578, %v3570
    %v4867 = vpack.c.b16 %v3587, %v3579
    %v4868 = vpack.c.b16 %v3588, %v3580
    %v4869 = vpack.c.b16 %v3589, %v3581
    %v4870 = vpack.c.b16 %v3590, %v3582
    %v4871 = vpack.c.b16 %v3591, %v3583
    %v4872 = vpack.c.b16 %v3592, %v3584
    %v4873 = vpack.c.b16 %v3593, %v3585
    %v4874 = vpack.c.b16 %v3594, %v3586
    %v4875 = vpack.c.b16 %v3603, %v3595
    %v4876 = vpack.c.b16 %v3604, %v3596
    %v4877 = vpack.c.b16 %v3605, %v3597
    %v4878 = vpack.c.b16 %v3606, %v3598
    %v4879 = vpack.c.b16 %v3607, %v3599
    %v4880 = vpack.c.b16 %v3608, %v3600
    %v4881 = vpack.c.b16 %v3609, %v3601
    %v4882 = vpack.c.b16 %v3610, %v3602
    %v4883 = vpack.c.b16 %v3619, %v3611
    %v4884 = vpack.c.b16 %v3620, %v3612
    %v4885 = vpack.c.b16 %v3621, %v3613
    %v4886 = vpack.c.b16 %v3622, %v3614
    %v4887 = vpack.c.b16 %v3623, %v3615
    %v4888 = vpack.c.b16 %v3624, %v3616
    %v4889 = vpack.c.b16 %v3625, %v3617
    %v4890 = vpack.c.b16 %v3626, %v3618
    %v4891 = vpack.c.b16 %v3635, %v3627
    %v4892 = vpack.c.b16 %v3636, %v3628
    %v4893 = vpack.c.b16 %v3637, %v3629
    %v4894 = vpack.c.b16 %v3638, %v3630
    %v4895 = vpack.c.b16 %v3639, %v3631
    %v4896 = vpack.c.b16 %v3640, %v3632
    %v4897 = vpack.c.b16 %v3641, %v3633
    %v4898 = vpack.c.b16 %v3642, %v3634
    %v4899 = vpack.c.b16 %v3651, %v3643
    %v4900 = vpack.c.b16 %v3652, %v3644
    %v4901 = vpack.c.b16 %v3653, %v3645
    %v4902 = vpack.c.b16 %v3654, %v3646
    %v4903 = vpack.c.b16 %v3655, %v3647
    %v4904 = vpack.c.b16 %v3656, %v3648
    %v4905 = vpack.c.b16 %v3657, %v3649
    %v4906 = vpack.c.b16 %v3658, %v3650
    %v4907 = vpack.c.b16 %v3667, %v3659
    %v4908 = vpack.c.b16 %v3668, %v3660
    %v4909 = vpack.c.b16 %v3669, %v3661
    %v4910 = vpack.c.b16 %v3670, %v3662
    %v4911 = vpack.c.b16 %v3671, %v3663
    %v4912 = vpack.c.b16 %v3672, %v3664
    %v4913 = vpack.c.b16 %v3673, %v3665
    %v4914 = vpack.c.b16 %v3674, %v3666
    %v4915 = vpack.c.b16 %v3683, %v3675
    %v4916 = vpack.c.b16 %v3684, %v3676
    %v4917 = vpack.c.b16 %v3685, %v3677
    %v4918 = vpack.c.b16 %v3686, %v3678
    %v4919 = vpack.c.b16 %v3687, %v3679
    %v4920 = vpack.c.b16 %v3688, %v3680
    %v4921 = vpack.c.b16 %v3689, %v3681
    %v4922 = vpack.c.b16 %v3690, %v3682
    %v4923 = vpack.c.b16 %v3699, %v3691
    %v4924 = vpack.c.b16 %v3700, %v3692
    %v4925 = vpack.c.b16 %v3701, %v3693
    %v4926 = vpack.c.b16 %v3702, %v3694
    %v4927 = vpack.c.b16 %v3703, %v3695
    %v4928 = vpack.c.b16 %v3704, %v3696
    %v4929 = vpack.c.b16 %v3705, %v3697
    %v4930 = vpack.c.b16 %v3706, %v3698
    %v4931 = vpack.c.b16 %v3715, %v3707
    %v4932 = vpack.c.b16 %v3716, %v3708
    %v4933 = vpack.c.b16 %v3717, %v3709
    %v4934 = vpack.c.b16 %v3718, %v3710
    %v4935 = vpack.c.b16 %v3719, %v3711
    %v4936 = vpack.c.b16 %v3720, %v3712
    %v4937 = vpack.c.b16 %v3721, %v3713
    %v4938 = vpack.c.b16 %v3722, %v3714
    %v4939 = vpack.c.b16 %v3731, %v3723
    %v4940 = vpack.c.b16 %v3732, %v3724
    %v4941 = vpack.c.b16 %v3733, %v3725
    %v4942 = vpack.c.b16 %v3734, %v3726
    %v4943 = vpack.c.b16 %v3735, %v3727
    %v4944 = vpack.c.b16 %v3736, %v3728
    %v4945 = vpack.c.b16 %v3737, %v3729
    %v4946 = vpack.c.b16 %v3738, %v3730
    %v4947 = vpack.c.b16 %v3747, %v3739
    %v4948 = vpack.c.b16 %v3748, %v3740
    %v4949 = vpack.c.b16 %v3749, %v3741
    %v4950 = vpack.c.b16 %v3750, %v3742
    %v4951 = vpack.c.b16 %v3751, %v3743
    %v4952 = vpack.c.b16 %v3752, %v3744
    %v4953 = vpack.c.b16 %v3753, %v3745
    %v4954 = vpack.c.b16 %v3754, %v3746
    %v4955 = vpack.c.b16 %v3763, %v3755
    %v4956 = vpack.c.b16 %v3764, %v3756
    %v4957 = vpack.c.b16 %v3765, %v3757
    %v4958 = vpack.c.b16 %v3766, %v3758
    %v4959 = vpack.c.b16 %v3767, %v3759
    %v4960 = vpack.c.b16 %v3768, %v3760
    %v4961 = vpack.c.b16 %v3769, %v3761
    %v4962 = vpack.c.b16 %v3770, %v3762
    %v4963 = vpack.c.b16 %v3779, %v3771
    %v4964 = vpack.c.b16 %v3780, %v3772
    %v4965 = vpack.c.b16 %v3781, %v3773
    %v4966 = vpack.c.b16 %v3782, %v3774
    %v4967 = vpack.c.b16 %v3783, %v3775
    %v4968 = vpack.c.b16 %v3784, %v3776
    %v4969 = vpack.c.b16 %v3785, %v3777
    %v4970 = vpack.c.b16 %v3786, %v3778
    %v4971 = vpack.c.b16 %v3795, %v3787
    %v4972 = vpack.c.b16 %v3796, %v3788
    %v4973 = vpack.c.b16 %v3797, %v3789
    %v4974 = vpack.c.b16 %v3798, %v3790
    %v4975 = vpack.c.b16 %v3799, %v3791
    %v4976 = vpack.c.b16 %v3800, %v3792
    %v4977 = vpack.c.b16 %v3801, %v3793
    %v4978 = vpack.c.b16 %v3802, %v3794
    %v4979 = vpack.c.b16 %v3811, %v3803
    %v4980 = vpack.c.b16 %v3812, %v3804
    %v4981 = vpack.c.b16 %v3813, %v3805
    %v4982 = vpack.c.b16 %v3814, %v3806
    %v4983 = vpack.c.b16 %v3815, %v3807
    %v4984 = vpack.c.b16 %v3816, %v3808
    %v4985 = vpack.c.b16 %v3817, %v3809
    %v4986 = vpack.c.b16 %v3818, %v3810
    %v4987 = vpack.c.b16 %v3827, %v3819
    %v4988 = vpack.c.b16 %v3828, %v3820
    %v4989 = vpack.c.b16 %v3829, %v3821
    %v4990 = vpack.c.b16 %v3830, %v3822
    %v4991 = vpack.c.b16 %v3831, %v3823
    %v4992 = vpack.c.b16 %v3832, %v3824
    %v4993 = vpack.c.b16 %v3833, %v3825
    %v4994 = vpack.c.b16 %v3834, %v3826
    %v4995 = vpack.c.b16 %v3843, %v3835
    %v4996 = vpack.c.b16 %v3844, %v3836
    %v4997 = vpack.c.b16 %v3845, %v3837
    %v4998 = vpack.c.b16 %v3846, %v3838
    %v4999 = vpack.c.b16 %v3847, %v3839
    %v5000 = vpack.c.b16 %v3848, %v3840
    %v5001 = vpack.c.b16 %v3849, %v3841
    %v5002 = vpack.c.b16 %v3850, %v3842
    %v5003 = vpack.c.b16 %v3859, %v3851
    %v5004 = vpack.c.b16 %v3860, %v3852
    %v5005 = vpack.c.b16 %v3861, %v3853
    %v5006 = vpack.c.b16 %v3862, %v3854
    %v5007 = vpack.c.b16 %v3863, %v3855
    %v5008 = vpack.c.b16 %v3864, %v3856
    %v5009 = vpack.c.b16 %v3865, %v3857
    %v5010 = vpack.c.b16 %v3866, %v3858
    %v5011 = vpack.c.b16 %v3875, %v3867
    %v5012 = vpack.c.b16 %v3876, %v3868
    %v5013 = vpack.c.b16 %v3877, %v3869
    %v5014 = vpack.c.b16 %v3878, %v3870
    %v5015 = vpack.c.b16 %v3879, %v3871
    %v5016 = vpack.c.b16 %v3880, %v3872
    %v5017 = vpack.c.b16 %v3881, %v3873
    %v5018 = vpack.c.b16 %v3882, %v3874
    %v5019 = vpack.c.b16 %v3891, %v3883
    %v5020 = vpack.c.b16 %v3892, %v3884
    %v5021 = vpack.c.b16 %v3893, %v3885
    %v5022 = vpack.c.b16 %v3894, %v3886
    %v5023 = vpack.c.b16 %v3895, %v3887
    %v5024 = vpack.c.b16 %v3896, %v3888
    %v5025 = vpack.c.b16 %v3897, %v3889
    %v5026 = vpack.c.b16 %v3898, %v3890
    %v5027 = vpack.c.b16 %v3907, %v3899
    %v5028 = vpack.c.b16 %v3908, %v3900
    %v5029 = vpack.c.b16 %v3909, %v3901
    %v5030 = vpack.c.b16 %v3910, %v3902
    %v5031 = vpack.c.b16 %v3911, %v3903
    %v5032 = vpack.c.b16 %v3912, %v3904
    %v5033 = vpack.c.b16 %v3913, %v3905
    %v5034 = vpack.c.b16 %v3914, %v3906
    %v5035 = vpack.c.b16 %v3923, %v3915
    %v5036 = vpack.c.b16 %v3924, %v3916
    %v5037 = vpack.c.b16 %v3925, %v3917
    %v5038 = vpack.c.b16 %v3926, %v3918
    %v5039 = vpack.c.b16 %v3927, %v3919
    %v5040 = vpack.c.b16 %v3928, %v3920
    %v5041 = vpack.c.b16 %v3929, %v3921
    %v5042 = vpack.c.b16 %v3930, %v3922
    %v5043 = vpack.c.b16 %v3939, %v3931
    %v5044 = vpack.c.b16 %v3940, %v3932
    %v5045 = vpack.c.b16 %v3941, %v3933
    %v5046 = vpack.c.b16 %v3942, %v3934
    %v5047 = vpack.c.b16 %v3943, %v3935
    %v5048 = vpack.c.b16 %v3944, %v3936
    %v5049 = vpack.c.b16 %v3945, %v3937
    %v5050 = vpack.c.b16 %v3946, %v3938
    %v5051 = vpack.c.b16 %v3955, %v3947
    %v5052 = vpack.c.b16 %v3956, %v3948
    %v5053 = vpack.c.b16 %v3957, %v3949
    %v5054 = vpack.c.b16 %v3958, %v3950
    %v5055 = vpack.c.b16 %v3959, %v3951
    %v5056 = vpack.c.b16 %v3960, %v3952
    %v5057 = vpack.c.b16 %v3961, %v3953
    %v5058 = vpack.c.b16 %v3962, %v3954
    %v5059 = vpack.c.b16 %v3971, %v3963
    %v5060 = vpack.c.b16 %v3972, %v3964
    %v5061 = vpack.c.b16 %v3973, %v3965
    %v5062 = vpack.c.b16 %v3974, %v3966
    %v5063 = vpack.c.b16 %v3975, %v3967
    %v5064 = vpack.c.b16 %v3976, %v3968
    %v5065 = vpack.c.b16 %v3977, %v3969
    %v5066 = vpack.c.b16 %v3978, %v3970
    %v5067 = vpack.c.b16 %v3987, %v3979
    %v5068 = vpack.c.b16 %v3988, %v3980
    %v5069 = vpack.c.b16 %v3989, %v3981
    %v5070 = vpack.c.b16 %v3990, %v3982
    %v5071 = vpack.c.b16 %v3991, %v3983
    %v5072 = vpack.c.b16 %v3992, %v3984
    %v5073 = vpack.c.b16 %v3993, %v3985
    %v5074 = vpack.c.b16 %v3994, %v3986
    %v5075 = vpack.c.b16 %v4003, %v3995
    %v5076 = vpack.c.b16 %v4004, %v3996
    %v5077 = vpack.c.b16 %v4005, %v3997
    %v5078 = vpack.c.b16 %v4006, %v3998
    %v5079 = vpack.c.b16 %v4007, %v3999
    %v5080 = vpack.c.b16 %v4008, %v4000
    %v5081 = vpack.c.b16 %v4009, %v4001
    %v5082 = vpack.c.b16 %v4010, %v4002
    %v5083 = vpack.c.b16 %v4019, %v4011
    %v5084 = vpack.c.b16 %v4020, %v4012
    %v5085 = vpack.c.b16 %v4021, %v4013
    %v5086 = vpack.c.b16 %v4022, %v4014
    %v5087 = vpack.c.b16 %v4023, %v4015
    %v5088 = vpack.c.b16 %v4024, %v4016
    %v5089 = vpack.c.b16 %v4025, %v4017
    %v5090 = vpack.c.b16 %v4026, %v4018
    %v5091 = vpack.c.b16 %v4035, %v4027
    %v5092 = vpack.c.b16 %v4036, %v4028
    %v5093 = vpack.c.b16 %v4037, %v4029
    %v5094 = vpack.c.b16 %v4038, %v4030
    %v5095 = vpack.c.b16 %v4039, %v4031
    %v5096 = vpack.c.b16 %v4040, %v4032
    %v5097 = vpack.c.b16 %v4041, %v4033
    %v5098 = vpack.c.b16 %v4042, %v4034
    %v5099 = vpack.c.b16 %v4051, %v4043
    %v5100 = vpack.c.b16 %v4052, %v4044
    %v5101 = vpack.c.b16 %v4053, %v4045
    %v5102 = vpack.c.b16 %v4054, %v4046
    %v5103 = vpack.c.b16 %v4055, %v4047
    %v5104 = vpack.c.b16 %v4056, %v4048
    %v5105 = vpack.c.b16 %v4057, %v4049
    %v5106 = vpack.c.b16 %v4058, %v4050
    %v5107 = vpack.c.b16 %v4067, %v4059
    %v5108 = vpack.c.b16 %v4068, %v4060
    %v5109 = vpack.c.b16 %v4069, %v4061
    %v5110 = vpack.c.b16 %v4070, %v4062
    %v5111 = vpack.c.b16 %v4071, %v4063
    %v5112 = vpack.c.b16 %v4072, %v4064
    %v5113 = vpack.c.b16 %v4073, %v4065
    %v5114 = vpack.c.b16 %v4074, %v4066
    %v5115 = vpack.c.b16 %v4083, %v4075
    %v5116 = vpack.c.b16 %v4084, %v4076
    %v5117 = vpack.c.b16 %v4085, %v4077
    %v5118 = vpack.c.b16 %v4086, %v4078
    %v5119 = vpack.c.b16 %v4087, %v4079
    %v5120 = vpack.c.b16 %v4088, %v4080
    %v5121 = vpack.c.b16 %v4089, %v4081
    %v5122 = vpack.c.b16 %v4090, %v4082
    %v5123 = vpack.c.b16 %v4099, %v4091
    %v5124 = vpack.c.b16 %v4100, %v4092
    %v5125 = vpack.c.b16 %v4101, %v4093
    %v5126 = vpack.c.b16 %v4102, %v4094
    %v5127 = vpack.c.b16 %v4103, %v4095
    %v5128 = vpack.c.b16 %v4104, %v4096
    %v5129 = vpack.c.b16 %v4105, %v4097
    %v5130 = vpack.c.b16 %v4106, %v4098
    %v5131 = vpack.c.b16 %v4115, %v4107
    %v5132 = vpack.c.b16 %v4116, %v4108
    %v5133 = vpack.c.b16 %v4117, %v4109
    %v5134 = vpack.c.b16 %v4118, %v4110
    %v5135 = vpack.c.b16 %v4119, %v4111
    %v5136 = vpack.c.b16 %v4120, %v4112
    %v5137 = vpack.c.b16 %v4121, %v4113
    %v5138 = vpack.c.b16 %v4122, %v4114
    %v5139 = vpack.c.b16 %v4131, %v4123
    %v5140 = vpack.c.b16 %v4132, %v4124
    %v5141 = vpack.c.b16 %v4133, %v4125
    %v5142 = vpack.c.b16 %v4134, %v4126
    %v5143 = vpack.c.b16 %v4135, %v4127
    %v5144 = vpack.c.b16 %v4136, %v4128
    %v5145 = vpack.c.b16 %v4137, %v4129
    %v5146 = vpack.c.b16 %v4138, %v4130
    %v5147 = vpack.c.b16 %v4147, %v4139
    %v5148 = vpack.c.b16 %v4148, %v4140
    %v5149 = vpack.c.b16 %v4149, %v4141
    %v5150 = vpack.c.b16 %v4150, %v4142
    %v5151 = vpack.c.b16 %v4151, %v4143
    %v5152 = vpack.c.b16 %v4152, %v4144
    %v5153 = vpack.c.b16 %v4153, %v4145
    %v5154 = vpack.c.b16 %v4154, %v4146
    %vm6155 = vcmask 654336
    %v6157 = vsel %vm6155, %v112, 0
    %6159 = vmatprep.subr.bf16.mxu0 %v4156
    %6160 = vmatpush1.bf16.msra.mxu0 %v4155
    %6161 = vmatprep.subr.bf16.mxu0 %v4164
    %6162 = vmatpush1.bf16.msra.mxu0 %v4163
    %6163 = vmatprep.subr.bf16.mxu0 %v4172
    %6164 = vmatpush1.bf16.msra.mxu0 %v4171
    %6165 = vmatprep.subr.bf16.mxu0 %v4180
    %6166 = vmatpush1.bf16.msra.mxu0 %v4179
    %6167 = vmatprep.subr.bf16.mxu0 %v4188
    %6168 = vmatpush1.bf16.msra.mxu0 %v4187
    %6169 = vmatprep.subr.bf16.mxu0 %v4196
    %6170 = vmatpush1.bf16.msra.mxu0 %v4195
    %6171 = vmatprep.subr.bf16.mxu0 %v4204
    %6172 = vmatpush1.bf16.msra.mxu0 %v4203
    %6173 = vmatprep.subr.bf16.mxu0 %v4212
    %6174 = vmatpush1.bf16.msra.mxu0 %v4211
    %6175 = vmatprep.subr.bf16.mxu0 %v4220
    %6176 = vmatpush1.bf16.msra.mxu0 %v4219
    %6177 = vmatprep.subr.bf16.mxu0 %v4228
    %6178 = vmatpush1.bf16.msra.mxu0 %v4227
    %6179 = vmatprep.subr.bf16.mxu0 %v4236
    %6180 = vmatpush1.bf16.msra.mxu0 %v4235
    %6181 = vmatprep.subr.bf16.mxu0 %v4244
    %6182 = vmatpush1.bf16.msra.mxu0 %v4243
    %6183 = vmatprep.subr.bf16.mxu0 %v4252
    %6184 = vmatpush1.bf16.msra.mxu0 %v4251
    %6185 = vmatprep.subr.bf16.mxu0 %v4260
    %6186 = vmatpush1.bf16.msra.mxu0 %v4259
    %6187 = vmatprep.subr.bf16.mxu0 %v4268
    %6188 = vmatpush1.bf16.msra.mxu0 %v4267
    %6189 = vmatprep.subr.bf16.mxu0 %v4276
    %6190 = vmatpush1.bf16.msra.mxu0 %v4275
    %6191 = vmatprep.mubr.bf16.mxu0 %v98
    %6192 = vmatmul.mubr.bf16.gmra.mrb[0].mxu0 %v97
    %v6193 = vpop.f32.mrb[0].mxu0
    %v6194 = vadd.f32 %v1118, %v6193
    %v6195 = vpop.f32.mrb[0].mxu0
    %v6196 = vadd.f32 %v1122, %v6195
    %v6197 = vpop.f32.mrb[0].mxu0
    %v6198 = vpop.f32.mrb[0].mxu0
    %6199 = vdwg.mxu0
    %6200 = vmatprep.subr.bf16.mxu0 %v4284
    %6201 = vmatpush1.bf16.msra.mxu0 %v4283
    %6202 = vmatprep.subr.bf16.mxu0 %v4292
    %6203 = vmatpush1.bf16.msra.mxu0 %v4291
    %6204 = vmatprep.subr.bf16.mxu0 %v4300
    %6205 = vmatpush1.bf16.msra.mxu0 %v4299
    %6206 = vmatprep.subr.bf16.mxu0 %v4308
    %6207 = vmatpush1.bf16.msra.mxu0 %v4307
    %6208 = vmatprep.subr.bf16.mxu0 %v4316
    %6209 = vmatpush1.bf16.msra.mxu0 %v4315
    %6210 = vmatprep.subr.bf16.mxu0 %v4324
    %6211 = vmatpush1.bf16.msra.mxu0 %v4323
    %6212 = vmatprep.subr.bf16.mxu0 %v4332
    %6213 = vmatpush1.bf16.msra.mxu0 %v4331
    %6214 = vmatprep.subr.bf16.mxu0 %v4340
    %6215 = vmatpush1.bf16.msra.mxu0 %v4339
    %6216 = vmatprep.subr.bf16.mxu0 %v4348
    %6217 = vmatpush1.bf16.msra.mxu0 %v4347
    %6218 = vmatprep.subr.bf16.mxu0 %v4356
    %6219 = vmatpush1.bf16.msra.mxu0 %v4355
    %6220 = vmatprep.subr.bf16.mxu0 %v4364
    %6221 = vmatpush1.bf16.msra.mxu0 %v4363
    %6222 = vmatprep.subr.bf16.mxu0 %v4372
    %6223 = vmatpush1.bf16.msra.mxu0 %v4371
    %6224 = vmatprep.subr.bf16.mxu0 %v4380
    %6225 = vmatpush1.bf16.msra.mxu0 %v4379
    %6226 = vmatprep.subr.bf16.mxu0 %v4388
    %6227 = vmatpush1.bf16.msra.mxu0 %v4387
    %6228 = vmatprep.subr.bf16.mxu0 %v4396
    %6229 = vmatpush1.bf16.msra.mxu0 %v4395
    %6230 = vmatprep.subr.bf16.mxu0 %v4404
    %6231 = vmatpush1.bf16.msra.mxu0 %v4403
    %6232 = vmatprep.mubr.bf16.mxu0 %v100
    %6233 = vmatmul.mubr.bf16.gmra.mrb[0].mxu0 %v99
    %v6234 = vpop.f32.mrb[0].mxu0
    %v6235 = vadd.f32 %v6194, %v6234
    %v6236 = vpop.f32.mrb[0].mxu0
    %v6237 = vadd.f32 %v6196, %v6236
    %v6238 = vpop.f32.mrb[0].mxu0
    %v6239 = vpop.f32.mrb[0].mxu0
    %6240 = vdwg.mxu0
    %6241 = vmatprep.subr.bf16.mxu0 %v4412
    %6242 = vmatpush1.bf16.msra.mxu0 %v4411
    %6243 = vmatprep.subr.bf16.mxu0 %v4420
    %6244 = vmatpush1.bf16.msra.mxu0 %v4419
    %6245 = vmatprep.subr.bf16.mxu0 %v4428
    %6246 = vmatpush1.bf16.msra.mxu0 %v4427
    %6247 = vmatprep.subr.bf16.mxu0 %v4436
    %6248 = vmatpush1.bf16.msra.mxu0 %v4435
    %6249 = vmatprep.subr.bf16.mxu0 %v4444
    %6250 = vmatpush1.bf16.msra.mxu0 %v4443
    %6251 = vmatprep.subr.bf16.mxu0 %v4452
    %6252 = vmatpush1.bf16.msra.mxu0 %v4451
    %6253 = vmatprep.subr.bf16.mxu0 %v4460
    %6254 = vmatpush1.bf16.msra.mxu0 %v4459
    %6255 = vmatprep.subr.bf16.mxu0 %v4468
    %6256 = vmatpush1.bf16.msra.mxu0 %v4467
    %6257 = vmatprep.subr.bf16.mxu0 %v4476
    %6258 = vmatpush1.bf16.msra.mxu0 %v4475
    %6259 = vmatprep.subr.bf16.mxu0 %v4484
    %6260 = vmatpush1.bf16.msra.mxu0 %v4483
    %6261 = vmatprep.subr.bf16.mxu0 %v4492
    %6262 = vmatpush1.bf16.msra.mxu0 %v4491
    %6263 = vmatprep.subr.bf16.mxu0 %v4500
    %6264 = vmatpush1.bf16.msra.mxu0 %v4499
    %6265 = vmatprep.subr.bf16.mxu0 %v4508
    %6266 = vmatpush1.bf16.msra.mxu0 %v4507
    %6267 = vmatprep.subr.bf16.mxu0 %v4516
    %6268 = vmatpush1.bf16.msra.mxu0 %v4515
    %6269 = vmatprep.subr.bf16.mxu0 %v4524
    %6270 = vmatpush1.bf16.msra.mxu0 %v4523
    %6271 = vmatprep.subr.bf16.mxu0 %v4532
    %6272 = vmatpush1.bf16.msra.mxu0 %v4531
    %6273 = vmatprep.mubr.bf16.mxu0 %v102
    %6274 = vmatmul.mubr.bf16.gmra.mrb[0].mxu0 %v101
    %v6275 = vpop.f32.mrb[0].mxu0
    %v6276 = vadd.f32 %v6235, %v6275
    %v6277 = vpop.f32.mrb[0].mxu0
    %v6278 = vadd.f32 %v6237, %v6277
    %v6279 = vpop.f32.mrb[0].mxu0
    %v6280 = vpop.f32.mrb[0].mxu0
    %6281 = vdwg.mxu0
    %6282 = vmatprep.subr.bf16.mxu0 %v4540
    %6283 = vmatpush1.bf16.msra.mxu0 %v4539
    %6284 = vmatprep.subr.bf16.mxu0 %v4548
    %6285 = vmatpush1.bf16.msra.mxu0 %v4547
    %6286 = vmatprep.subr.bf16.mxu0 %v4556
    %6287 = vmatpush1.bf16.msra.mxu0 %v4555
    %6288 = vmatprep.subr.bf16.mxu0 %v4564
    %6289 = vmatpush1.bf16.msra.mxu0 %v4563
    %6290 = vmatprep.subr.bf16.mxu0 %v4572
    %6291 = vmatpush1.bf16.msra.mxu0 %v4571
    %6292 = vmatprep.subr.bf16.mxu0 %v4580
    %6293 = vmatpush1.bf16.msra.mxu0 %v4579
    %6294 = vmatprep.subr.bf16.mxu0 %v4588
    %6295 = vmatpush1.bf16.msra.mxu0 %v4587
    %6296 = vmatprep.subr.bf16.mxu0 %v4596
    %6297 = vmatpush1.bf16.msra.mxu0 %v4595
    %6298 = vmatprep.subr.bf16.mxu0 %v4604
    %6299 = vmatpush1.bf16.msra.mxu0 %v4603
    %6300 = vmatprep.subr.bf16.mxu0 %v4612
    %6301 = vmatpush1.bf16.msra.mxu0 %v4611
    %6302 = vmatprep.subr.bf16.mxu0 %v4620
    %6303 = vmatpush1.bf16.msra.mxu0 %v4619
    %6304 = vmatprep.subr.bf16.mxu0 %v4628
    %6305 = vmatpush1.bf16.msra.mxu0 %v4627
    %6306 = vmatprep.subr.bf16.mxu0 %v4636
    %6307 = vmatpush1.bf16.msra.mxu0 %v4635
    %6308 = vmatprep.subr.bf16.mxu0 %v4644
    %6309 = vmatpush1.bf16.msra.mxu0 %v4643
    %6310 = vmatprep.subr.bf16.mxu0 %v4652
    %6311 = vmatpush1.bf16.msra.mxu0 %v4651
    %6312 = vmatprep.subr.bf16.mxu0 %v4660
    %6313 = vmatpush1.bf16.msra.mxu0 %v4659
    %6314 = vmatprep.mubr.bf16.mxu0 %v104
    %6315 = vmatmul.mubr.bf16.gmra.mrb[0].mxu0 %v103
    %v6316 = vpop.f32.mrb[0].mxu0
    %v6317 = vadd.f32 %v6276, %v6316
    %v6318 = vpop.f32.mrb[0].mxu0
    %v6319 = vadd.f32 %v6278, %v6318
    %v6320 = vpop.f32.mrb[0].mxu0
    %v6321 = vpop.f32.mrb[0].mxu0
    %6322 = vdwg.mxu0
    %6323 = vmatprep.subr.bf16.mxu0 %v4668
    %6324 = vmatpush1.bf16.msra.mxu0 %v4667
    %6325 = vmatprep.subr.bf16.mxu0 %v4676
    %6326 = vmatpush1.bf16.msra.mxu0 %v4675
    %6327 = vmatprep.subr.bf16.mxu0 %v4684
    %6328 = vmatpush1.bf16.msra.mxu0 %v4683
    %6329 = vmatprep.subr.bf16.mxu0 %v4692
    %6330 = vmatpush1.bf16.msra.mxu0 %v4691
    %6331 = vmatprep.subr.bf16.mxu0 %v4700
    %6332 = vmatpush1.bf16.msra.mxu0 %v4699
    %6333 = vmatprep.subr.bf16.mxu0 %v4708
    %6334 = vmatpush1.bf16.msra.mxu0 %v4707
    %6335 = vmatprep.subr.bf16.mxu0 %v4716
    %6336 = vmatpush1.bf16.msra.mxu0 %v4715
    %6337 = vmatprep.subr.bf16.mxu0 %v4724
    %6338 = vmatpush1.bf16.msra.mxu0 %v4723
    %6339 = vmatprep.subr.bf16.mxu0 %v4732
    %6340 = vmatpush1.bf16.msra.mxu0 %v4731
    %6341 = vmatprep.subr.bf16.mxu0 %v4740
    %6342 = vmatpush1.bf16.msra.mxu0 %v4739
    %6343 = vmatprep.subr.bf16.mxu0 %v4748
    %6344 = vmatpush1.bf16.msra.mxu0 %v4747
    %6345 = vmatprep.subr.bf16.mxu0 %v4756
    %6346 = vmatpush1.bf16.msra.mxu0 %v4755
    %6347 = vmatprep.subr.bf16.mxu0 %v4764
    %6348 = vmatpush1.bf16.msra.mxu0 %v4763
    %6349 = vmatprep.subr.bf16.mxu0 %v4772
    %6350 = vmatpush1.bf16.msra.mxu0 %v4771
    %6351 = vmatprep.subr.bf16.mxu0 %v4780
    %6352 = vmatpush1.bf16.msra.mxu0 %v4779
    %6353 = vmatprep.subr.bf16.mxu0 %v4788
    %6354 = vmatpush1.bf16.msra.mxu0 %v4787
    %6355 = vmatprep.mubr.bf16.mxu0 %v106
    %6356 = vmatmul.mubr.bf16.gmra.mrb[0].mxu0 %v105
    %v6357 = vpop.f32.mrb[0].mxu0
    %v6358 = vadd.f32 %v6317, %v6357
    %v6359 = vpop.f32.mrb[0].mxu0
    %v6360 = vadd.f32 %v6319, %v6359
    %v6361 = vpop.f32.mrb[0].mxu0
    %v6362 = vpop.f32.mrb[0].mxu0
    %6363 = vdwg.mxu0
    %6364 = vmatprep.subr.bf16.mxu0 %v4796
    %6365 = vmatpush1.bf16.msra.mxu0 %v4795
    %6366 = vmatprep.subr.bf16.mxu0 %v4804
    %6367 = vmatpush1.bf16.msra.mxu0 %v4803
    %6368 = vmatprep.subr.bf16.mxu0 %v4812
    %6369 = vmatpush1.bf16.msra.mxu0 %v4811
    %6370 = vmatprep.subr.bf16.mxu0 %v4820
    %6371 = vmatpush1.bf16.msra.mxu0 %v4819
    %6372 = vmatprep.subr.bf16.mxu0 %v4828
    %6373 = vmatpush1.bf16.msra.mxu0 %v4827
    %6374 = vmatprep.subr.bf16.mxu0 %v4836
    %6375 = vmatpush1.bf16.msra.mxu0 %v4835
    %6376 = vmatprep.subr.bf16.mxu0 %v4844
    %6377 = vmatpush1.bf16.msra.mxu0 %v4843
    %6378 = vmatprep.subr.bf16.mxu0 %v4852
    %6379 = vmatpush1.bf16.msra.mxu0 %v4851
    %6380 = vmatprep.subr.bf16.mxu0 %v4860
    %6381 = vmatpush1.bf16.msra.mxu0 %v4859
    %6382 = vmatprep.subr.bf16.mxu0 %v4868
    %6383 = vmatpush1.bf16.msra.mxu0 %v4867
    %6384 = vmatprep.subr.bf16.mxu0 %v4876
    %6385 = vmatpush1.bf16.msra.mxu0 %v4875
    %6386 = vmatprep.subr.bf16.mxu0 %v4884
    %6387 = vmatpush1.bf16.msra.mxu0 %v4883
    %6388 = vmatprep.subr.bf16.mxu0 %v4892
    %6389 = vmatpush1.bf16.msra.mxu0 %v4891
    %6390 = vmatprep.subr.bf16.mxu0 %v4900
    %6391 = vmatpush1.bf16.msra.mxu0 %v4899
    %6392 = vmatprep.subr.bf16.mxu0 %v4908
    %6393 = vmatpush1.bf16.msra.mxu0 %v4907
    %6394 = vmatprep.subr.bf16.mxu0 %v4916
    %6395 = vmatpush1.bf16.msra.mxu0 %v4915
    %6396 = vmatprep.mubr.bf16.mxu0 %v108
    %6397 = vmatmul.mubr.bf16.gmra.mrb[0].mxu0 %v107
    %v6398 = vpop.f32.mrb[0].mxu0
    %v6399 = vadd.f32 %v6358, %v6398
    %v6400 = vpop.f32.mrb[0].mxu0
    %v6401 = vadd.f32 %v6360, %v6400
    %v6402 = vpop.f32.mrb[0].mxu0
    %v6403 = vpop.f32.mrb[0].mxu0
    %6404 = vdwg.mxu0
    %6405 = vmatprep.subr.bf16.mxu0 %v4924
    %6406 = vmatpush1.bf16.msra.mxu0 %v4923
    %6407 = vmatprep.subr.bf16.mxu0 %v4932
    %6408 = vmatpush1.bf16.msra.mxu0 %v4931
    %6409 = vmatprep.subr.bf16.mxu0 %v4940
    %6410 = vmatpush1.bf16.msra.mxu0 %v4939
    %6411 = vmatprep.subr.bf16.mxu0 %v4948
    %6412 = vmatpush1.bf16.msra.mxu0 %v4947
    %6413 = vmatprep.subr.bf16.mxu0 %v4956
    %6414 = vmatpush1.bf16.msra.mxu0 %v4955
    %6415 = vmatprep.subr.bf16.mxu0 %v4964
    %6416 = vmatpush1.bf16.msra.mxu0 %v4963
    %6417 = vmatprep.subr.bf16.mxu0 %v4972
    %6418 = vmatpush1.bf16.msra.mxu0 %v4971
    %6419 = vmatprep.subr.bf16.mxu0 %v4980
    %6420 = vmatpush1.bf16.msra.mxu0 %v4979
    %6421 = vmatprep.subr.bf16.mxu0 %v4988
    %6422 = vmatpush1.bf16.msra.mxu0 %v4987
    %6423 = vmatprep.subr.bf16.mxu0 %v4996
    %6424 = vmatpush1.bf16.msra.mxu0 %v4995
    %6425 = vmatprep.subr.bf16.mxu0 %v5004
    %6426 = vmatpush1.bf16.msra.mxu0 %v5003
    %6427 = vmatprep.subr.bf16.mxu0 %v5012
    %6428 = vmatpush1.bf16.msra.mxu0 %v5011
    %6429 = vmatprep.subr.bf16.mxu0 %v5020
    %6430 = vmatpush1.bf16.msra.mxu0 %v5019
    %6431 = vmatprep.subr.bf16.mxu0 %v5028
    %6432 = vmatpush1.bf16.msra.mxu0 %v5027
    %6433 = vmatprep.subr.bf16.mxu0 %v5036
    %6434 = vmatpush1.bf16.msra.mxu0 %v5035
    %6435 = vmatprep.subr.bf16.mxu0 %v5044
    %6436 = vmatpush1.bf16.msra.mxu0 %v5043
    %6437 = vmatprep.mubr.bf16.mxu0 %v110
    %6438 = vmatmul.mubr.bf16.gmra.mrb[0].mxu0 %v109
    %v6439 = vpop.f32.mrb[0].mxu0
    %v6440 = vadd.f32 %v6399, %v6439
    %v6441 = vpop.f32.mrb[0].mxu0
    %v6442 = vadd.f32 %v6401, %v6441
    %v6443 = vpop.f32.mrb[0].mxu0
    %v6444 = vpop.f32.mrb[0].mxu0
    %6445 = vdwg.mxu0
    %6446 = vmatprep.subr.bf16.mxu0 %v5052
    %6447 = vmatpush1.bf16.msra.mxu0 %v5051
    %6448 = vmatprep.subr.bf16.mxu0 %v5060
    %6449 = vmatpush1.bf16.msra.mxu0 %v5059
    %6450 = vmatprep.subr.bf16.mxu0 %v5068
    %6451 = vmatpush1.bf16.msra.mxu0 %v5067
    %6452 = vmatprep.subr.bf16.mxu0 %v5076
    %6453 = vmatpush1.bf16.msra.mxu0 %v5075
    %6454 = vmatprep.subr.bf16.mxu0 %v5084
    %6455 = vmatpush1.bf16.msra.mxu0 %v5083
    %6456 = vmatprep.subr.bf16.mxu0 %v5092
    %6457 = vmatpush1.bf16.msra.mxu0 %v5091
    %6458 = vmatprep.subr.bf16.mxu0 %v5100
    %6459 = vmatpush1.bf16.msra.mxu0 %v5099
    %6460 = vmatprep.subr.bf16.mxu0 %v5108
    %6461 = vmatpush1.bf16.msra.mxu0 %v5107
    %6462 = vmatprep.subr.bf16.mxu0 %v5116
    %6463 = vmatpush1.bf16.msra.mxu0 %v5115
    %6464 = vmatprep.subr.bf16.mxu0 %v5124
    %6465 = vmatpush1.bf16.msra.mxu0 %v5123
    %6466 = vmatprep.subr.bf16.mxu0 %v5132
    %6467 = vmatpush1.bf16.msra.mxu0 %v5131
    %6468 = vmatprep.subr.bf16.mxu0 %v5140
    %6469 = vmatpush1.bf16.msra.mxu0 %v5139
    %6470 = vmatprep.subr.bf16.mxu0 %v5148
    %6471 = vmatpush1.bf16.msra.mxu0 %v5147
    %6472 = vmatprep.subr.bf16.mxu0 0
    %6473 = vmatpush1.bf16.msra.mxu0 0
    %6474 = vmatprep.subr.bf16.mxu0 0
    %6475 = vmatpush1.bf16.msra.mxu0 0
    %6476 = vmatprep.subr.bf16.mxu0 0
    %6477 = vmatpush1.bf16.msra.mxu0 0
    %6478 = vmatprep.mubr.bf16.mxu0 %v6157
    %6479 = vmatmul.mubr.bf16.gmra.mrb[0].mxu0 %v111
    %v6480 = vpop.f32.mrb[0].mxu0
    %v6481 = vadd.f32 %v6440, %v6480
    %v6482 = vpop.f32.mrb[0].mxu0
    %v6483 = vadd.f32 %v6442, %v6482
    %v6484 = vpop.f32.mrb[0].mxu0
    %v6485 = vpop.f32.mrb[0].mxu0
    %6486 = vdwg.mxu0
    %6487 = vmatprep.subr.bf16.mxu0 %v4158
    %6488 = vmatpush1.bf16.msra.mxu0 %v4157
    %6489 = vmatprep.subr.bf16.mxu0 %v4166
    %6490 = vmatpush1.bf16.msra.mxu0 %v4165
    %6491 = vmatprep.subr.bf16.mxu0 %v4174
    %6492 = vmatpush1.bf16.msra.mxu0 %v4173
    %6493 = vmatprep.subr.bf16.mxu0 %v4182
    %6494 = vmatpush1.bf16.msra.mxu0 %v4181
    %6495 = vmatprep.subr.bf16.mxu0 %v4190
    %6496 = vmatpush1.bf16.msra.mxu0 %v4189
    %6497 = vmatprep.subr.bf16.mxu0 %v4198
    %6498 = vmatpush1.bf16.msra.mxu0 %v4197
    %6499 = vmatprep.subr.bf16.mxu0 %v4206
    %6500 = vmatpush1.bf16.msra.mxu0 %v4205
    %6501 = vmatprep.subr.bf16.mxu0 %v4214
    %6502 = vmatpush1.bf16.msra.mxu0 %v4213
    %6503 = vmatprep.subr.bf16.mxu0 %v4222
    %6504 = vmatpush1.bf16.msra.mxu0 %v4221
    %6505 = vmatprep.subr.bf16.mxu0 %v4230
    %6506 = vmatpush1.bf16.msra.mxu0 %v4229
    %6507 = vmatprep.subr.bf16.mxu0 %v4238
    %6508 = vmatpush1.bf16.msra.mxu0 %v4237
    %6509 = vmatprep.subr.bf16.mxu0 %v4246
    %6510 = vmatpush1.bf16.msra.mxu0 %v4245
    %6511 = vmatprep.subr.bf16.mxu0 %v4254
    %6512 = vmatpush1.bf16.msra.mxu0 %v4253
    %6513 = vmatprep.subr.bf16.mxu0 %v4262
    %6514 = vmatpush1.bf16.msra.mxu0 %v4261
    %6515 = vmatprep.subr.bf16.mxu0 %v4270
    %6516 = vmatpush1.bf16.msra.mxu0 %v4269
    %6517 = vmatprep.subr.bf16.mxu0 %v4278
    %6518 = vmatpush1.bf16.msra.mxu0 %v4277
    %6519 = vmatprep.mubr.bf16.mxu0 %v98
    %6520 = vmatmul.mubr.bf16.gmra.mrb[0].mxu0 %v97
    %v6521 = vpop.f32.mrb[0].mxu0
    %v6522 = vadd.f32 %v1126, %v6521
    %v6523 = vpop.f32.mrb[0].mxu0
    %v6524 = vadd.f32 %v1130, %v6523
    %v6525 = vpop.f32.mrb[0].mxu0
    %v6526 = vpop.f32.mrb[0].mxu0
    %6527 = vdwg.mxu0
    %6528 = vmatprep.subr.bf16.mxu0 %v4286
    %6529 = vmatpush1.bf16.msra.mxu0 %v4285
    %6530 = vmatprep.subr.bf16.mxu0 %v4294
    %6531 = vmatpush1.bf16.msra.mxu0 %v4293
    %6532 = vmatprep.subr.bf16.mxu0 %v4302
    %6533 = vmatpush1.bf16.msra.mxu0 %v4301
    %6534 = vmatprep.subr.bf16.mxu0 %v4310
    %6535 = vmatpush1.bf16.msra.mxu0 %v4309
    %6536 = vmatprep.subr.bf16.mxu0 %v4318
    %6537 = vmatpush1.bf16.msra.mxu0 %v4317
    %6538 = vmatprep.subr.bf16.mxu0 %v4326
    %6539 = vmatpush1.bf16.msra.mxu0 %v4325
    %6540 = vmatprep.subr.bf16.mxu0 %v4334
    %6541 = vmatpush1.bf16.msra.mxu0 %v4333
    %6542 = vmatprep.subr.bf16.mxu0 %v4342
    %6543 = vmatpush1.bf16.msra.mxu0 %v4341
    %6544 = vmatprep.subr.bf16.mxu0 %v4350
    %6545 = vmatpush1.bf16.msra.mxu0 %v4349
    %6546 = vmatprep.subr.bf16.mxu0 %v4358
    %6547 = vmatpush1.bf16.msra.mxu0 %v4357
    %6548 = vmatprep.subr.bf16.mxu0 %v4366
    %6549 = vmatpush1.bf16.msra.mxu0 %v4365
    %6550 = vmatprep.subr.bf16.mxu0 %v4374
    %6551 = vmatpush1.bf16.msra.mxu0 %v4373
    %6552 = vmatprep.subr.bf16.mxu0 %v4382
    %6553 = vmatpush1.bf16.msra.mxu0 %v4381
    %6554 = vmatprep.subr.bf16.mxu0 %v4390
    %6555 = vmatpush1.bf16.msra.mxu0 %v4389
    %6556 = vmatprep.subr.bf16.mxu0 %v4398
    %6557 = vmatpush1.bf16.msra.mxu0 %v4397
    %6558 = vmatprep.subr.bf16.mxu0 %v4406
    %6559 = vmatpush1.bf16.msra.mxu0 %v4405
    %6560 = vmatprep.mubr.bf16.mxu0 %v100
    %6561 = vmatmul.mubr.bf16.gmra.mrb[0].mxu0 %v99
    %v6562 = vpop.f32.mrb[0].mxu0
    %v6563 = vadd.f32 %v6522, %v6562
    %v6564 = vpop.f32.mrb[0].mxu0
    %v6565 = vadd.f32 %v6524, %v6564
    %v6566 = vpop.f32.mrb[0].mxu0
    %v6567 = vpop.f32.mrb[0].mxu0
    %6568 = vdwg.mxu0
    %6569 = vmatprep.subr.bf16.mxu0 %v4414
    %6570 = vmatpush1.bf16.msra.mxu0 %v4413
    %6571 = vmatprep.subr.bf16.mxu0 %v4422
    %6572 = vmatpush1.bf16.msra.mxu0 %v4421
    %6573 = vmatprep.subr.bf16.mxu0 %v4430
    %6574 = vmatpush1.bf16.msra.mxu0 %v4429
    %6575 = vmatprep.subr.bf16.mxu0 %v4438
    %6576 = vmatpush1.bf16.msra.mxu0 %v4437
    %6577 = vmatprep.subr.bf16.mxu0 %v4446
    %6578 = vmatpush1.bf16.msra.mxu0 %v4445
    %6579 = vmatprep.subr.bf16.mxu0 %v4454
    %6580 = vmatpush1.bf16.msra.mxu0 %v4453
    %6581 = vmatprep.subr.bf16.mxu0 %v4462
    %6582 = vmatpush1.bf16.msra.mxu0 %v4461
    %6583 = vmatprep.subr.bf16.mxu0 %v4470
    %6584 = vmatpush1.bf16.msra.mxu0 %v4469
    %6585 = vmatprep.subr.bf16.mxu0 %v4478
    %6586 = vmatpush1.bf16.msra.mxu0 %v4477
    %6587 = vmatprep.subr.bf16.mxu0 %v4486
    %6588 = vmatpush1.bf16.msra.mxu0 %v4485
    %6589 = vmatprep.subr.bf16.mxu0 %v4494
    %6590 = vmatpush1.bf16.msra.mxu0 %v4493
    %6591 = vmatprep.subr.bf16.mxu0 %v4502
    %6592 = vmatpush1.bf16.msra.mxu0 %v4501
    %6593 = vmatprep.subr.bf16.mxu0 %v4510
    %6594 = vmatpush1.bf16.msra.mxu0 %v4509
    %6595 = vmatprep.subr.bf16.mxu0 %v4518
    %6596 = vmatpush1.bf16.msra.mxu0 %v4517
    %6597 = vmatprep.subr.bf16.mxu0 %v4526
    %6598 = vmatpush1.bf16.msra.mxu0 %v4525
    %6599 = vmatprep.subr.bf16.mxu0 %v4534
    %6600 = vmatpush1.bf16.msra.mxu0 %v4533
    %6601 = vmatprep.mubr.bf16.mxu0 %v102
    %6602 = vmatmul.mubr.bf16.gmra.mrb[0].mxu0 %v101
    %v6603 = vpop.f32.mrb[0].mxu0
    %v6604 = vadd.f32 %v6563, %v6603
    %v6605 = vpop.f32.mrb[0].mxu0
    %v6606 = vadd.f32 %v6565, %v6605
    %v6607 = vpop.f32.mrb[0].mxu0
    %v6608 = vpop.f32.mrb[0].mxu0
    %6609 = vdwg.mxu0
    %6610 = vmatprep.subr.bf16.mxu0 %v4542
    %6611 = vmatpush1.bf16.msra.mxu0 %v4541
    %6612 = vmatprep.subr.bf16.mxu0 %v4550
    %6613 = vmatpush1.bf16.msra.mxu0 %v4549
    %6614 = vmatprep.subr.bf16.mxu0 %v4558
    %6615 = vmatpush1.bf16.msra.mxu0 %v4557
    %6616 = vmatprep.subr.bf16.mxu0 %v4566
    %6617 = vmatpush1.bf16.msra.mxu0 %v4565
    %6618 = vmatprep.subr.bf16.mxu0 %v4574
    %6619 = vmatpush1.bf16.msra.mxu0 %v4573
    %6620 = vmatprep.subr.bf16.mxu0 %v4582
    %6621 = vmatpush1.bf16.msra.mxu0 %v4581
    %6622 = vmatprep.subr.bf16.mxu0 %v4590
    %6623 = vmatpush1.bf16.msra.mxu0 %v4589
    %6624 = vmatprep.subr.bf16.mxu0 %v4598
    %6625 = vmatpush1.bf16.msra.mxu0 %v4597
    %6626 = vmatprep.subr.bf16.mxu0 %v4606
    %6627 = vmatpush1.bf16.msra.mxu0 %v4605
    %6628 = vmatprep.subr.bf16.mxu0 %v4614
    %6629 = vmatpush1.bf16.msra.mxu0 %v4613
    %6630 = vmatprep.subr.bf16.mxu0 %v4622
    %6631 = vmatpush1.bf16.msra.mxu0 %v4621
    %6632 = vmatprep.subr.bf16.mxu0 %v4630
    %6633 = vmatpush1.bf16.msra.mxu0 %v4629
    %6634 = vmatprep.subr.bf16.mxu0 %v4638
    %6635 = vmatpush1.bf16.msra.mxu0 %v4637
    %6636 = vmatprep.subr.bf16.mxu0 %v4646
    %6637 = vmatpush1.bf16.msra.mxu0 %v4645
    %6638 = vmatprep.subr.bf16.mxu0 %v4654
    %6639 = vmatpush1.bf16.msra.mxu0 %v4653
    %6640 = vmatprep.subr.bf16.mxu0 %v4662
    %6641 = vmatpush1.bf16.msra.mxu0 %v4661
    %6642 = vmatprep.mubr.bf16.mxu0 %v104
    %6643 = vmatmul.mubr.bf16.gmra.mrb[0].mxu0 %v103
    %v6644 = vpop.f32.mrb[0].mxu0
    %v6645 = vadd.f32 %v6604, %v6644
    %v6646 = vpop.f32.mrb[0].mxu0
    %v6647 = vadd.f32 %v6606, %v6646
    %v6648 = vpop.f32.mrb[0].mxu0
    %v6649 = vpop.f32.mrb[0].mxu0
    %6650 = vdwg.mxu0
    %6651 = vmatprep.subr.bf16.mxu0 %v4670
    %6652 = vmatpush1.bf16.msra.mxu0 %v4669
    %6653 = vmatprep.subr.bf16.mxu0 %v4678
    %6654 = vmatpush1.bf16.msra.mxu0 %v4677
    %6655 = vmatprep.subr.bf16.mxu0 %v4686
    %6656 = vmatpush1.bf16.msra.mxu0 %v4685
    %6657 = vmatprep.subr.bf16.mxu0 %v4694
    %6658 = vmatpush1.bf16.msra.mxu0 %v4693
    %6659 = vmatprep.subr.bf16.mxu0 %v4702
    %6660 = vmatpush1.bf16.msra.mxu0 %v4701
    %6661 = vmatprep.subr.bf16.mxu0 %v4710
    %6662 = vmatpush1.bf16.msra.mxu0 %v4709
    %6663 = vmatprep.subr.bf16.mxu0 %v4718
    %6664 = vmatpush1.bf16.msra.mxu0 %v4717
    %6665 = vmatprep.subr.bf16.mxu0 %v4726
    %6666 = vmatpush1.bf16.msra.mxu0 %v4725
    %6667 = vmatprep.subr.bf16.mxu0 %v4734
    %6668 = vmatpush1.bf16.msra.mxu0 %v4733
    %6669 = vmatprep.subr.bf16.mxu0 %v4742
    %6670 = vmatpush1.bf16.msra.mxu0 %v4741
    %6671 = vmatprep.subr.bf16.mxu0 %v4750
    %6672 = vmatpush1.bf16.msra.mxu0 %v4749
    %6673 = vmatprep.subr.bf16.mxu0 %v4758
    %6674 = vmatpush1.bf16.msra.mxu0 %v4757
    %6675 = vmatprep.subr.bf16.mxu0 %v4766
    %6676 = vmatpush1.bf16.msra.mxu0 %v4765
    %6677 = vmatprep.subr.bf16.mxu0 %v4774
    %6678 = vmatpush1.bf16.msra.mxu0 %v4773
    %6679 = vmatprep.subr.bf16.mxu0 %v4782
    %6680 = vmatpush1.bf16.msra.mxu0 %v4781
    %6681 = vmatprep.subr.bf16.mxu0 %v4790
    %6682 = vmatpush1.bf16.msra.mxu0 %v4789
    %6683 = vmatprep.mubr.bf16.mxu0 %v106
    %6684 = vmatmul.mubr.bf16.gmra.mrb[0].mxu0 %v105
    %v6685 = vpop.f32.mrb[0].mxu0
    %v6686 = vadd.f32 %v6645, %v6685
    %v6687 = vpop.f32.mrb[0].mxu0
    %v6688 = vadd.f32 %v6647, %v6687
    %v6689 = vpop.f32.mrb[0].mxu0
    %v6690 = vpop.f32.mrb[0].mxu0
    %6691 = vdwg.mxu0
    %6692 = vmatprep.subr.bf16.mxu0 %v4798
    %6693 = vmatpush1.bf16.msra.mxu0 %v4797
    %6694 = vmatprep.subr.bf16.mxu0 %v4806
    %6695 = vmatpush1.bf16.msra.mxu0 %v4805
    %6696 = vmatprep.subr.bf16.mxu0 %v4814
    %6697 = vmatpush1.bf16.msra.mxu0 %v4813
    %6698 = vmatprep.subr.bf16.mxu0 %v4822
    %6699 = vmatpush1.bf16.msra.mxu0 %v4821
    %6700 = vmatprep.subr.bf16.mxu0 %v4830
    %6701 = vmatpush1.bf16.msra.mxu0 %v4829
    %6702 = vmatprep.subr.bf16.mxu0 %v4838
    %6703 = vmatpush1.bf16.msra.mxu0 %v4837
    %6704 = vmatprep.subr.bf16.mxu0 %v4846
    %6705 = vmatpush1.bf16.msra.mxu0 %v4845
    %6706 = vmatprep.subr.bf16.mxu0 %v4854
    %6707 = vmatpush1.bf16.msra.mxu0 %v4853
    %6708 = vmatprep.subr.bf16.mxu0 %v4862
    %6709 = vmatpush1.bf16.msra.mxu0 %v4861
    %6710 = vmatprep.subr.bf16.mxu0 %v4870
    %6711 = vmatpush1.bf16.msra.mxu0 %v4869
    %6712 = vmatprep.subr.bf16.mxu0 %v4878
    %6713 = vmatpush1.bf16.msra.mxu0 %v4877
    %6714 = vmatprep.subr.bf16.mxu0 %v4886
    %6715 = vmatpush1.bf16.msra.mxu0 %v4885
    %6716 = vmatprep.subr.bf16.mxu0 %v4894
    %6717 = vmatpush1.bf16.msra.mxu0 %v4893
    %6718 = vmatprep.subr.bf16.mxu0 %v4902
    %6719 = vmatpush1.bf16.msra.mxu0 %v4901
    %6720 = vmatprep.subr.bf16.mxu0 %v4910
    %6721 = vmatpush1.bf16.msra.mxu0 %v4909
    %6722 = vmatprep.subr.bf16.mxu0 %v4918
    %6723 = vmatpush1.bf16.msra.mxu0 %v4917
    %6724 = vmatprep.mubr.bf16.mxu0 %v108
    %6725 = vmatmul.mubr.bf16.gmra.mrb[0].mxu0 %v107
    %v6726 = vpop.f32.mrb[0].mxu0
    %v6727 = vadd.f32 %v6686, %v6726
    %v6728 = vpop.f32.mrb[0].mxu0
    %v6729 = vadd.f32 %v6688, %v6728
    %v6730 = vpop.f32.mrb[0].mxu0
    %v6731 = vpop.f32.mrb[0].mxu0
    %6732 = vdwg.mxu0
    %6733 = vmatprep.subr.bf16.mxu0 %v4926
    %6734 = vmatpush1.bf16.msra.mxu0 %v4925
    %6735 = vmatprep.subr.bf16.mxu0 %v4934
    %6736 = vmatpush1.bf16.msra.mxu0 %v4933
    %6737 = vmatprep.subr.bf16.mxu0 %v4942
    %6738 = vmatpush1.bf16.msra.mxu0 %v4941
    %6739 = vmatprep.subr.bf16.mxu0 %v4950
    %6740 = vmatpush1.bf16.msra.mxu0 %v4949
    %6741 = vmatprep.subr.bf16.mxu0 %v4958
    %6742 = vmatpush1.bf16.msra.mxu0 %v4957
    %6743 = vmatprep.subr.bf16.mxu0 %v4966
    %6744 = vmatpush1.bf16.msra.mxu0 %v4965
    %6745 = vmatprep.subr.bf16.mxu0 %v4974
    %6746 = vmatpush1.bf16.msra.mxu0 %v4973
    %6747 = vmatprep.subr.bf16.mxu0 %v4982
    %6748 = vmatpush1.bf16.msra.mxu0 %v4981
    %6749 = vmatprep.subr.bf16.mxu0 %v4990
    %6750 = vmatpush1.bf16.msra.mxu0 %v4989
    %6751 = vmatprep.subr.bf16.mxu0 %v4998
    %6752 = vmatpush1.bf16.msra.mxu0 %v4997
    %6753 = vmatprep.subr.bf16.mxu0 %v5006
    %6754 = vmatpush1.bf16.msra.mxu0 %v5005
    %6755 = vmatprep.subr.bf16.mxu0 %v5014
    %6756 = vmatpush1.bf16.msra.mxu0 %v5013
    %6757 = vmatprep.subr.bf16.mxu0 %v5022
    %6758 = vmatpush1.bf16.msra.mxu0 %v5021
    %6759 = vmatprep.subr.bf16.mxu0 %v5030
    %6760 = vmatpush1.bf16.msra.mxu0 %v5029
    %6761 = vmatprep.subr.bf16.mxu0 %v5038
    %6762 = vmatpush1.bf16.msra.mxu0 %v5037
    %6763 = vmatprep.subr.bf16.mxu0 %v5046
    %6764 = vmatpush1.bf16.msra.mxu0 %v5045
    %6765 = vmatprep.mubr.bf16.mxu0 %v110
    %6766 = vmatmul.mubr.bf16.gmra.mrb[0].mxu0 %v109
    %v6767 = vpop.f32.mrb[0].mxu0
    %v6768 = vadd.f32 %v6727, %v6767
    %v6769 = vpop.f32.mrb[0].mxu0
    %v6770 = vadd.f32 %v6729, %v6769
    %v6771 = vpop.f32.mrb[0].mxu0
    %v6772 = vpop.f32.mrb[0].mxu0
    %6773 = vdwg.mxu0
    %6774 = vmatprep.subr.bf16.mxu0 %v5054
    %6775 = vmatpush1.bf16.msra.mxu0 %v5053
    %6776 = vmatprep.subr.bf16.mxu0 %v5062
    %6777 = vmatpush1.bf16.msra.mxu0 %v5061
    %6778 = vmatprep.subr.bf16.mxu0 %v5070
    %6779 = vmatpush1.bf16.msra.mxu0 %v5069
    %6780 = vmatprep.subr.bf16.mxu0 %v5078
    %6781 = vmatpush1.bf16.msra.mxu0 %v5077
    %6782 = vmatprep.subr.bf16.mxu0 %v5086
    %6783 = vmatpush1.bf16.msra.mxu0 %v5085
    %6784 = vmatprep.subr.bf16.mxu0 %v5094
    %6785 = vmatpush1.bf16.msra.mxu0 %v5093
    %6786 = vmatprep.subr.bf16.mxu0 %v5102
    %6787 = vmatpush1.bf16.msra.mxu0 %v5101
    %6788 = vmatprep.subr.bf16.mxu0 %v5110
    %6789 = vmatpush1.bf16.msra.mxu0 %v5109
    %6790 = vmatprep.subr.bf16.mxu0 %v5118
    %6791 = vmatpush1.bf16.msra.mxu0 %v5117
    %6792 = vmatprep.subr.bf16.mxu0 %v5126
    %6793 = vmatpush1.bf16.msra.mxu0 %v5125
    %6794 = vmatprep.subr.bf16.mxu0 %v5134
    %6795 = vmatpush1.bf16.msra.mxu0 %v5133
    %6796 = vmatprep.subr.bf16.mxu0 %v5142
    %6797 = vmatpush1.bf16.msra.mxu0 %v5141
    %6798 = vmatprep.subr.bf16.mxu0 %v5150
    %6799 = vmatpush1.bf16.msra.mxu0 %v5149
    %6800 = vmatprep.subr.bf16.mxu0 0
    %6801 = vmatpush1.bf16.msra.mxu0 0
    %6802 = vmatprep.subr.bf16.mxu0 0
    %6803 = vmatpush1.bf16.msra.mxu0 0
    %6804 = vmatprep.subr.bf16.mxu0 0
    %6805 = vmatpush1.bf16.msra.mxu0 0
    %6806 = vmatprep.mubr.bf16.mxu0 %v6157
    %6807 = vmatmul.mubr.bf16.gmra.mrb[0].mxu0 %v111
    %v6808 = vpop.f32.mrb[0].mxu0
    %v6809 = vadd.f32 %v6768, %v6808
    %v6810 = vpop.f32.mrb[0].mxu0
    %v6811 = vadd.f32 %v6770, %v6810
    %v6812 = vpop.f32.mrb[0].mxu0
    %v6813 = vpop.f32.mrb[0].mxu0
    %6814 = vdwg.mxu0
    %6815 = vmatprep.subr.bf16.mxu0 %v4160
    %6816 = vmatpush1.bf16.msra.mxu0 %v4159
    %6817 = vmatprep.subr.bf16.mxu0 %v4168
    %6818 = vmatpush1.bf16.msra.mxu0 %v4167
    %6819 = vmatprep.subr.bf16.mxu0 %v4176
    %6820 = vmatpush1.bf16.msra.mxu0 %v4175
    %6821 = vmatprep.subr.bf16.mxu0 %v4184
    %6822 = vmatpush1.bf16.msra.mxu0 %v4183
    %6823 = vmatprep.subr.bf16.mxu0 %v4192
    %6824 = vmatpush1.bf16.msra.mxu0 %v4191
    %6825 = vmatprep.subr.bf16.mxu0 %v4200
    %6826 = vmatpush1.bf16.msra.mxu0 %v4199
    %6827 = vmatprep.subr.bf16.mxu0 %v4208
    %6828 = vmatpush1.bf16.msra.mxu0 %v4207
    %6829 = vmatprep.subr.bf16.mxu0 %v4216
    %6830 = vmatpush1.bf16.msra.mxu0 %v4215
    %6831 = vmatprep.subr.bf16.mxu0 %v4224
    %6832 = vmatpush1.bf16.msra.mxu0 %v4223
    %6833 = vmatprep.subr.bf16.mxu0 %v4232
    %6834 = vmatpush1.bf16.msra.mxu0 %v4231
    %6835 = vmatprep.subr.bf16.mxu0 %v4240
    %6836 = vmatpush1.bf16.msra.mxu0 %v4239
    %6837 = vmatprep.subr.bf16.mxu0 %v4248
    %6838 = vmatpush1.bf16.msra.mxu0 %v4247
    %6839 = vmatprep.subr.bf16.mxu0 %v4256
    %6840 = vmatpush1.bf16.msra.mxu0 %v4255
    %6841 = vmatprep.subr.bf16.mxu0 %v4264
    %6842 = vmatpush1.bf16.msra.mxu0 %v4263
    %6843 = vmatprep.subr.bf16.mxu0 %v4272
    %6844 = vmatpush1.bf16.msra.mxu0 %v4271
    %6845 = vmatprep.subr.bf16.mxu0 %v4280
    %6846 = vmatpush1.bf16.msra.mxu0 %v4279
    %6847 = vmatprep.mubr.bf16.mxu0 %v98
    %6848 = vmatmul.mubr.bf16.gmra.mrb[0].mxu0 %v97
    %v6849 = vpop.f32.mrb[0].mxu0
    %v6850 = vadd.f32 %v1134, %v6849
    %v6851 = vpop.f32.mrb[0].mxu0
    %v6852 = vadd.f32 %v1138, %v6851
    %v6853 = vpop.f32.mrb[0].mxu0
    %v6854 = vpop.f32.mrb[0].mxu0
    %6855 = vdwg.mxu0
    %6856 = vmatprep.subr.bf16.mxu0 %v4288
    %6857 = vmatpush1.bf16.msra.mxu0 %v4287
    %6858 = vmatprep.subr.bf16.mxu0 %v4296
    %6859 = vmatpush1.bf16.msra.mxu0 %v4295
    %6860 = vmatprep.subr.bf16.mxu0 %v4304
    %6861 = vmatpush1.bf16.msra.mxu0 %v4303
    %6862 = vmatprep.subr.bf16.mxu0 %v4312
    %6863 = vmatpush1.bf16.msra.mxu0 %v4311
    %6864 = vmatprep.subr.bf16.mxu0 %v4320
    %6865 = vmatpush1.bf16.msra.mxu0 %v4319
    %6866 = vmatprep.subr.bf16.mxu0 %v4328
    %6867 = vmatpush1.bf16.msra.mxu0 %v4327
    %6868 = vmatprep.subr.bf16.mxu0 %v4336
    %6869 = vmatpush1.bf16.msra.mxu0 %v4335
    %6870 = vmatprep.subr.bf16.mxu0 %v4344
    %6871 = vmatpush1.bf16.msra.mxu0 %v4343
    %6872 = vmatprep.subr.bf16.mxu0 %v4352
    %6873 = vmatpush1.bf16.msra.mxu0 %v4351
    %6874 = vmatprep.subr.bf16.mxu0 %v4360
    %6875 = vmatpush1.bf16.msra.mxu0 %v4359
    %6876 = vmatprep.subr.bf16.mxu0 %v4368
    %6877 = vmatpush1.bf16.msra.mxu0 %v4367
    %6878 = vmatprep.subr.bf16.mxu0 %v4376
    %6879 = vmatpush1.bf16.msra.mxu0 %v4375
    %6880 = vmatprep.subr.bf16.mxu0 %v4384
    %6881 = vmatpush1.bf16.msra.mxu0 %v4383
    %6882 = vmatprep.subr.bf16.mxu0 %v4392
    %6883 = vmatpush1.bf16.msra.mxu0 %v4391
    %6884 = vmatprep.subr.bf16.mxu0 %v4400
    %6885 = vmatpush1.bf16.msra.mxu0 %v4399
    %6886 = vmatprep.subr.bf16.mxu0 %v4408
    %6887 = vmatpush1.bf16.msra.mxu0 %v4407
    %6888 = vmatprep.mubr.bf16.mxu0 %v100
    %6889 = vmatmul.mubr.bf16.gmra.mrb[0].mxu0 %v99
    %v6890 = vpop.f32.mrb[0].mxu0
    %v6891 = vadd.f32 %v6850, %v6890
    %v6892 = vpop.f32.mrb[0].mxu0
    %v6893 = vadd.f32 %v6852, %v6892
    %v6894 = vpop.f32.mrb[0].mxu0
    %v6895 = vpop.f32.mrb[0].mxu0
    %6896 = vdwg.mxu0
    %6897 = vmatprep.subr.bf16.mxu0 %v4416
    %6898 = vmatpush1.bf16.msra.mxu0 %v4415
    %6899 = vmatprep.subr.bf16.mxu0 %v4424
    %6900 = vmatpush1.bf16.msra.mxu0 %v4423
    %6901 = vmatprep.subr.bf16.mxu0 %v4432
    %6902 = vmatpush1.bf16.msra.mxu0 %v4431
    %6903 = vmatprep.subr.bf16.mxu0 %v4440
    %6904 = vmatpush1.bf16.msra.mxu0 %v4439
    %6905 = vmatprep.subr.bf16.mxu0 %v4448
    %6906 = vmatpush1.bf16.msra.mxu0 %v4447
    %6907 = vmatprep.subr.bf16.mxu0 %v4456
    %6908 = vmatpush1.bf16.msra.mxu0 %v4455
    %6909 = vmatprep.subr.bf16.mxu0 %v4464
    %6910 = vmatpush1.bf16.msra.mxu0 %v4463
    %6911 = vmatprep.subr.bf16.mxu0 %v4472
    %6912 = vmatpush1.bf16.msra.mxu0 %v4471
    %6913 = vmatprep.subr.bf16.mxu0 %v4480
    %6914 = vmatpush1.bf16.msra.mxu0 %v4479
    %6915 = vmatprep.subr.bf16.mxu0 %v4488
    %6916 = vmatpush1.bf16.msra.mxu0 %v4487
    %6917 = vmatprep.subr.bf16.mxu0 %v4496
    %6918 = vmatpush1.bf16.msra.mxu0 %v4495
    %6919 = vmatprep.subr.bf16.mxu0 %v4504
    %6920 = vmatpush1.bf16.msra.mxu0 %v4503
    %6921 = vmatprep.subr.bf16.mxu0 %v4512
    %6922 = vmatpush1.bf16.msra.mxu0 %v4511
    %6923 = vmatprep.subr.bf16.mxu0 %v4520
    %6924 = vmatpush1.bf16.msra.mxu0 %v4519
    %6925 = vmatprep.subr.bf16.mxu0 %v4528
    %6926 = vmatpush1.bf16.msra.mxu0 %v4527
    %6927 = vmatprep.subr.bf16.mxu0 %v4536
    %6928 = vmatpush1.bf16.msra.mxu0 %v4535
    %6929 = vmatprep.mubr.bf16.mxu0 %v102
    %6930 = vmatmul.mubr.bf16.gmra.mrb[0].mxu0 %v101
    %v6931 = vpop.f32.mrb[0].mxu0
    %v6932 = vadd.f32 %v6891, %v6931
    %v6933 = vpop.f32.mrb[0].mxu0
    %v6934 = vadd.f32 %v6893, %v6933
    %v6935 = vpop.f32.mrb[0].mxu0
    %v6936 = vpop.f32.mrb[0].mxu0
    %6937 = vdwg.mxu0
    %6938 = vmatprep.subr.bf16.mxu0 %v4544
    %6939 = vmatpush1.bf16.msra.mxu0 %v4543
    %6940 = vmatprep.subr.bf16.mxu0 %v4552
    %6941 = vmatpush1.bf16.msra.mxu0 %v4551
    %6942 = vmatprep.subr.bf16.mxu0 %v4560
    %6943 = vmatpush1.bf16.msra.mxu0 %v4559
    %6944 = vmatprep.subr.bf16.mxu0 %v4568
    %6945 = vmatpush1.bf16.msra.mxu0 %v4567
    %6946 = vmatprep.subr.bf16.mxu0 %v4576
    %6947 = vmatpush1.bf16.msra.mxu0 %v4575
    %6948 = vmatprep.subr.bf16.mxu0 %v4584
    %6949 = vmatpush1.bf16.msra.mxu0 %v4583
    %6950 = vmatprep.subr.bf16.mxu0 %v4592
    %6951 = vmatpush1.bf16.msra.mxu0 %v4591
    %6952 = vmatprep.subr.bf16.mxu0 %v4600
    %6953 = vmatpush1.bf16.msra.mxu0 %v4599
    %6954 = vmatprep.subr.bf16.mxu0 %v4608
    %6955 = vmatpush1.bf16.msra.mxu0 %v4607
    %6956 = vmatprep.subr.bf16.mxu0 %v4616
    %6957 = vmatpush1.bf16.msra.mxu0 %v4615
    %6958 = vmatprep.subr.bf16.mxu0 %v4624
    %6959 = vmatpush1.bf16.msra.mxu0 %v4623
    %6960 = vmatprep.subr.bf16.mxu0 %v4632
    %6961 = vmatpush1.bf16.msra.mxu0 %v4631
    %6962 = vmatprep.subr.bf16.mxu0 %v4640
    %6963 = vmatpush1.bf16.msra.mxu0 %v4639
    %6964 = vmatprep.subr.bf16.mxu0 %v4648
    %6965 = vmatpush1.bf16.msra.mxu0 %v4647
    %6966 = vmatprep.subr.bf16.mxu0 %v4656
    %6967 = vmatpush1.bf16.msra.mxu0 %v4655
    %6968 = vmatprep.subr.bf16.mxu0 %v4664
    %6969 = vmatpush1.bf16.msra.mxu0 %v4663
    %6970 = vmatprep.mubr.bf16.mxu0 %v104
    %6971 = vmatmul.mubr.bf16.gmra.mrb[0].mxu0 %v103
    %v6972 = vpop.f32.mrb[0].mxu0
    %v6973 = vadd.f32 %v6932, %v6972
    %v6974 = vpop.f32.mrb[0].mxu0
    %v6975 = vadd.f32 %v6934, %v6974
    %v6976 = vpop.f32.mrb[0].mxu0
    %v6977 = vpop.f32.mrb[0].mxu0
    %6978 = vdwg.mxu0
    %6979 = vmatprep.subr.bf16.mxu0 %v4672
    %6980 = vmatpush1.bf16.msra.mxu0 %v4671
    %6981 = vmatprep.subr.bf16.mxu0 %v4680
    %6982 = vmatpush1.bf16.msra.mxu0 %v4679
    %6983 = vmatprep.subr.bf16.mxu0 %v4688
    %6984 = vmatpush1.bf16.msra.mxu0 %v4687
    %6985 = vmatprep.subr.bf16.mxu0 %v4696
    %6986 = vmatpush1.bf16.msra.mxu0 %v4695
    %6987 = vmatprep.subr.bf16.mxu0 %v4704
    %6988 = vmatpush1.bf16.msra.mxu0 %v4703
    %6989 = vmatprep.subr.bf16.mxu0 %v4712
    %6990 = vmatpush1.bf16.msra.mxu0 %v4711
    %6991 = vmatprep.subr.bf16.mxu0 %v4720
    %6992 = vmatpush1.bf16.msra.mxu0 %v4719
    %6993 = vmatprep.subr.bf16.mxu0 %v4728
    %6994 = vmatpush1.bf16.msra.mxu0 %v4727
    %6995 = vmatprep.subr.bf16.mxu0 %v4736
    %6996 = vmatpush1.bf16.msra.mxu0 %v4735
    %6997 = vmatprep.subr.bf16.mxu0 %v4744
    %6998 = vmatpush1.bf16.msra.mxu0 %v4743
    %6999 = vmatprep.subr.bf16.mxu0 %v4752
    %7000 = vmatpush1.bf16.msra.mxu0 %v4751
    %7001 = vmatprep.subr.bf16.mxu0 %v4760
    %7002 = vmatpush1.bf16.msra.mxu0 %v4759
    %7003 = vmatprep.subr.bf16.mxu0 %v4768
    %7004 = vmatpush1.bf16.msra.mxu0 %v4767
    %7005 = vmatprep.subr.bf16.mxu0 %v4776
    %7006 = vmatpush1.bf16.msra.mxu0 %v4775
    %7007 = vmatprep.subr.bf16.mxu0 %v4784
    %7008 = vmatpush1.bf16.msra.mxu0 %v4783
    %7009 = vmatprep.subr.bf16.mxu0 %v4792
    %7010 = vmatpush1.bf16.msra.mxu0 %v4791
    %7011 = vmatprep.mubr.bf16.mxu0 %v106
    %7012 = vmatmul.mubr.bf16.gmra.mrb[0].mxu0 %v105
    %v7013 = vpop.f32.mrb[0].mxu0
    %v7014 = vadd.f32 %v6973, %v7013
    %v7015 = vpop.f32.mrb[0].mxu0
    %v7016 = vadd.f32 %v6975, %v7015
    %v7017 = vpop.f32.mrb[0].mxu0
    %v7018 = vpop.f32.mrb[0].mxu0
    %7019 = vdwg.mxu0
    %7020 = vmatprep.subr.bf16.mxu0 %v4800
    %7021 = vmatpush1.bf16.msra.mxu0 %v4799
    %7022 = vmatprep.subr.bf16.mxu0 %v4808
    %7023 = vmatpush1.bf16.msra.mxu0 %v4807
    %7024 = vmatprep.subr.bf16.mxu0 %v4816
    %7025 = vmatpush1.bf16.msra.mxu0 %v4815
    %7026 = vmatprep.subr.bf16.mxu0 %v4824
    %7027 = vmatpush1.bf16.msra.mxu0 %v4823
    %7028 = vmatprep.subr.bf16.mxu0 %v4832
    %7029 = vmatpush1.bf16.msra.mxu0 %v4831
    %7030 = vmatprep.subr.bf16.mxu0 %v4840
    %7031 = vmatpush1.bf16.msra.mxu0 %v4839
    %7032 = vmatprep.subr.bf16.mxu0 %v4848
    %7033 = vmatpush1.bf16.msra.mxu0 %v4847
    %7034 = vmatprep.subr.bf16.mxu0 %v4856
    %7035 = vmatpush1.bf16.msra.mxu0 %v4855
    %7036 = vmatprep.subr.bf16.mxu0 %v4864
    %7037 = vmatpush1.bf16.msra.mxu0 %v4863
    %7038 = vmatprep.subr.bf16.mxu0 %v4872
    %7039 = vmatpush1.bf16.msra.mxu0 %v4871
    %7040 = vmatprep.subr.bf16.mxu0 %v4880
    %7041 = vmatpush1.bf16.msra.mxu0 %v4879
    %7042 = vmatprep.subr.bf16.mxu0 %v4888
    %7043 = vmatpush1.bf16.msra.mxu0 %v4887
    %7044 = vmatprep.subr.bf16.mxu0 %v4896
    %7045 = vmatpush1.bf16.msra.mxu0 %v4895
    %7046 = vmatprep.subr.bf16.mxu0 %v4904
    %7047 = vmatpush1.bf16.msra.mxu0 %v4903
    %7048 = vmatprep.subr.bf16.mxu0 %v4912
    %7049 = vmatpush1.bf16.msra.mxu0 %v4911
    %7050 = vmatprep.subr.bf16.mxu0 %v4920
    %7051 = vmatpush1.bf16.msra.mxu0 %v4919
    %7052 = vmatprep.mubr.bf16.mxu0 %v108
    %7053 = vmatmul.mubr.bf16.gmra.mrb[0].mxu0 %v107
    %v7054 = vpop.f32.mrb[0].mxu0
    %v7055 = vadd.f32 %v7014, %v7054
    %v7056 = vpop.f32.mrb[0].mxu0
    %v7057 = vadd.f32 %v7016, %v7056
    %v7058 = vpop.f32.mrb[0].mxu0
    %v7059 = vpop.f32.mrb[0].mxu0
    %7060 = vdwg.mxu0
    %7061 = vmatprep.subr.bf16.mxu0 %v4928
    %7062 = vmatpush1.bf16.msra.mxu0 %v4927
    %7063 = vmatprep.subr.bf16.mxu0 %v4936
    %7064 = vmatpush1.bf16.msra.mxu0 %v4935
    %7065 = vmatprep.subr.bf16.mxu0 %v4944
    %7066 = vmatpush1.bf16.msra.mxu0 %v4943
    %7067 = vmatprep.subr.bf16.mxu0 %v4952
    %7068 = vmatpush1.bf16.msra.mxu0 %v4951
    %7069 = vmatprep.subr.bf16.mxu0 %v4960
    %7070 = vmatpush1.bf16.msra.mxu0 %v4959
    %7071 = vmatprep.subr.bf16.mxu0 %v4968
    %7072 = vmatpush1.bf16.msra.mxu0 %v4967
    %7073 = vmatprep.subr.bf16.mxu0 %v4976
    %7074 = vmatpush1.bf16.msra.mxu0 %v4975
    %7075 = vmatprep.subr.bf16.mxu0 %v4984
    %7076 = vmatpush1.bf16.msra.mxu0 %v4983
    %7077 = vmatprep.subr.bf16.mxu0 %v4992
    %7078 = vmatpush1.bf16.msra.mxu0 %v4991
    %7079 = vmatprep.subr.bf16.mxu0 %v5000
    %7080 = vmatpush1.bf16.msra.mxu0 %v4999
    %7081 = vmatprep.subr.bf16.mxu0 %v5008
    %7082 = vmatpush1.bf16.msra.mxu0 %v5007
    %7083 = vmatprep.subr.bf16.mxu0 %v5016
    %7084 = vmatpush1.bf16.msra.mxu0 %v5015
    %7085 = vmatprep.subr.bf16.mxu0 %v5024
    %7086 = vmatpush1.bf16.msra.mxu0 %v5023
    %7087 = vmatprep.subr.bf16.mxu0 %v5032
    %7088 = vmatpush1.bf16.msra.mxu0 %v5031
    %7089 = vmatprep.subr.bf16.mxu0 %v5040
    %7090 = vmatpush1.bf16.msra.mxu0 %v5039
    %7091 = vmatprep.subr.bf16.mxu0 %v5048
    %7092 = vmatpush1.bf16.msra.mxu0 %v5047
    %7093 = vmatprep.mubr.bf16.mxu0 %v110
    %7094 = vmatmul.mubr.bf16.gmra.mrb[0].mxu0 %v109
    %v7095 = vpop.f32.mrb[0].mxu0
    %v7096 = vadd.f32 %v7055, %v7095
    %v7097 = vpop.f32.mrb[0].mxu0
    %v7098 = vadd.f32 %v7057, %v7097
    %v7099 = vpop.f32.mrb[0].mxu0
    %v7100 = vpop.f32.mrb[0].mxu0
    %7101 = vdwg.mxu0
    %7102 = vmatprep.subr.bf16.mxu0 %v5056
    %7103 = vmatpush1.bf16.msra.mxu0 %v5055
    %7104 = vmatprep.subr.bf16.mxu0 %v5064
    %7105 = vmatpush1.bf16.msra.mxu0 %v5063
    %7106 = vmatprep.subr.bf16.mxu0 %v5072
    %7107 = vmatpush1.bf16.msra.mxu0 %v5071
    %7108 = vmatprep.subr.bf16.mxu0 %v5080
    %7109 = vmatpush1.bf16.msra.mxu0 %v5079
    %7110 = vmatprep.subr.bf16.mxu0 %v5088
    %7111 = vmatpush1.bf16.msra.mxu0 %v5087
    %7112 = vmatprep.subr.bf16.mxu0 %v5096
    %7113 = vmatpush1.bf16.msra.mxu0 %v5095
    %7114 = vmatprep.subr.bf16.mxu0 %v5104
    %7115 = vmatpush1.bf16.msra.mxu0 %v5103
    %7116 = vmatprep.subr.bf16.mxu0 %v5112
    %7117 = vmatpush1.bf16.msra.mxu0 %v5111
    %7118 = vmatprep.subr.bf16.mxu0 %v5120
    %7119 = vmatpush1.bf16.msra.mxu0 %v5119
    %7120 = vmatprep.subr.bf16.mxu0 %v5128
    %7121 = vmatpush1.bf16.msra.mxu0 %v5127
    %7122 = vmatprep.subr.bf16.mxu0 %v5136
    %7123 = vmatpush1.bf16.msra.mxu0 %v5135
    %7124 = vmatprep.subr.bf16.mxu0 %v5144
    %7125 = vmatpush1.bf16.msra.mxu0 %v5143
    %7126 = vmatprep.subr.bf16.mxu0 %v5152
    %7127 = vmatpush1.bf16.msra.mxu0 %v5151
    %7128 = vmatprep.subr.bf16.mxu0 0
    %7129 = vmatpush1.bf16.msra.mxu0 0
    %7130 = vmatprep.subr.bf16.mxu0 0
    %7131 = vmatpush1.bf16.msra.mxu0 0
    %7132 = vmatprep.subr.bf16.mxu0 0
    %7133 = vmatpush1.bf16.msra.mxu0 0
    %7134 = vmatprep.mubr.bf16.mxu0 %v6157
    %7135 = vmatmul.mubr.bf16.gmra.mrb[0].mxu0 %v111
    %v7136 = vpop.f32.mrb[0].mxu0
    %v7137 = vadd.f32 %v7096, %v7136
    %v7138 = vpop.f32.mrb[0].mxu0
    %v7139 = vadd.f32 %v7098, %v7138
    %v7140 = vpop.f32.mrb[0].mxu0
    %v7141 = vpop.f32.mrb[0].mxu0
    %7142 = vdwg.mxu0
    %7143 = vmatprep.subr.bf16.mxu0 %v4162
    %7144 = vmatpush1.bf16.msra.mxu0 %v4161
    %7145 = vmatprep.subr.bf16.mxu0 %v4170
    %7146 = vmatpush1.bf16.msra.mxu0 %v4169
    %7147 = vmatprep.subr.bf16.mxu0 %v4178
    %7148 = vmatpush1.bf16.msra.mxu0 %v4177
    %7149 = vmatprep.subr.bf16.mxu0 %v4186
    %7150 = vmatpush1.bf16.msra.mxu0 %v4185
    %7151 = vmatprep.subr.bf16.mxu0 %v4194
    %7152 = vmatpush1.bf16.msra.mxu0 %v4193
    %7153 = vmatprep.subr.bf16.mxu0 %v4202
    %7154 = vmatpush1.bf16.msra.mxu0 %v4201
    %7155 = vmatprep.subr.bf16.mxu0 %v4210
    %7156 = vmatpush1.bf16.msra.mxu0 %v4209
    %7157 = vmatprep.subr.bf16.mxu0 %v4218
    %7158 = vmatpush1.bf16.msra.mxu0 %v4217
    %7159 = vmatprep.subr.bf16.mxu0 %v4226
    %7160 = vmatpush1.bf16.msra.mxu0 %v4225
    %7161 = vmatprep.subr.bf16.mxu0 %v4234
    %7162 = vmatpush1.bf16.msra.mxu0 %v4233
    %7163 = vmatprep.subr.bf16.mxu0 %v4242
    %7164 = vmatpush1.bf16.msra.mxu0 %v4241
    %7165 = vmatprep.subr.bf16.mxu0 %v4250
    %7166 = vmatpush1.bf16.msra.mxu0 %v4249
    %7167 = vmatprep.subr.bf16.mxu0 %v4258
    %7168 = vmatpush1.bf16.msra.mxu0 %v4257
    %7169 = vmatprep.subr.bf16.mxu0 %v4266
    %7170 = vmatpush1.bf16.msra.mxu0 %v4265
    %7171 = vmatprep.subr.bf16.mxu0 %v4274
    %7172 = vmatpush1.bf16.msra.mxu0 %v4273
    %7173 = vmatprep.subr.bf16.mxu0 %v4282
    %7174 = vmatpush1.bf16.msra.mxu0 %v4281
    %7175 = vmatprep.mubr.bf16.mxu0 %v98
    %7176 = vmatmul.mubr.bf16.gmra.mrb[0].mxu0 %v97
    %v7177 = vpop.f32.mrb[0].mxu0
    %v7178 = vadd.f32 %v1142, %v7177
    %v7179 = vpop.f32.mrb[0].mxu0
    %v7180 = vadd.f32 %v1146, %v7179
    %v7181 = vpop.f32.mrb[0].mxu0
    %v7182 = vpop.f32.mrb[0].mxu0
    %7183 = vdwg.mxu0
    %7184 = vmatprep.subr.bf16.mxu0 %v4290
    %7185 = vmatpush1.bf16.msra.mxu0 %v4289
    %7186 = vmatprep.subr.bf16.mxu0 %v4298
    %7187 = vmatpush1.bf16.msra.mxu0 %v4297
    %7188 = vmatprep.subr.bf16.mxu0 %v4306
    %7189 = vmatpush1.bf16.msra.mxu0 %v4305
    %7190 = vmatprep.subr.bf16.mxu0 %v4314
    %7191 = vmatpush1.bf16.msra.mxu0 %v4313
    %7192 = vmatprep.subr.bf16.mxu0 %v4322
    %7193 = vmatpush1.bf16.msra.mxu0 %v4321
    %7194 = vmatprep.subr.bf16.mxu0 %v4330
    %7195 = vmatpush1.bf16.msra.mxu0 %v4329
    %7196 = vmatprep.subr.bf16.mxu0 %v4338
    %7197 = vmatpush1.bf16.msra.mxu0 %v4337
    %7198 = vmatprep.subr.bf16.mxu0 %v4346
    %7199 = vmatpush1.bf16.msra.mxu0 %v4345
    %7200 = vmatprep.subr.bf16.mxu0 %v4354
    %7201 = vmatpush1.bf16.msra.mxu0 %v4353
    %7202 = vmatprep.subr.bf16.mxu0 %v4362
    %7203 = vmatpush1.bf16.msra.mxu0 %v4361
    %7204 = vmatprep.subr.bf16.mxu0 %v4370
    %7205 = vmatpush1.bf16.msra.mxu0 %v4369
    %7206 = vmatprep.subr.bf16.mxu0 %v4378
    %7207 = vmatpush1.bf16.msra.mxu0 %v4377
    %7208 = vmatprep.subr.bf16.mxu0 %v4386
    %7209 = vmatpush1.bf16.msra.mxu0 %v4385
    %7210 = vmatprep.subr.bf16.mxu0 %v4394
    %7211 = vmatpush1.bf16.msra.mxu0 %v4393
    %7212 = vmatprep.subr.bf16.mxu0 %v4402
    %7213 = vmatpush1.bf16.msra.mxu0 %v4401
    %7214 = vmatprep.subr.bf16.mxu0 %v4410
    %7215 = vmatpush1.bf16.msra.mxu0 %v4409
    %7216 = vmatprep.mubr.bf16.mxu0 %v100
    %7217 = vmatmul.mubr.bf16.gmra.mrb[0].mxu0 %v99
    %v7218 = vpop.f32.mrb[0].mxu0
    %v7219 = vadd.f32 %v7178, %v7218
    %v7220 = vpop.f32.mrb[0].mxu0
    %v7221 = vadd.f32 %v7180, %v7220
    %v7222 = vpop.f32.mrb[0].mxu0
    %v7223 = vpop.f32.mrb[0].mxu0
    %7224 = vdwg.mxu0
    %7225 = vmatprep.subr.bf16.mxu0 %v4418
    %7226 = vmatpush1.bf16.msra.mxu0 %v4417
    %7227 = vmatprep.subr.bf16.mxu0 %v4426
    %7228 = vmatpush1.bf16.msra.mxu0 %v4425
    %7229 = vmatprep.subr.bf16.mxu0 %v4434
    %7230 = vmatpush1.bf16.msra.mxu0 %v4433
    %7231 = vmatprep.subr.bf16.mxu0 %v4442
    %7232 = vmatpush1.bf16.msra.mxu0 %v4441
    %7233 = vmatprep.subr.bf16.mxu0 %v4450
    %7234 = vmatpush1.bf16.msra.mxu0 %v4449
    %7235 = vmatprep.subr.bf16.mxu0 %v4458
    %7236 = vmatpush1.bf16.msra.mxu0 %v4457
    %7237 = vmatprep.subr.bf16.mxu0 %v4466
    %7238 = vmatpush1.bf16.msra.mxu0 %v4465
    %7239 = vmatprep.subr.bf16.mxu0 %v4474
    %7240 = vmatpush1.bf16.msra.mxu0 %v4473
    %7241 = vmatprep.subr.bf16.mxu0 %v4482
    %7242 = vmatpush1.bf16.msra.mxu0 %v4481
    %7243 = vmatprep.subr.bf16.mxu0 %v4490
    %7244 = vmatpush1.bf16.msra.mxu0 %v4489
    %7245 = vmatprep.subr.bf16.mxu0 %v4498
    %7246 = vmatpush1.bf16.msra.mxu0 %v4497
    %7247 = vmatprep.subr.bf16.mxu0 %v4506
    %7248 = vmatpush1.bf16.msra.mxu0 %v4505
    %7249 = vmatprep.subr.bf16.mxu0 %v4514
    %7250 = vmatpush1.bf16.msra.mxu0 %v4513
    %7251 = vmatprep.subr.bf16.mxu0 %v4522
    %7252 = vmatpush1.bf16.msra.mxu0 %v4521
    %7253 = vmatprep.subr.bf16.mxu0 %v4530
    %7254 = vmatpush1.bf16.msra.mxu0 %v4529
    %7255 = vmatprep.subr.bf16.mxu0 %v4538
    %7256 = vmatpush1.bf16.msra.mxu0 %v4537
    %7257 = vmatprep.mubr.bf16.mxu0 %v102
    %7258 = vmatmul.mubr.bf16.gmra.mrb[0].mxu0 %v101
    %v7259 = vpop.f32.mrb[0].mxu0
    %v7260 = vadd.f32 %v7219, %v7259
    %v7261 = vpop.f32.mrb[0].mxu0
    %v7262 = vadd.f32 %v7221, %v7261
    %v7263 = vpop.f32.mrb[0].mxu0
    %v7264 = vpop.f32.mrb[0].mxu0
    %7265 = vdwg.mxu0
    %7266 = vmatprep.subr.bf16.mxu0 %v4546
    %7267 = vmatpush1.bf16.msra.mxu0 %v4545
    %7268 = vmatprep.subr.bf16.mxu0 %v4554
    %7269 = vmatpush1.bf16.msra.mxu0 %v4553
    %7270 = vmatprep.subr.bf16.mxu0 %v4562
    %7271 = vmatpush1.bf16.msra.mxu0 %v4561
    %7272 = vmatprep.subr.bf16.mxu0 %v4570
    %7273 = vmatpush1.bf16.msra.mxu0 %v4569
    %7274 = vmatprep.subr.bf16.mxu0 %v4578
    %7275 = vmatpush1.bf16.msra.mxu0 %v4577
    %7276 = vmatprep.subr.bf16.mxu0 %v4586
    %7277 = vmatpush1.bf16.msra.mxu0 %v4585
    %7278 = vmatprep.subr.bf16.mxu0 %v4594
    %7279 = vmatpush1.bf16.msra.mxu0 %v4593
    %7280 = vmatprep.subr.bf16.mxu0 %v4602
    %7281 = vmatpush1.bf16.msra.mxu0 %v4601
    %7282 = vmatprep.subr.bf16.mxu0 %v4610
    %7283 = vmatpush1.bf16.msra.mxu0 %v4609
    %7284 = vmatprep.subr.bf16.mxu0 %v4618
    %7285 = vmatpush1.bf16.msra.mxu0 %v4617
    %7286 = vmatprep.subr.bf16.mxu0 %v4626
    %7287 = vmatpush1.bf16.msra.mxu0 %v4625
    %7288 = vmatprep.subr.bf16.mxu0 %v4634
    %7289 = vmatpush1.bf16.msra.mxu0 %v4633
    %7290 = vmatprep.subr.bf16.mxu0 %v4642
    %7291 = vmatpush1.bf16.msra.mxu0 %v4641
    %7292 = vmatprep.subr.bf16.mxu0 %v4650
    %7293 = vmatpush1.bf16.msra.mxu0 %v4649
    %7294 = vmatprep.subr.bf16.mxu0 %v4658
    %7295 = vmatpush1.bf16.msra.mxu0 %v4657
    %7296 = vmatprep.subr.bf16.mxu0 %v4666
    %7297 = vmatpush1.bf16.msra.mxu0 %v4665
    %7298 = vmatprep.mubr.bf16.mxu0 %v104
    %7299 = vmatmul.mubr.bf16.gmra.mrb[0].mxu0 %v103
    %v7300 = vpop.f32.mrb[0].mxu0
    %v7301 = vadd.f32 %v7260, %v7300
    %v7302 = vpop.f32.mrb[0].mxu0
    %v7303 = vadd.f32 %v7262, %v7302
    %v7304 = vpop.f32.mrb[0].mxu0
    %v7305 = vpop.f32.mrb[0].mxu0
    %7306 = vdwg.mxu0
    %7307 = vmatprep.subr.bf16.mxu0 %v4674
    %7308 = vmatpush1.bf16.msra.mxu0 %v4673
    %7309 = vmatprep.subr.bf16.mxu0 %v4682
    %7310 = vmatpush1.bf16.msra.mxu0 %v4681
    %7311 = vmatprep.subr.bf16.mxu0 %v4690
    %7312 = vmatpush1.bf16.msra.mxu0 %v4689
    %7313 = vmatprep.subr.bf16.mxu0 %v4698
    %7314 = vmatpush1.bf16.msra.mxu0 %v4697
    %7315 = vmatprep.subr.bf16.mxu0 %v4706
    %7316 = vmatpush1.bf16.msra.mxu0 %v4705
    %7317 = vmatprep.subr.bf16.mxu0 %v4714
    %7318 = vmatpush1.bf16.msra.mxu0 %v4713
    %7319 = vmatprep.subr.bf16.mxu0 %v4722
    %7320 = vmatpush1.bf16.msra.mxu0 %v4721
    %7321 = vmatprep.subr.bf16.mxu0 %v4730
    %7322 = vmatpush1.bf16.msra.mxu0 %v4729
    %7323 = vmatprep.subr.bf16.mxu0 %v4738
    %7324 = vmatpush1.bf16.msra.mxu0 %v4737
    %7325 = vmatprep.subr.bf16.mxu0 %v4746
    %7326 = vmatpush1.bf16.msra.mxu0 %v4745
    %7327 = vmatprep.subr.bf16.mxu0 %v4754
    %7328 = vmatpush1.bf16.msra.mxu0 %v4753
    %7329 = vmatprep.subr.bf16.mxu0 %v4762
    %7330 = vmatpush1.bf16.msra.mxu0 %v4761
    %7331 = vmatprep.subr.bf16.mxu0 %v4770
    %7332 = vmatpush1.bf16.msra.mxu0 %v4769
    %7333 = vmatprep.subr.bf16.mxu0 %v4778
    %7334 = vmatpush1.bf16.msra.mxu0 %v4777
    %7335 = vmatprep.subr.bf16.mxu0 %v4786
    %7336 = vmatpush1.bf16.msra.mxu0 %v4785
    %7337 = vmatprep.subr.bf16.mxu0 %v4794
    %7338 = vmatpush1.bf16.msra.mxu0 %v4793
    %7339 = vmatprep.mubr.bf16.mxu0 %v106
    %7340 = vmatmul.mubr.bf16.gmra.mrb[0].mxu0 %v105
    %v7341 = vpop.f32.mrb[0].mxu0
    %v7342 = vadd.f32 %v7301, %v7341
    %v7343 = vpop.f32.mrb[0].mxu0
    %v7344 = vadd.f32 %v7303, %v7343
    %v7345 = vpop.f32.mrb[0].mxu0
    %v7346 = vpop.f32.mrb[0].mxu0
    %7347 = vdwg.mxu0
    %7348 = vmatprep.subr.bf16.mxu0 %v4802
    %7349 = vmatpush1.bf16.msra.mxu0 %v4801
    %7350 = vmatprep.subr.bf16.mxu0 %v4810
    %7351 = vmatpush1.bf16.msra.mxu0 %v4809
    %7352 = vmatprep.subr.bf16.mxu0 %v4818
    %7353 = vmatpush1.bf16.msra.mxu0 %v4817
    %7354 = vmatprep.subr.bf16.mxu0 %v4826
    %7355 = vmatpush1.bf16.msra.mxu0 %v4825
    %7356 = vmatprep.subr.bf16.mxu0 %v4834
    %7357 = vmatpush1.bf16.msra.mxu0 %v4833
    %7358 = vmatprep.subr.bf16.mxu0 %v4842
    %7359 = vmatpush1.bf16.msra.mxu0 %v4841
    %7360 = vmatprep.subr.bf16.mxu0 %v4850
    %7361 = vmatpush1.bf16.msra.mxu0 %v4849
    %7362 = vmatprep.subr.bf16.mxu0 %v4858
    %7363 = vmatpush1.bf16.msra.mxu0 %v4857
    %7364 = vmatprep.subr.bf16.mxu0 %v4866
    %7365 = vmatpush1.bf16.msra.mxu0 %v4865
    %7366 = vmatprep.subr.bf16.mxu0 %v4874
    %7367 = vmatpush1.bf16.msra.mxu0 %v4873
    %7368 = vmatprep.subr.bf16.mxu0 %v4882
    %7369 = vmatpush1.bf16.msra.mxu0 %v4881
    %7370 = vmatprep.subr.bf16.mxu0 %v4890
    %7371 = vmatpush1.bf16.msra.mxu0 %v4889
    %7372 = vmatprep.subr.bf16.mxu0 %v4898
    %7373 = vmatpush1.bf16.msra.mxu0 %v4897
    %7374 = vmatprep.subr.bf16.mxu0 %v4906
    %7375 = vmatpush1.bf16.msra.mxu0 %v4905
    %7376 = vmatprep.subr.bf16.mxu0 %v4914
    %7377 = vmatpush1.bf16.msra.mxu0 %v4913
    %7378 = vmatprep.subr.bf16.mxu0 %v4922
    %7379 = vmatpush1.bf16.msra.mxu0 %v4921
    %7380 = vmatprep.mubr.bf16.mxu0 %v108
    %7381 = vmatmul.mubr.bf16.gmra.mrb[0].mxu0 %v107
    %v7382 = vpop.f32.mrb[0].mxu0
    %v7383 = vadd.f32 %v7342, %v7382
    %v7384 = vpop.f32.mrb[0].mxu0
    %v7385 = vadd.f32 %v7344, %v7384
    %v7386 = vpop.f32.mrb[0].mxu0
    %v7387 = vpop.f32.mrb[0].mxu0
    %7388 = vdwg.mxu0
    %7389 = vmatprep.subr.bf16.mxu0 %v4930
    %7390 = vmatpush1.bf16.msra.mxu0 %v4929
    %7391 = vmatprep.subr.bf16.mxu0 %v4938
    %7392 = vmatpush1.bf16.msra.mxu0 %v4937
    %7393 = vmatprep.subr.bf16.mxu0 %v4946
    %7394 = vmatpush1.bf16.msra.mxu0 %v4945
    %7395 = vmatprep.subr.bf16.mxu0 %v4954
    %7396 = vmatpush1.bf16.msra.mxu0 %v4953
    %7397 = vmatprep.subr.bf16.mxu0 %v4962
    %7398 = vmatpush1.bf16.msra.mxu0 %v4961
    %7399 = vmatprep.subr.bf16.mxu0 %v4970
    %7400 = vmatpush1.bf16.msra.mxu0 %v4969
    %7401 = vmatprep.subr.bf16.mxu0 %v4978
    %7402 = vmatpush1.bf16.msra.mxu0 %v4977
    %7403 = vmatprep.subr.bf16.mxu0 %v4986
    %7404 = vmatpush1.bf16.msra.mxu0 %v4985
    %7405 = vmatprep.subr.bf16.mxu0 %v4994
    %7406 = vmatpush1.bf16.msra.mxu0 %v4993
    %7407 = vmatprep.subr.bf16.mxu0 %v5002
    %7408 = vmatpush1.bf16.msra.mxu0 %v5001
    %7409 = vmatprep.subr.bf16.mxu0 %v5010
    %7410 = vmatpush1.bf16.msra.mxu0 %v5009
    %7411 = vmatprep.subr.bf16.mxu0 %v5018
    %7412 = vmatpush1.bf16.msra.mxu0 %v5017
    %7413 = vmatprep.subr.bf16.mxu0 %v5026
    %7414 = vmatpush1.bf16.msra.mxu0 %v5025
    %7415 = vmatprep.subr.bf16.mxu0 %v5034
    %7416 = vmatpush1.bf16.msra.mxu0 %v5033
    %7417 = vmatprep.subr.bf16.mxu0 %v5042
    %7418 = vmatpush1.bf16.msra.mxu0 %v5041
    %7419 = vmatprep.subr.bf16.mxu0 %v5050
    %7420 = vmatpush1.bf16.msra.mxu0 %v5049
    %7421 = vmatprep.mubr.bf16.mxu0 %v110
    %7422 = vmatmul.mubr.bf16.gmra.mrb[0].mxu0 %v109
    %v7423 = vpop.f32.mrb[0].mxu0
    %v7424 = vadd.f32 %v7383, %v7423
    %v7425 = vpop.f32.mrb[0].mxu0
    %v7426 = vadd.f32 %v7385, %v7425
    %v7427 = vpop.f32.mrb[0].mxu0
    %v7428 = vpop.f32.mrb[0].mxu0
    %7429 = vdwg.mxu0
    %7430 = vmatprep.subr.bf16.mxu0 %v5058
    %7431 = vmatpush1.bf16.msra.mxu0 %v5057
    %7432 = vmatprep.subr.bf16.mxu0 %v5066
    %7433 = vmatpush1.bf16.msra.mxu0 %v5065
    %7434 = vmatprep.subr.bf16.mxu0 %v5074
    %7435 = vmatpush1.bf16.msra.mxu0 %v5073
    %7436 = vmatprep.subr.bf16.mxu0 %v5082
    %7437 = vmatpush1.bf16.msra.mxu0 %v5081
    %7438 = vmatprep.subr.bf16.mxu0 %v5090
    %7439 = vmatpush1.bf16.msra.mxu0 %v5089
    %7440 = vmatprep.subr.bf16.mxu0 %v5098
    %7441 = vmatpush1.bf16.msra.mxu0 %v5097
    %7442 = vmatprep.subr.bf16.mxu0 %v5106
    %7443 = vmatpush1.bf16.msra.mxu0 %v5105
    %7444 = vmatprep.subr.bf16.mxu0 %v5114
    %7445 = vmatpush1.bf16.msra.mxu0 %v5113
    %7446 = vmatprep.subr.bf16.mxu0 %v5122
    %7447 = vmatpush1.bf16.msra.mxu0 %v5121
    %7448 = vmatprep.subr.bf16.mxu0 %v5130
    %7449 = vmatpush1.bf16.msra.mxu0 %v5129
    %7450 = vmatprep.subr.bf16.mxu0 %v5138
    %7451 = vmatpush1.bf16.msra.mxu0 %v5137
    %7452 = vmatprep.subr.bf16.mxu0 %v5146
    %7453 = vmatpush1.bf16.msra.mxu0 %v5145
    %7454 = vmatprep.subr.bf16.mxu0 %v5154
    %7455 = vmatpush1.bf16.msra.mxu0 %v5153
    %7456 = vmatprep.subr.bf16.mxu0 0
    %7457 = vmatpush1.bf16.msra.mxu0 0
    %7458 = vmatprep.subr.bf16.mxu0 0
    %7459 = vmatpush1.bf16.msra.mxu0 0
    %7460 = vmatprep.subr.bf16.mxu0 0
    %7461 = vmatpush1.bf16.msra.mxu0 0
    %7462 = vmatprep.mubr.bf16.mxu0 %v6157
    %7463 = vmatmul.mubr.bf16.gmra.mrb[0].mxu0 %v111
    %v7464 = vpop.f32.mrb[0].mxu0
    %v7465 = vadd.f32 %v7424, %v7464
    %v7466 = vpop.f32.mrb[0].mxu0
    %v7467 = vadd.f32 %v7426, %v7466
    %v7468 = vpop.f32.mrb[0].mxu0
    %v7469 = vpop.f32.mrb[0].mxu0
    %7470 = vdwg.mxu0
    %v7471 = vxor.u32 %v6481, 2147483648
    %v7472 = vxor.u32 %v6483, 2147483648
    %v7473 = vxor.u32 %v6809, 2147483648
    %v7474 = vxor.u32 %v6811, 2147483648
    %v7475 = vxor.u32 %v7137, 2147483648
    %v7476 = vxor.u32 %v7139, 2147483648
    %v7477 = vxor.u32 %v7465, 2147483648
    %v7478 = vxor.u32 %v7467, 2147483648
    %v7479 = vmul.f32 %v7471, 1.442695
    %v7480 = vpow.pop %v7479
    %v7481 = vmul.f32 %v7472, 1.442695
    %v7482 = vpow.pop %v7481
    %v7483 = vmul.f32 %v7473, 1.442695
    %v7484 = vpow.pop %v7483
    %v7485 = vmul.f32 %v7474, 1.442695
    %v7486 = vpow.pop %v7485
    %v7487 = vmul.f32 %v7475, 1.442695
    %v7488 = vpow.pop %v7487
    %v7489 = vmul.f32 %v7476, 1.442695
    %v7490 = vpow.pop %v7489
    %v7491 = vmul.f32 %v7477, 1.442695
    %v7492 = vpow.pop %v7491
    %v7493 = vmul.f32 %v7478, 1.442695
    %v7494 = vpow.pop %v7493
    %v7495 = vadd.f32 %v7480, 1.0
    %v7496 = vadd.f32 %v7482, 1.0
    %v7497 = vadd.f32 %v7484, 1.0
    %v7498 = vadd.f32 %v7486, 1.0
    %v7499 = vadd.f32 %v7488, 1.0
    %v7500 = vadd.f32 %v7490, 1.0
    %v7501 = vadd.f32 %v7492, 1.0
    %v7502 = vadd.f32 %v7494, 1.0
    %v7503 = vrcp.pop %v7495
    %v7504 = vmul.f32 1.0, %v7503
    %v7505 = vrcp.pop %v7496
    %v7506 = vmul.f32 1.0, %v7505
    %v7507 = vrcp.pop %v7497
    %v7508 = vmul.f32 1.0, %v7507
    %v7509 = vrcp.pop %v7498
    %v7510 = vmul.f32 1.0, %v7509
    %v7511 = vrcp.pop %v7499
    %v7512 = vmul.f32 1.0, %v7511
    %v7513 = vrcp.pop %v7500
    %v7514 = vmul.f32 1.0, %v7513
    %v7515 = vrcp.pop %v7501
    %v7516 = vmul.f32 1.0, %v7515
    %v7517 = vrcp.pop %v7502
    %v7518 = vmul.f32 1.0, %v7517
    %v7519 = vmul.f32 %v6481, %v7504
    %v7520 = vmul.f32 %v6483, %v7506
    %v7521 = vmul.f32 %v6809, %v7508
    %v7522 = vmul.f32 %v6811, %v7510
    %v7523 = vmul.f32 %v7137, %v7512
    %v7524 = vmul.f32 %v7139, %v7514
    %v7525 = vmul.f32 %v7465, %v7516
    %v7526 = vmul.f32 %v7467, %v7518
    %v7527 = vld [vmem:[#allocation7] ss:$2 sm:$0xff]
    %v7529 = vlaneseq
    %v7530 = vshrl.u32 %v7529, 7
    %v7531 = vsub.s32 0, %v7530
    %v7532 = vrot.slane %v7527, %v7531
    %v7533 = vlaneseq
    %v7534 = vshrl.u32 %v7533, 7
    %v7535 = vsub.s32 1, %v7534
    %v7536 = vrot.slane %v7527, %v7535
    %v7537 = vlaneseq
    %v7538 = vshrl.u32 %v7537, 7
    %v7539 = vsub.s32 2, %v7538
    %v7540 = vrot.slane %v7527, %v7539
    %v7541 = vlaneseq
    %v7542 = vshrl.u32 %v7541, 7
    %v7543 = vsub.s32 3, %v7542
    %v7544 = vrot.slane %v7527, %v7543
    %v7545 = vlaneseq
    %v7546 = vshrl.u32 %v7545, 7
    %v7547 = vsub.s32 4, %v7546
    %v7548 = vrot.slane %v7527, %v7547
    %v7549 = vlaneseq
    %v7550 = vshrl.u32 %v7549, 7
    %v7551 = vsub.s32 5, %v7550
    %v7552 = vrot.slane %v7527, %v7551
    %v7553 = vlaneseq
    %v7554 = vshrl.u32 %v7553, 7
    %v7555 = vsub.s32 6, %v7554
    %v7556 = vrot.slane %v7527, %v7555
    %v7557 = vlaneseq
    %v7558 = vshrl.u32 %v7557, 7
    %v7559 = vsub.s32 7, %v7558
    %v7560 = vrot.slane %v7527, %v7559
    %v7569 = vmul.f32 %v7519, %v7532
    %v7570 = vmul.f32 %v7520, %v7536
    %v7571 = vmul.f32 %v7521, %v7540
    %v7572 = vmul.f32 %v7522, %v7544
    %v7573 = vmul.f32 %v7523, %v7548
    %v7574 = vmul.f32 %v7524, %v7552
    %v7575 = vmul.f32 %v7525, %v7556
    %v7576 = vmul.f32 %v7526, %v7560
    %v7577 = vadd.f32 %v7569, %v7570
    %v7578 = vadd.f32 %v7577, %v7571
    %v7579 = vadd.f32 %v7578, %v7572
    %v7580 = vadd.f32 %v7579, %v7573
    %v7581 = vadd.f32 %v7580, %v7574
    %v7582 = vadd.f32 %v7581, %v7575
    %v7583 = vadd.f32 %v7582, %v7576
    %7584 = vadd.xlane.f32.xlu0 %v7583
    %v7585 = vpop.xlane.xlu0 %7584
    %s7586 = scalar_lea.vmem [#allocation7], 1
    %v7587 = vld [vmem:[%s7586] ss:$2 sm:$0xff]
    %v7589 = vlaneseq
    %v7590 = vshrl.u32 %v7589, 7
    %v7591 = vsub.s32 0, %v7590
    %v7592 = vrot.slane %v7587, %v7591
    %v7593 = vlaneseq
    %v7594 = vshrl.u32 %v7593, 7
    %v7595 = vsub.s32 1, %v7594
    %v7596 = vrot.slane %v7587, %v7595
    %v7597 = vlaneseq
    %v7598 = vshrl.u32 %v7597, 7
    %v7599 = vsub.s32 2, %v7598
    %v7600 = vrot.slane %v7587, %v7599
    %v7601 = vlaneseq
    %v7602 = vshrl.u32 %v7601, 7
    %v7603 = vsub.s32 3, %v7602
    %v7604 = vrot.slane %v7587, %v7603
    %v7605 = vlaneseq
    %v7606 = vshrl.u32 %v7605, 7
    %v7607 = vsub.s32 4, %v7606
    %v7608 = vrot.slane %v7587, %v7607
    %v7609 = vlaneseq
    %v7610 = vshrl.u32 %v7609, 7
    %v7611 = vsub.s32 5, %v7610
    %v7612 = vrot.slane %v7587, %v7611
    %v7613 = vlaneseq
    %v7614 = vshrl.u32 %v7613, 7
    %v7615 = vsub.s32 6, %v7614
    %v7616 = vrot.slane %v7587, %v7615
    %v7617 = vlaneseq
    %v7618 = vshrl.u32 %v7617, 7
    %v7619 = vsub.s32 7, %v7618
    %v7620 = vrot.slane %v7587, %v7619
    %v7629 = vmul.f32 %v7519, %v7592
    %v7630 = vmul.f32 %v7520, %v7596
    %v7631 = vmul.f32 %v7521, %v7600
    %v7632 = vmul.f32 %v7522, %v7604
    %v7633 = vmul.f32 %v7523, %v7608
    %v7634 = vmul.f32 %v7524, %v7612
    %v7635 = vmul.f32 %v7525, %v7616
    %v7636 = vmul.f32 %v7526, %v7620
    %v7637 = vadd.f32 %v7629, %v7630
    %v7638 = vadd.f32 %v7637, %v7631
    %v7639 = vadd.f32 %v7638, %v7632
    %v7640 = vadd.f32 %v7639, %v7633
    %v7641 = vadd.f32 %v7640, %v7634
    %v7642 = vadd.f32 %v7641, %v7635
    %v7643 = vadd.f32 %v7642, %v7636
    %7644 = vadd.xlane.f32.xlu0 %v7643
    %v7645 = vpop.xlane.xlu0 %7644
    %vm7646 = vcmask 7168
    %v7647 = vsel %vm7646, %v7585, %v7645
    %v7648 = vld [vmem:[#allocation9] sm:$0x1]
    %v7650 = vlaneseq
    %v7651 = vshrl.u32 %v7650, 7
    %v7652 = vsub.s32 0, %v7651
    %v7653 = vrot.slane %v7648, %v7652
    %v7655 = vadd.f32 %v7647, %v7653
    %vm7656 = vcmask 15360
    %7657 = vst.msk [vmem:[%s5] sm:$0xff] %vm7656, %v7655
    // Predicated region
    $region42: #{tpu_custom_call.1} parent=1 // pred_check
      _
    $region43: #{tpu_custom_call.1} parent=1 // pred_check_branch
      %7659 = sbr.rel (0) target = $region45
    $region44: #{tpu_custom_call.1} parent=1 // pred_region
      _
    $region45: #{tpu_custom_call.1} parent=1 // pred_fallthru
      _
    // Predicated region
    $region46: #{tpu_custom_call.1} parent=1 // pred_check
      _
    $region47: #{tpu_custom_call.1} parent=1 // pred_check_branch
      %7661 = sbr.rel (0) target = $region49
    $region48: #{tpu_custom_call.1} parent=1 // pred_region
      _
    $region49: #{tpu_custom_call.1} parent=1 // pred_fallthru
      _
    %7662 = vsyncpa [#allocation3], 1
    %7663 = vsyncpa [#allocation5], 1
    %7664 = vsyncpa [#allocation8], 1

</llo_original>
